<compile_context>
chip_gen: v7x
topology: tpu7x:2x2x1
jax: 0.10.0
libtpu: 0.0.40
codegen_flags: <defaults>
</compile_context>

<pallas_src>
import functools
import math

import jax
import jax.numpy as jnp
from jax.experimental import pallas as pl
from jax.experimental.pallas import tpu as pltpu


class Config:
    vocab_size = 64
    hidden_size = 32
    num_attention_heads = 32      # head_size = 1 (see NOTE above)
    intermediate_size = 64
    num_hidden_layers = 2
    max_position_embeddings = 16  # >= seq_len + 1 (positions start at 1)
    type_vocab_size = 2
    pad_token_id = 0
    layer_norm_eps = 1e-12
    hidden_dropout_prob = 0.1     # TODO(synk): dropout treated as identity (inference mode)


# ----------------------------------------------------------------------------
# Fused Pallas kernel: [embeddings already added] -> 2 encoder layers -> CLS head
# ----------------------------------------------------------------------------
def _bert_fused_kernel(x_ref, pad_ref, *refs, num_layers, B, L, H, nH, eps):
    # refs = 12*num_layers layer-weight refs, cls_w, cls_b, then outputs:
    #        y_ref, cls_ref, attn_ref[0..num_layers-1]
    nw = 12 * num_layers
    layer_w = refs[:nw]
    cls_w_ref, cls_b_ref = refs[nw], refs[nw + 1]
    y_ref, cls_ref = refs[nw + 2], refs[nw + 3]
    attn_refs = refs[nw + 4:]

    x2 = x_ref[...].reshape(B * L, H)                 # (B*L, H), H on lanes
    key_pad = pad_ref[...][:, None, :, :] > 0.5       # (B, 1, Lk, 1), True where key is PAD
    neg = jnp.float32(-1e9)
    inv_sqrt2 = jnp.float32(1.0 / math.sqrt(2.0))

    for l in range(num_layers):
        (wqkv, bqkv, wo, bo, ln1g, ln1b,
         w1, b1, w2, b2, ln2g, ln2b) = layer_w[12 * l:12 * (l + 1)]

        # --- fused QKV projection (scale pre-folded into the Q slice) ---
        qkv = (jnp.dot(x2, wqkv[...], preferred_element_type=jnp.float32)
               + bqkv[...]).reshape(B, L, 3 * H)
        q = qkv[:, :, 0 * H:1 * H]                    # (B, L, H)
        k = qkv[:, :, 1 * H:2 * H]
        v = qkv[:, :, 2 * H:3 * H]

        # --- attention in (B, Lq, Lk, H) layout: head_size==1 -> head h == channel h ---
        s = q[:, :, None, :] * k[:, None, :, :]       # (B, L, L, H)
        s = jnp.where(key_pad, neg, s)
        m = jnp.max(s, axis=2, keepdims=True)
        e = jnp.exp(s - m)
        p = e / jnp.sum(e, axis=2, keepdims=True)     # softmax over keys
        attn_refs[l][...] = p                         # natural layout; transposed outside
        ctx = jnp.sum(p * v[:, None, :, :], axis=2)   # (B, L, H)

        # output projection (reference's buggy .view() is a no-op for head_size==1)
        att = jnp.dot(ctx.reshape(B * L, H), wo[...],
                      preferred_element_type=jnp.float32) + bo[...]
        # TODO(synk): attention / hidden dropout treated as identity (inference mode)

        # --- LayerNorm1(x + attention_output) ---
        h = x2 + att
        mu = jnp.mean(h, axis=-1, keepdims=True)
        var = jnp.mean((h - mu) ** 2, axis=-1, keepdims=True)
        h1 = (h - mu) * jax.lax.rsqrt(var + eps) * ln1g[...] + ln1b[...]

        # --- position-wise FFN: Conv1d(k=1) == Linear over hidden; exact (erf) GELU ---
        f = jnp.dot(h1, w1[...], preferred_element_type=jnp.float32) + b1[...]
        f = 0.5 * f * (1.0 + jax.lax.erf(f * inv_sqrt2))
        f = jnp.dot(f, w2[...], preferred_element_type=jnp.float32) + b2[...]

        # --- LayerNorm2(ffn_output + h1) ---
        g = f + h1
        mu2 = jnp.mean(g, axis=-1, keepdims=True)
        var2 = jnp.mean((g - mu2) ** 2, axis=-1, keepdims=True)
        x2 = (g - mu2) * jax.lax.rsqrt(var2 + eps) * ln2g[...] + ln2b[...]

    y_ref[...] = x2.reshape(B, L, H)

    # --- CLS head: tanh(Linear(outputs[:, 0])) ---
    x_cls = x2.reshape(B, L, H)[:, 0, :]              # (B, H)
    cls_ref[...] = jnp.tanh(
        jnp.dot(x_cls, cls_w_ref[...], preferred_element_type=jnp.float32)
        + cls_b_ref[...])


# ----------------------------------------------------------------------------
# Wrappers
# ----------------------------------------------------------------------------
_LAYER_KEYS = ("wqkv_t", "bqkv", "wo_t", "bo", "ln1_g", "ln1_b",
               "w1_t", "b1", "w2_t", "b2", "ln2_g", "ln2_b")


def fused_bert_call(params, x_emb, pad_f, cfg):
    B, L, H = x_emb.shape
    nH = cfg.num_attention_heads
    layers = params["layers"]
    num_layers = len(layers)
    flat_w = [lp[k] for lp in layers for k in _LAYER_KEYS]

    out_shape = ((jax.ShapeDtypeStruct((B, L, H), jnp.float32),      # hidden states
                  jax.ShapeDtypeStruct((B, H), jnp.float32))         # CLS output
                 + tuple(jax.ShapeDtypeStruct((B, L, L, nH), jnp.float32)
                         for _ in range(num_layers)))                # attn probs (natural layout)

    kernel = functools.partial(_bert_fused_kernel, num_layers=num_layers,
                               B=B, L=L, H=H, nH=nH, eps=cfg.layer_norm_eps)
    # No grid: whole problem is one block (B*L*H ~ 2 KB), single kernel launch.
    outs = pl.pallas_call(kernel, out_shape=out_shape)(
        x_emb, pad_f, *flat_w, params["cls_w_t"], params["cls_b"])
    return outs[0], outs[1], list(outs[2:])


def bert_forward(params, inputs, segments, cfg):
    B, L = inputs.shape
    # --- embeddings (glue: plain-JAX gathers) ---
    positions = jnp.broadcast_to(jnp.arange(L, dtype=inputs.dtype)[None, :] + 1, (B, L))
    pad = inputs == cfg.pad_token_id
    positions = jnp.where(pad, 0, positions)
    x = (params["word_emb"][inputs]
         + params["pos_emb"][positions]
         + params["tok_emb"][segments]).astype(jnp.float32)

    pad_f = pad.astype(jnp.float32)[:, :, None]       # (B, L, 1) key-pad mask

    y, cls, attn_raw = fused_bert_call(params, x, pad_f, cfg)
    # layout plumbing outside the kernel: (B, Lq, Lk, nH) -> (B, nH, Lq, Lk)
    attn_probs = [jnp.transpose(a, (0, 3, 1, 2)) for a in attn_raw]
    return y, cls, attn_probs


# ----------------------------------------------------------------------------
# Deterministic parameter init (synthetic; shapes mirror the nn.Module)
# ----------------------------------------------------------------------------
def init_layer(key, cfg):
    H, I = cfg.hidden_size, cfg.intermediate_size
    head_size = H // cfg.num_attention_heads
    scale = 1.0 / (head_size ** 0.5)
    ks = jax.random.split(key, 12)
    n = lambda k, s: 0.02 * jax.random.normal(k, s, jnp.float32)
    # PyTorch Linear / Conv1d(k=1) weights are (out, in); store transposed (in, out).
    wq_t = n(ks[0], (H, H)).T * scale   # fold 1/sqrt(head_size) into Q projection
    bq = n(ks[1], (1, H)) * scale
    wk_t = n(ks[2], (H, H)).T
    bk = n(ks[3], (1, H))
    wv_t = n(ks[4], (H, H)).T
    bv = n(ks[5], (1, H))
    return dict(
        wqkv_t=jnp.concatenate([wq_t, wk_t, wv_t], axis=1),   # (H, 3H) fused QKV
        bqkv=jnp.concatenate([bq, bk, bv], axis=1),            # (1, 3H)
        wo_t=n(ks[6], (H, H)).T, bo=n(ks[7], (1, H)),
        ln1_g=jnp.ones((1, H), jnp.float32), ln1_b=jnp.zeros((1, H), jnp.float32),
        w1_t=n(ks[8], (I, H)).T, b1=n(ks[9], (1, I)),
        w2_t=n(ks[10], (H, I)).T, b2=n(ks[11], (1, H)),
        ln2_g=jnp.ones((1, H), jnp.float32), ln2_b=jnp.zeros((1, H), jnp.float32),
    )


def init_params(key, cfg):
    H = cfg.hidden_size
    ks = jax.random.split(key, 6)
    n = lambda k, s: 0.02 * jax.random.normal(k, s, jnp.float32)
    word_emb = n(ks[0], (cfg.vocab_size, H)).at[cfg.pad_token_id].set(0.0)  # padding_idx row
    return dict(
        word_emb=word_emb,
        pos_emb=n(ks[1], (cfg.max_position_embeddings, H)),
        tok_emb=n(ks[2], (cfg.type_vocab_size, H)),
        layers=[init_layer(jax.random.fold_in(ks[3], i), cfg)
                for i in range(cfg.num_hidden_layers)],
        cls_w_t=n(ks[4], (H, H)).T,
        cls_b=n(ks[5], (1, H)),
    )


if __name__ == "__main__":
    cfg = Config()
    B, L = 2, 8

    root = jax.random.PRNGKey(0)
    k_param, k_tok = jax.random.split(root)
    params = init_params(k_param, cfg)

    inputs = jax.random.randint(k_tok, (B, L), 1, cfg.vocab_size, dtype=jnp.int32)
    inputs = inputs.at[0, 6:].set(cfg.pad_token_id)   # exercise the pad mask
    inputs = inputs.at[1, 5:].set(cfg.pad_token_id)
    segments = jnp.concatenate(
        [jnp.zeros((B, L // 2), jnp.int32), jnp.ones((B, L // 2), jnp.int32)], axis=1)

    outputs, outputs_cls, attn_probs = bert_forward(params, inputs, segments, cfg)
    jax.block_until_ready((outputs, outputs_cls, attn_probs))

    assert outputs.shape == (B, L, cfg.hidden_size)
    assert outputs_cls.shape == (B, cfg.hidden_size)
    assert len(attn_probs) == cfg.num_hidden_layers
    assert attn_probs[0].shape == (B, cfg.num_attention_heads, L, L)
    assert bool(jnp.all(jnp.isfinite(outputs))) and bool(jnp.all(jnp.isfinite(outputs_cls)))
    print("KERNEL_OK")
</pallas_src>

<mosaic_0001>
module attributes {stable_mosaic.version = 11 : i64} {
  func.func @_bert_fused_kernel(%arg0: memref<2x8x32xf32, #tpu.memory_space<vmem>>, %arg1: memref<2x8x1xf32, #tpu.memory_space<vmem>>, %arg2: memref<32x96xf32, #tpu.memory_space<vmem>>, %arg3: memref<1x96xf32, #tpu.memory_space<vmem>>, %arg4: memref<32x32xf32, #tpu.memory_space<vmem>>, %arg5: memref<1x32xf32, #tpu.memory_space<vmem>>, %arg6: memref<1x32xf32, #tpu.memory_space<vmem>>, %arg7: memref<1x32xf32, #tpu.memory_space<vmem>>, %arg8: memref<32x64xf32, #tpu.memory_space<vmem>>, %arg9: memref<1x64xf32, #tpu.memory_space<vmem>>, %arg10: memref<64x32xf32, #tpu.memory_space<vmem>>, %arg11: memref<1x32xf32, #tpu.memory_space<vmem>>, %arg12: memref<1x32xf32, #tpu.memory_space<vmem>>, %arg13: memref<1x32xf32, #tpu.memory_space<vmem>>, %arg14: memref<32x96xf32, #tpu.memory_space<vmem>>, %arg15: memref<1x96xf32, #tpu.memory_space<vmem>>, %arg16: memref<32x32xf32, #tpu.memory_space<vmem>>, %arg17: memref<1x32xf32, #tpu.memory_space<vmem>>, %arg18: memref<1x32xf32, #tpu.memory_space<vmem>>, %arg19: memref<1x32xf32, #tpu.memory_space<vmem>>, %arg20: memref<32x64xf32, #tpu.memory_space<vmem>>, %arg21: memref<1x64xf32, #tpu.memory_space<vmem>>, %arg22: memref<64x32xf32, #tpu.memory_space<vmem>>, %arg23: memref<1x32xf32, #tpu.memory_space<vmem>>, %arg24: memref<1x32xf32, #tpu.memory_space<vmem>>, %arg25: memref<1x32xf32, #tpu.memory_space<vmem>>, %arg26: memref<32x32xf32, #tpu.memory_space<vmem>>, %arg27: memref<1x32xf32, #tpu.memory_space<vmem>>, %arg28: memref<2x8x32xf32, #tpu.memory_space<vmem>>, %arg29: memref<2x32xf32, #tpu.memory_space<vmem>>, %arg30: memref<2x8x8x32xf32, #tpu.memory_space<vmem>>, %arg31: memref<2x8x8x32xf32, #tpu.memory_space<vmem>>) attributes {dimension_semantics = [], scalar_prefetch = 0 : i64, scratch_operands = 0 : i64, tpu.core_type = #tpu.core_type<tc>} {
    %c0 = arith.constant 0 : index
    %c0_0 = arith.constant 0 : index
    %c0_1 = arith.constant 0 : index
    %0 = vector.load %arg0[%c0, %c0_0, %c0_1] : memref<2x8x32xf32, #tpu.memory_space<vmem>>, vector<2x8x32xf32>
    %1 = vector.shape_cast %0 : vector<2x8x32xf32> to vector<16x32xf32>
    %c0_2 = arith.constant 0 : index
    %c0_3 = arith.constant 0 : index
    %c0_4 = arith.constant 0 : index
    %2 = vector.load %arg1[%c0_2, %c0_3, %c0_4] : memref<2x8x1xf32, #tpu.memory_space<vmem>>, vector<2x8x1xf32>
    %3 = vector.shape_cast %2 : vector<2x8x1xf32> to vector<2x1x8x1xf32>
    %cst = arith.constant 5.000000e-01 : f32
    %4 = vector.broadcast %cst : f32 to vector<2x1x8x1xf32>
    %5 = arith.cmpf ogt, %3, %4 : vector<2x1x8x1xf32>
    %c0_5 = arith.constant 0 : index
    %c0_6 = arith.constant 0 : index
    %6 = vector.load %arg2[%c0_5, %c0_6] : memref<32x96xf32, #tpu.memory_space<vmem>>, vector<32x96xf32>
    %cst_7 = arith.constant dense<0.000000e+00> : vector<16x96xf32>
    %7 = tpu.matmul %1, %6, %cst_7 {dimension_numbers = #tpu.dot_dimension_numbers<[1], [0], [0], [1], [0, 0, 1, 1], [], []>} : vector<16x32xf32>, vector<32x96xf32>, vector<16x96xf32> -> vector<16x96xf32>
    %c0_8 = arith.constant 0 : index
    %c0_9 = arith.constant 0 : index
    %8 = vector.load %arg3[%c0_8, %c0_9] : memref<1x96xf32, #tpu.memory_space<vmem>>, vector<1x96xf32>
    %9 = vector.broadcast %8 : vector<1x96xf32> to vector<16x96xf32>
    %10 = arith.addf %7, %9 : vector<16x96xf32>
    %11 = vector.shape_cast %10 : vector<16x96xf32> to vector<2x8x96xf32>
    %12 = vector.extract_strided_slice %11 {offsets = [0, 0, 0], sizes = [2, 8, 32], strides = [1, 1, 1]} : vector<2x8x96xf32> to vector<2x8x32xf32>
    %13 = vector.extract_strided_slice %11 {offsets = [0, 0, 32], sizes = [2, 8, 32], strides = [1, 1, 1]} : vector<2x8x96xf32> to vector<2x8x32xf32>
    %14 = vector.extract_strided_slice %11 {offsets = [0, 0, 64], sizes = [2, 8, 32], strides = [1, 1, 1]} : vector<2x8x96xf32> to vector<2x8x32xf32>
    %15 = vector.shape_cast %12 : vector<2x8x32xf32> to vector<2x8x1x32xf32>
    %16 = vector.shape_cast %13 : vector<2x8x32xf32> to vector<2x1x8x32xf32>
    %17 = vector.broadcast %15 : vector<2x8x1x32xf32> to vector<2x8x8x32xf32>
    %18 = vector.broadcast %16 : vector<2x1x8x32xf32> to vector<2x8x8x32xf32>
    %19 = arith.mulf %17, %18 : vector<2x8x8x32xf32>
    %cst_10 = arith.constant -1.000000e+09 : f32
    %20 = vector.shape_cast %5 : vector<2x1x8x1xi1> to vector<2x1x8x1xi1>
    %21 = vector.broadcast %20 : vector<2x1x8x1xi1> to vector<2x8x8x32xi1>
    %22 = vector.broadcast %cst_10 : f32 to vector<2x8x8x32xf32>
    %23 = arith.select %21, %22, %19 : vector<2x8x8x32xi1>, vector<2x8x8x32xf32>
    %cst_11 = arith.constant dense<0xFF800000> : vector<2x8x32xf32>
    %24 = vector.multi_reduction <maximumf>, %23, %cst_11 [2] : vector<2x8x8x32xf32> to vector<2x8x32xf32>
    %25 = vector.shape_cast %24 : vector<2x8x32xf32> to vector<2x8x1x32xf32>
    %26 = vector.broadcast %25 : vector<2x8x1x32xf32> to vector<2x8x8x32xf32>
    %27 = arith.subf %23, %26 : vector<2x8x8x32xf32>
    %28 = math.exp %27 : vector<2x8x8x32xf32>
    %cst_12 = arith.constant dense<0.000000e+00> : vector<2x8x32xf32>
    %29 = vector.multi_reduction <add>, %28, %cst_12 [2] : vector<2x8x8x32xf32> to vector<2x8x32xf32>
    %30 = vector.shape_cast %29 : vector<2x8x32xf32> to vector<2x8x1x32xf32>
    %31 = vector.broadcast %30 : vector<2x8x1x32xf32> to vector<2x8x8x32xf32>
    %32 = arith.divf %28, %31 : vector<2x8x8x32xf32>
    %c0_13 = arith.constant 0 : index
    %c0_14 = arith.constant 0 : index
    %c0_15 = arith.constant 0 : index
    %c0_16 = arith.constant 0 : index
    %33 = vector.load %arg30[%c0_13, %c0_14, %c0_15, %c0_16] : memref<2x8x8x32xf32, #tpu.memory_space<vmem>>, vector<2x8x8x32xf32>
    tpu.vector_store %arg30[%c0_13, %c0_14, %c0_15, %c0_16], %32 {strides = array<i32>} : memref<2x8x8x32xf32, #tpu.memory_space<vmem>>, vector<2x8x8x32xf32>,
    %34 = vector.shape_cast %14 : vector<2x8x32xf32> to vector<2x1x8x32xf32>
    %35 = vector.broadcast %34 : vector<2x1x8x32xf32> to vector<2x8x8x32xf32>
    %36 = arith.mulf %32, %35 : vector<2x8x8x32xf32>
    %cst_17 = arith.constant dense<0.000000e+00> : vector<2x8x32xf32>
    %37 = vector.multi_reduction <add>, %36, %cst_17 [2] : vector<2x8x8x32xf32> to vector<2x8x32xf32>
    %38 = vector.shape_cast %37 : vector<2x8x32xf32> to vector<16x32xf32>
    %c0_18 = arith.constant 0 : index
    %c0_19 = arith.constant 0 : index
    %39 = vector.load %arg4[%c0_18, %c0_19] : memref<32x32xf32, #tpu.memory_space<vmem>>, vector<32x32xf32>
    %cst_20 = arith.constant dense<0.000000e+00> : vector<16x32xf32>
    %40 = tpu.matmul %38, %39, %cst_20 {dimension_numbers = #tpu.dot_dimension_numbers<[1], [0], [0], [1], [0, 0, 1, 1], [], []>} : vector<16x32xf32>, vector<32x32xf32>, vector<16x32xf32> -> vector<16x32xf32>
    %c0_21 = arith.constant 0 : index
    %c0_22 = arith.constant 0 : index
    %41 = vector.load %arg5[%c0_21, %c0_22] : memref<1x32xf32, #tpu.memory_space<vmem>>, vector<1x32xf32>
    %42 = vector.broadcast %41 : vector<1x32xf32> to vector<16x32xf32>
    %43 = arith.addf %40, %42 : vector<16x32xf32>
    %44 = arith.addf %1, %43 : vector<16x32xf32>
    %cst_23 = arith.constant dense<0.000000e+00> : vector<16xf32>
    %45 = vector.multi_reduction <add>, %44, %cst_23 [1] : vector<16x32xf32> to vector<16xf32>
    %46 = vector.shape_cast %45 : vector<16xf32> to vector<16x1xf32>
    %cst_24 = arith.constant 3.200000e+01 : f32
    %47 = vector.broadcast %cst_24 : f32 to vector<16x1xf32>
    %48 = arith.divf %46, %47 : vector<16x1xf32>
    %49 = vector.broadcast %48 : vector<16x1xf32> to vector<16x32xf32>
    %50 = arith.subf %44, %49 : vector<16x32xf32>
    %51 = arith.mulf %50, %50 : vector<16x32xf32>
    %cst_25 = arith.constant dense<0.000000e+00> : vector<16xf32>
    %52 = vector.multi_reduction <add>, %51, %cst_25 [1] : vector<16x32xf32> to vector<16xf32>
    %53 = vector.shape_cast %52 : vector<16xf32> to vector<16x1xf32>
    %cst_26 = arith.constant 3.200000e+01 : f32
    %54 = vector.broadcast %cst_26 : f32 to vector<16x1xf32>
    %55 = arith.divf %53, %54 : vector<16x1xf32>
    %56 = vector.broadcast %48 : vector<16x1xf32> to vector<16x32xf32>
    %57 = arith.subf %44, %56 : vector<16x32xf32>
    %cst_27 = arith.constant 9.99999996E-13 : f32
    %58 = vector.broadcast %cst_27 : f32 to vector<16x1xf32>
    %59 = arith.addf %55, %58 : vector<16x1xf32>
    %60 = math.rsqrt %59 : vector<16x1xf32>
    %61 = vector.broadcast %60 : vector<16x1xf32> to vector<16x32xf32>
    %62 = arith.mulf %57, %61 : vector<16x32xf32>
    %c0_28 = arith.constant 0 : index
    %c0_29 = arith.constant 0 : index
    %63 = vector.load %arg6[%c0_28, %c0_29] : memref<1x32xf32, #tpu.memory_space<vmem>>, vector<1x32xf32>
    %64 = vector.broadcast %63 : vector<1x32xf32> to vector<16x32xf32>
    %65 = arith.mulf %62, %64 : vector<16x32xf32>
    %c0_30 = arith.constant 0 : index
    %c0_31 = arith.constant 0 : index
    %66 = vector.load %arg7[%c0_30, %c0_31] : memref<1x32xf32, #tpu.memory_space<vmem>>, vector<1x32xf32>
    %67 = vector.broadcast %66 : vector<1x32xf32> to vector<16x32xf32>
    %68 = arith.addf %65, %67 : vector<16x32xf32>
    %c0_32 = arith.constant 0 : index
    %c0_33 = arith.constant 0 : index
    %69 = vector.load %arg8[%c0_32, %c0_33] : memref<32x64xf32, #tpu.memory_space<vmem>>, vector<32x64xf32>
    %cst_34 = arith.constant dense<0.000000e+00> : vector<16x64xf32>
    %70 = tpu.matmul %68, %69, %cst_34 {dimension_numbers = #tpu.dot_dimension_numbers<[1], [0], [0], [1], [0, 0, 1, 1], [], []>} : vector<16x32xf32>, vector<32x64xf32>, vector<16x64xf32> -> vector<16x64xf32>
    %c0_35 = arith.constant 0 : index
    %c0_36 = arith.constant 0 : index
    %71 = vector.load %arg9[%c0_35, %c0_36] : memref<1x64xf32, #tpu.memory_space<vmem>>, vector<1x64xf32>
    %72 = vector.broadcast %71 : vector<1x64xf32> to vector<16x64xf32>
    %73 = arith.addf %70, %72 : vector<16x64xf32>
    %cst_37 = arith.constant 5.000000e-01 : f32
    %74 = vector.broadcast %cst_37 : f32 to vector<16x64xf32>
    %75 = arith.mulf %74, %73 : vector<16x64xf32>
    %cst_38 = arith.constant 0.707106769 : f32
    %76 = vector.broadcast %cst_38 : f32 to vector<16x64xf32>
    %77 = arith.mulf %73, %76 : vector<16x64xf32>
    %78 = math.erf %77 : vector<16x64xf32>
    %cst_39 = arith.constant 1.000000e+00 : f32
    %79 = vector.broadcast %cst_39 : f32 to vector<16x64xf32>
    %80 = arith.addf %79, %78 : vector<16x64xf32>
    %81 = arith.mulf %75, %80 : vector<16x64xf32>
    %c0_40 = arith.constant 0 : index
    %c0_41 = arith.constant 0 : index
    %82 = vector.load %arg10[%c0_40, %c0_41] : memref<64x32xf32, #tpu.memory_space<vmem>>, vector<64x32xf32>
    %cst_42 = arith.constant dense<0.000000e+00> : vector<16x32xf32>
    %83 = tpu.matmul %81, %82, %cst_42 {dimension_numbers = #tpu.dot_dimension_numbers<[1], [0], [0], [1], [0, 0, 1, 1], [], []>} : vector<16x64xf32>, vector<64x32xf32>, vector<16x32xf32> -> vector<16x32xf32>
    %c0_43 = arith.constant 0 : index
    %c0_44 = arith.constant 0 : index
    %84 = vector.load %arg11[%c0_43, %c0_44] : memref<1x32xf32, #tpu.memory_space<vmem>>, vector<1x32xf32>
    %85 = vector.broadcast %84 : vector<1x32xf32> to vector<16x32xf32>
    %86 = arith.addf %83, %85 : vector<16x32xf32>
    %87 = arith.addf %86, %68 : vector<16x32xf32>
    %cst_45 = arith.constant dense<0.000000e+00> : vector<16xf32>
    %88 = vector.multi_reduction <add>, %87, %cst_45 [1] : vector<16x32xf32> to vector<16xf32>
    %89 = vector.shape_cast %88 : vector<16xf32> to vector<16x1xf32>
    %cst_46 = arith.constant 3.200000e+01 : f32
    %90 = vector.broadcast %cst_46 : f32 to vector<16x1xf32>
    %91 = arith.divf %89, %90 : vector<16x1xf32>
    %92 = vector.broadcast %91 : vector<16x1xf32> to vector<16x32xf32>
    %93 = arith.subf %87, %92 : vector<16x32xf32>
    %94 = arith.mulf %93, %93 : vector<16x32xf32>
    %cst_47 = arith.constant dense<0.000000e+00> : vector<16xf32>
    %95 = vector.multi_reduction <add>, %94, %cst_47 [1] : vector<16x32xf32> to vector<16xf32>
    %96 = vector.shape_cast %95 : vector<16xf32> to vector<16x1xf32>
    %cst_48 = arith.constant 3.200000e+01 : f32
    %97 = vector.broadcast %cst_48 : f32 to vector<16x1xf32>
    %98 = arith.divf %96, %97 : vector<16x1xf32>
    %99 = vector.broadcast %91 : vector<16x1xf32> to vector<16x32xf32>
    %100 = arith.subf %87, %99 : vector<16x32xf32>
    %cst_49 = arith.constant 9.99999996E-13 : f32
    %101 = vector.broadcast %cst_49 : f32 to vector<16x1xf32>
    %102 = arith.addf %98, %101 : vector<16x1xf32>
    %103 = math.rsqrt %102 : vector<16x1xf32>
    %104 = vector.broadcast %103 : vector<16x1xf32> to vector<16x32xf32>
    %105 = arith.mulf %100, %104 : vector<16x32xf32>
    %c0_50 = arith.constant 0 : index
    %c0_51 = arith.constant 0 : index
    %106 = vector.load %arg12[%c0_50, %c0_51] : memref<1x32xf32, #tpu.memory_space<vmem>>, vector<1x32xf32>
    %107 = vector.broadcast %106 : vector<1x32xf32> to vector<16x32xf32>
    %108 = arith.mulf %105, %107 : vector<16x32xf32>
    %c0_52 = arith.constant 0 : index
    %c0_53 = arith.constant 0 : index
    %109 = vector.load %arg13[%c0_52, %c0_53] : memref<1x32xf32, #tpu.memory_space<vmem>>, vector<1x32xf32>
    %110 = vector.broadcast %109 : vector<1x32xf32> to vector<16x32xf32>
    %111 = arith.addf %108, %110 : vector<16x32xf32>
    %c0_54 = arith.constant 0 : index
    %c0_55 = arith.constant 0 : index
    %112 = vector.load %arg14[%c0_54, %c0_55] : memref<32x96xf32, #tpu.memory_space<vmem>>, vector<32x96xf32>
    %cst_56 = arith.constant dense<0.000000e+00> : vector<16x96xf32>
    %113 = tpu.matmul %111, %112, %cst_56 {dimension_numbers = #tpu.dot_dimension_numbers<[1], [0], [0], [1], [0, 0, 1, 1], [], []>} : vector<16x32xf32>, vector<32x96xf32>, vector<16x96xf32> -> vector<16x96xf32>
    %c0_57 = arith.constant 0 : index
    %c0_58 = arith.constant 0 : index
    %114 = vector.load %arg15[%c0_57, %c0_58] : memref<1x96xf32, #tpu.memory_space<vmem>>, vector<1x96xf32>
    %115 = vector.broadcast %114 : vector<1x96xf32> to vector<16x96xf32>
    %116 = arith.addf %113, %115 : vector<16x96xf32>
    %117 = vector.shape_cast %116 : vector<16x96xf32> to vector<2x8x96xf32>
    %118 = vector.extract_strided_slice %117 {offsets = [0, 0, 0], sizes = [2, 8, 32], strides = [1, 1, 1]} : vector<2x8x96xf32> to vector<2x8x32xf32>
    %119 = vector.extract_strided_slice %117 {offsets = [0, 0, 32], sizes = [2, 8, 32], strides = [1, 1, 1]} : vector<2x8x96xf32> to vector<2x8x32xf32>
    %120 = vector.extract_strided_slice %117 {offsets = [0, 0, 64], sizes = [2, 8, 32], strides = [1, 1, 1]} : vector<2x8x96xf32> to vector<2x8x32xf32>
    %121 = vector.shape_cast %118 : vector<2x8x32xf32> to vector<2x8x1x32xf32>
    %122 = vector.shape_cast %119 : vector<2x8x32xf32> to vector<2x1x8x32xf32>
    %123 = vector.broadcast %121 : vector<2x8x1x32xf32> to vector<2x8x8x32xf32>
    %124 = vector.broadcast %122 : vector<2x1x8x32xf32> to vector<2x8x8x32xf32>
    %125 = arith.mulf %123, %124 : vector<2x8x8x32xf32>
    %cst_59 = arith.constant -1.000000e+09 : f32
    %126 = vector.shape_cast %5 : vector<2x1x8x1xi1> to vector<2x1x8x1xi1>
    %127 = vector.broadcast %126 : vector<2x1x8x1xi1> to vector<2x8x8x32xi1>
    %128 = vector.broadcast %cst_59 : f32 to vector<2x8x8x32xf32>
    %129 = arith.select %127, %128, %125 : vector<2x8x8x32xi1>, vector<2x8x8x32xf32>
    %cst_60 = arith.constant dense<0xFF800000> : vector<2x8x32xf32>
    %130 = vector.multi_reduction <maximumf>, %129, %cst_60 [2] : vector<2x8x8x32xf32> to vector<2x8x32xf32>
    %131 = vector.shape_cast %130 : vector<2x8x32xf32> to vector<2x8x1x32xf32>
    %132 = vector.broadcast %131 : vector<2x8x1x32xf32> to vector<2x8x8x32xf32>
    %133 = arith.subf %129, %132 : vector<2x8x8x32xf32>
    %134 = math.exp %133 : vector<2x8x8x32xf32>
    %cst_61 = arith.constant dense<0.000000e+00> : vector<2x8x32xf32>
    %135 = vector.multi_reduction <add>, %134, %cst_61 [2] : vector<2x8x8x32xf32> to vector<2x8x32xf32>
    %136 = vector.shape_cast %135 : vector<2x8x32xf32> to vector<2x8x1x32xf32>
    %137 = vector.broadcast %136 : vector<2x8x1x32xf32> to vector<2x8x8x32xf32>
    %138 = arith.divf %134, %137 : vector<2x8x8x32xf32>
    %c0_62 = arith.constant 0 : index
    %c0_63 = arith.constant 0 : index
    %c0_64 = arith.constant 0 : index
    %c0_65 = arith.constant 0 : index
    %139 = vector.load %arg31[%c0_62, %c0_63, %c0_64, %c0_65] : memref<2x8x8x32xf32, #tpu.memory_space<vmem>>, vector<2x8x8x32xf32>
    tpu.vector_store %arg31[%c0_62, %c0_63, %c0_64, %c0_65], %138 {strides = array<i32>} : memref<2x8x8x32xf32, #tpu.memory_space<vmem>>, vector<2x8x8x32xf32>,
    %140 = vector.shape_cast %120 : vector<2x8x32xf32> to vector<2x1x8x32xf32>
    %141 = vector.broadcast %140 : vector<2x1x8x32xf32> to vector<2x8x8x32xf32>
    %142 = arith.mulf %138, %141 : vector<2x8x8x32xf32>
    %cst_66 = arith.constant dense<0.000000e+00> : vector<2x8x32xf32>
    %143 = vector.multi_reduction <add>, %142, %cst_66 [2] : vector<2x8x8x32xf32> to vector<2x8x32xf32>
    %144 = vector.shape_cast %143 : vector<2x8x32xf32> to vector<16x32xf32>
    %c0_67 = arith.constant 0 : index
    %c0_68 = arith.constant 0 : index
    %145 = vector.load %arg16[%c0_67, %c0_68] : memref<32x32xf32, #tpu.memory_space<vmem>>, vector<32x32xf32>
    %cst_69 = arith.constant dense<0.000000e+00> : vector<16x32xf32>
    %146 = tpu.matmul %144, %145, %cst_69 {dimension_numbers = #tpu.dot_dimension_numbers<[1], [0], [0], [1], [0, 0, 1, 1], [], []>} : vector<16x32xf32>, vector<32x32xf32>, vector<16x32xf32> -> vector<16x32xf32>
    %c0_70 = arith.constant 0 : index
    %c0_71 = arith.constant 0 : index
    %147 = vector.load %arg17[%c0_70, %c0_71] : memref<1x32xf32, #tpu.memory_space<vmem>>, vector<1x32xf32>
    %148 = vector.broadcast %147 : vector<1x32xf32> to vector<16x32xf32>
    %149 = arith.addf %146, %148 : vector<16x32xf32>
    %150 = arith.addf %111, %149 : vector<16x32xf32>
    %cst_72 = arith.constant dense<0.000000e+00> : vector<16xf32>
    %151 = vector.multi_reduction <add>, %150, %cst_72 [1] : vector<16x32xf32> to vector<16xf32>
    %152 = vector.shape_cast %151 : vector<16xf32> to vector<16x1xf32>
    %cst_73 = arith.constant 3.200000e+01 : f32
    %153 = vector.broadcast %cst_73 : f32 to vector<16x1xf32>
    %154 = arith.divf %152, %153 : vector<16x1xf32>
    %155 = vector.broadcast %154 : vector<16x1xf32> to vector<16x32xf32>
    %156 = arith.subf %150, %155 : vector<16x32xf32>
    %157 = arith.mulf %156, %156 : vector<16x32xf32>
    %cst_74 = arith.constant dense<0.000000e+00> : vector<16xf32>
    %158 = vector.multi_reduction <add>, %157, %cst_74 [1] : vector<16x32xf32> to vector<16xf32>
    %159 = vector.shape_cast %158 : vector<16xf32> to vector<16x1xf32>
    %cst_75 = arith.constant 3.200000e+01 : f32
    %160 = vector.broadcast %cst_75 : f32 to vector<16x1xf32>
    %161 = arith.divf %159, %160 : vector<16x1xf32>
    %162 = vector.broadcast %154 : vector<16x1xf32> to vector<16x32xf32>
    %163 = arith.subf %150, %162 : vector<16x32xf32>
    %cst_76 = arith.constant 9.99999996E-13 : f32
    %164 = vector.broadcast %cst_76 : f32 to vector<16x1xf32>
    %165 = arith.addf %161, %164 : vector<16x1xf32>
    %166 = math.rsqrt %165 : vector<16x1xf32>
    %167 = vector.broadcast %166 : vector<16x1xf32> to vector<16x32xf32>
    %168 = arith.mulf %163, %167 : vector<16x32xf32>
    %c0_77 = arith.constant 0 : index
    %c0_78 = arith.constant 0 : index
    %169 = vector.load %arg18[%c0_77, %c0_78] : memref<1x32xf32, #tpu.memory_space<vmem>>, vector<1x32xf32>
    %170 = vector.broadcast %169 : vector<1x32xf32> to vector<16x32xf32>
    %171 = arith.mulf %168, %170 : vector<16x32xf32>
    %c0_79 = arith.constant 0 : index
    %c0_80 = arith.constant 0 : index
    %172 = vector.load %arg19[%c0_79, %c0_80] : memref<1x32xf32, #tpu.memory_space<vmem>>, vector<1x32xf32>
    %173 = vector.broadcast %172 : vector<1x32xf32> to vector<16x32xf32>
    %174 = arith.addf %171, %173 : vector<16x32xf32>
    %c0_81 = arith.constant 0 : index
    %c0_82 = arith.constant 0 : index
    %175 = vector.load %arg20[%c0_81, %c0_82] : memref<32x64xf32, #tpu.memory_space<vmem>>, vector<32x64xf32>
    %cst_83 = arith.constant dense<0.000000e+00> : vector<16x64xf32>
    %176 = tpu.matmul %174, %175, %cst_83 {dimension_numbers = #tpu.dot_dimension_numbers<[1], [0], [0], [1], [0, 0, 1, 1], [], []>} : vector<16x32xf32>, vector<32x64xf32>, vector<16x64xf32> -> vector<16x64xf32>
    %c0_84 = arith.constant 0 : index
    %c0_85 = arith.constant 0 : index
    %177 = vector.load %arg21[%c0_84, %c0_85] : memref<1x64xf32, #tpu.memory_space<vmem>>, vector<1x64xf32>
    %178 = vector.broadcast %177 : vector<1x64xf32> to vector<16x64xf32>
    %179 = arith.addf %176, %178 : vector<16x64xf32>
    %cst_86 = arith.constant 5.000000e-01 : f32
    %180 = vector.broadcast %cst_86 : f32 to vector<16x64xf32>
    %181 = arith.mulf %180, %179 : vector<16x64xf32>
    %cst_87 = arith.constant 0.707106769 : f32
    %182 = vector.broadcast %cst_87 : f32 to vector<16x64xf32>
    %183 = arith.mulf %179, %182 : vector<16x64xf32>
    %184 = math.erf %183 : vector<16x64xf32>
    %cst_88 = arith.constant 1.000000e+00 : f32
    %185 = vector.broadcast %cst_88 : f32 to vector<16x64xf32>
    %186 = arith.addf %185, %184 : vector<16x64xf32>
    %187 = arith.mulf %181, %186 : vector<16x64xf32>
    %c0_89 = arith.constant 0 : index
    %c0_90 = arith.constant 0 : index
    %188 = vector.load %arg22[%c0_89, %c0_90] : memref<64x32xf32, #tpu.memory_space<vmem>>, vector<64x32xf32>
    %cst_91 = arith.constant dense<0.000000e+00> : vector<16x32xf32>
    %189 = tpu.matmul %187, %188, %cst_91 {dimension_numbers = #tpu.dot_dimension_numbers<[1], [0], [0], [1], [0, 0, 1, 1], [], []>} : vector<16x64xf32>, vector<64x32xf32>, vector<16x32xf32> -> vector<16x32xf32>
    %c0_92 = arith.constant 0 : index
    %c0_93 = arith.constant 0 : index
    %190 = vector.load %arg23[%c0_92, %c0_93] : memref<1x32xf32, #tpu.memory_space<vmem>>, vector<1x32xf32>
    %191 = vector.broadcast %190 : vector<1x32xf32> to vector<16x32xf32>
    %192 = arith.addf %189, %191 : vector<16x32xf32>
    %193 = arith.addf %192, %174 : vector<16x32xf32>
    %cst_94 = arith.constant dense<0.000000e+00> : vector<16xf32>
    %194 = vector.multi_reduction <add>, %193, %cst_94 [1] : vector<16x32xf32> to vector<16xf32>
    %195 = vector.shape_cast %194 : vector<16xf32> to vector<16x1xf32>
    %cst_95 = arith.constant 3.200000e+01 : f32
    %196 = vector.broadcast %cst_95 : f32 to vector<16x1xf32>
    %197 = arith.divf %195, %196 : vector<16x1xf32>
    %198 = vector.broadcast %197 : vector<16x1xf32> to vector<16x32xf32>
    %199 = arith.subf %193, %198 : vector<16x32xf32>
    %200 = arith.mulf %199, %199 : vector<16x32xf32>
    %cst_96 = arith.constant dense<0.000000e+00> : vector<16xf32>
    %201 = vector.multi_reduction <add>, %200, %cst_96 [1] : vector<16x32xf32> to vector<16xf32>
    %202 = vector.shape_cast %201 : vector<16xf32> to vector<16x1xf32>
    %cst_97 = arith.constant 3.200000e+01 : f32
    %203 = vector.broadcast %cst_97 : f32 to vector<16x1xf32>
    %204 = arith.divf %202, %203 : vector<16x1xf32>
    %205 = vector.broadcast %197 : vector<16x1xf32> to vector<16x32xf32>
    %206 = arith.subf %193, %205 : vector<16x32xf32>
    %cst_98 = arith.constant 9.99999996E-13 : f32
    %207 = vector.broadcast %cst_98 : f32 to vector<16x1xf32>
    %208 = arith.addf %204, %207 : vector<16x1xf32>
    %209 = math.rsqrt %208 : vector<16x1xf32>
    %210 = vector.broadcast %209 : vector<16x1xf32> to vector<16x32xf32>
    %211 = arith.mulf %206, %210 : vector<16x32xf32>
    %c0_99 = arith.constant 0 : index
    %c0_100 = arith.constant 0 : index
    %212 = vector.load %arg24[%c0_99, %c0_100] : memref<1x32xf32, #tpu.memory_space<vmem>>, vector<1x32xf32>
    %213 = vector.broadcast %212 : vector<1x32xf32> to vector<16x32xf32>
    %214 = arith.mulf %211, %213 : vector<16x32xf32>
    %c0_101 = arith.constant 0 : index
    %c0_102 = arith.constant 0 : index
    %215 = vector.load %arg25[%c0_101, %c0_102] : memref<1x32xf32, #tpu.memory_space<vmem>>, vector<1x32xf32>
    %216 = vector.broadcast %215 : vector<1x32xf32> to vector<16x32xf32>
    %217 = arith.addf %214, %216 : vector<16x32xf32>
    %218 = vector.shape_cast %217 : vector<16x32xf32> to vector<2x8x32xf32>
    %c0_103 = arith.constant 0 : index
    %c0_104 = arith.constant 0 : index
    %c0_105 = arith.constant 0 : index
    %219 = vector.load %arg28[%c0_103, %c0_104, %c0_105] : memref<2x8x32xf32, #tpu.memory_space<vmem>>, vector<2x8x32xf32>
    tpu.vector_store %arg28[%c0_103, %c0_104, %c0_105], %218 {strides = array<i32>} : memref<2x8x32xf32, #tpu.memory_space<vmem>>, vector<2x8x32xf32>,
    %220 = vector.shape_cast %217 : vector<16x32xf32> to vector<2x8x32xf32>
    %221 = vector.extract_strided_slice %220 {offsets = [0, 0, 0], sizes = [2, 1, 32], strides = [1, 1, 1]} : vector<2x8x32xf32> to vector<2x1x32xf32>
    %222 = vector.shape_cast %221 : vector<2x1x32xf32> to vector<2x32xf32>
    %c0_106 = arith.constant 0 : index
    %c0_107 = arith.constant 0 : index
    %223 = vector.load %arg26[%c0_106, %c0_107] : memref<32x32xf32, #tpu.memory_space<vmem>>, vector<32x32xf32>
    %cst_108 = arith.constant dense<0.000000e+00> : vector<2x32xf32>
    %224 = tpu.matmul %222, %223, %cst_108 {dimension_numbers = #tpu.dot_dimension_numbers<[1], [0], [0], [1], [0, 0, 1, 1], [], []>} : vector<2x32xf32>, vector<32x32xf32>, vector<2x32xf32> -> vector<2x32xf32>
    %c0_109 = arith.constant 0 : index
    %c0_110 = arith.constant 0 : index
    %225 = vector.load %arg27[%c0_109, %c0_110] : memref<1x32xf32, #tpu.memory_space<vmem>>, vector<1x32xf32>
    %226 = vector.broadcast %225 : vector<1x32xf32> to vector<2x32xf32>
    %227 = arith.addf %224, %226 : vector<2x32xf32>
    %228 = math.tanh %227 : vector<2x32xf32>
    %c0_111 = arith.constant 0 : index
    %c0_112 = arith.constant 0 : index
    %229 = vector.load %arg29[%c0_111, %c0_112] : memref<2x32xf32, #tpu.memory_space<vmem>>, vector<2x32xf32>
    tpu.vector_store %arg29[%c0_111, %c0_112], %228 {strides = array<i32>} : memref<2x32xf32, #tpu.memory_space<vmem>>, vector<2x32xf32>,
    return
  }
}

</mosaic_0001>

<llo_original>
// kernel: tpu_custom_call.1
$region0: #{tpu_custom_call.1}
  #allocation0 [shape = 'u32[]', space=smem, size = 0x4, offset = 0x4, fixed_abs, tag = 'smem constant byte address 0x4 - core index']
  #allocation1 [shape = 'u32[144,128]{1,0:T(1,128)}', space=vmem, size = 0x12000, scoped, tag = 'internal scratch']
  %s0 = inlined_call_operand.smem [shape: u32[32], index: -1, kind: input, shape index: {}]
  %s1 = sld [smem:[%s0]]
  %s2 = scalar_lea.smem %s0, 1
  %s3 = sld [smem:[%s2]]
  %s4 = scalar_lea.smem %s0, 2
  %s5 = sld [smem:[%s4]]
  %s6 = scalar_lea.smem %s0, 3
  %s7 = sld [smem:[%s6]]
  %s8 = scalar_lea.smem %s0, 4
  %s9 = sld [smem:[%s8]]
  %s10 = scalar_lea.smem %s0, 5
  %s11 = sld [smem:[%s10]]
  %s12 = scalar_lea.smem %s0, 6
  %s13 = sld [smem:[%s12]]
  %s14 = scalar_lea.smem %s0, 7
  %s15 = sld [smem:[%s14]]
  %s16 = scalar_lea.smem %s0, 8
  %s17 = sld [smem:[%s16]]
  %s18 = scalar_lea.smem %s0, 9
  %s19 = sld [smem:[%s18]]
  %s20 = scalar_lea.smem %s0, 10
  %s21 = sld [smem:[%s20]]
  %s22 = scalar_lea.smem %s0, 11
  %s23 = sld [smem:[%s22]]
  %s24 = scalar_lea.smem %s0, 12
  %s25 = sld [smem:[%s24]]
  %s26 = scalar_lea.smem %s0, 13
  %s27 = sld [smem:[%s26]]
  %s28 = scalar_lea.smem %s0, 14
  %s29 = sld [smem:[%s28]]
  %s30 = scalar_lea.smem %s0, 15
  %s31 = sld [smem:[%s30]]
  %s32 = scalar_lea.smem %s0, 16
  %s33 = sld [smem:[%s32]]
  %s34 = scalar_lea.smem %s0, 17
  %s35 = sld [smem:[%s34]]
  %s36 = scalar_lea.smem %s0, 18
  %s37 = sld [smem:[%s36]]
  %s38 = scalar_lea.smem %s0, 19
  %s39 = sld [smem:[%s38]]
  %s40 = scalar_lea.smem %s0, 20
  %s41 = sld [smem:[%s40]]
  %s42 = scalar_lea.smem %s0, 21
  %s43 = sld [smem:[%s42]]
  %s44 = scalar_lea.smem %s0, 22
  %s45 = sld [smem:[%s44]]
  %s46 = scalar_lea.smem %s0, 23
  %s47 = sld [smem:[%s46]]
  %s48 = scalar_lea.smem %s0, 24
  %s49 = sld [smem:[%s48]]
  %s50 = scalar_lea.smem %s0, 25
  %s51 = sld [smem:[%s50]]
  %s52 = scalar_lea.smem %s0, 26
  %s53 = sld [smem:[%s52]]
  %s54 = scalar_lea.smem %s0, 27
  %s55 = sld [smem:[%s54]]
  %s56 = scalar_lea.smem %s0, 28
  %s57 = sld [smem:[%s56]]
  %s58 = scalar_lea.smem %s0, 29
  %s59 = sld [smem:[%s58]]
  %s60 = scalar_lea.smem %s0, 30
  %s61 = sld [smem:[%s60]]
  %s62 = scalar_lea.smem %s0, 31
  %s63 = sld [smem:[%s62]]
  %64 = xla_tuple %s57, %s59, %s61, %s63
  %s65 = sld [smem:[#allocation0]]
  $region198: #{tpu_custom_call.1} parent=0
    _
  %s67 = ssub.s32 1, %s65
  %s68 = scalar_select 0, %s67, %s65
  $region1: #{tpu_custom_call.1} parent=0
    #allocation2 [shape = 'u8[8192]{0}', space=vmem, size = 0x2000, scoped, tag = 'input window, operand 0, single buffered']
    #allocation3 [shape = 's32[1]{0}', space=sflag, size = 0x4, scoped, tag = 'scoped memory for tpu_custom_call.1']
    #allocation4 [shape = 's32[1]{0}', space=sflag, size = 0x4, scoped, tag = 'scoped memory for tpu_custom_call.1']
    #allocation5 [shape = 'u8[512]{0}', space=vmem, size = 0x400, scoped, tag = 'input window, operand 5, single buffered']
    #allocation6 [shape = 's32[1]{0}', space=sflag, size = 0x4, scoped, tag = 'scoped memory for tpu_custom_call.1']
    #allocation7 [shape = 'u8[512]{0}', space=vmem, size = 0x400, scoped, tag = 'input window, operand 6, single buffered']
    #allocation8 [shape = 'u8[512]{0}', space=vmem, size = 0x400, scoped, tag = 'input window, operand 7, single buffered']
    #allocation9 [shape = 's32[1]{0}', space=sflag, size = 0x4, scoped, tag = 'scoped memory for tpu_custom_call.1']
    #allocation10 [shape = 'u8[512]{0}', space=vmem, size = 0x400, scoped, tag = 'input window, operand 9, single buffered']
    #allocation11 [shape = 'u8[512]{0}', space=vmem, size = 0x400, scoped, tag = 'input window, operand 11, single buffered']
    #allocation12 [shape = 's32[1]{0}', space=sflag, size = 0x4, scoped, tag = 'scoped memory for tpu_custom_call.1']
    #allocation13 [shape = 'u8[512]{0}', space=vmem, size = 0x400, scoped, tag = 'input window, operand 12, single buffered']
    #allocation14 [shape = 'u8[512]{0}', space=vmem, size = 0x400, scoped, tag = 'input window, operand 13, single buffered']
    #allocation15 [shape = 's32[1]{0}', space=sflag, size = 0x4, scoped, tag = 'scoped memory for tpu_custom_call.1']
    #allocation16 [shape = 'u8[512]{0}', space=vmem, size = 0x400, scoped, tag = 'input window, operand 15, single buffered']
    #allocation17 [shape = 'u8[512]{0}', space=vmem, size = 0x400, scoped, tag = 'input window, operand 17, single buffered']
    #allocation18 [shape = 's32[1]{0}', space=sflag, size = 0x4, scoped, tag = 'scoped memory for tpu_custom_call.1']
    #allocation19 [shape = 'u8[512]{0}', space=vmem, size = 0x400, scoped, tag = 'input window, operand 18, single buffered']
    #allocation20 [shape = 'u8[512]{0}', space=vmem, size = 0x400, scoped, tag = 'input window, operand 19, single buffered']
    #allocation21 [shape = 's32[1]{0}', space=sflag, size = 0x4, scoped, tag = 'scoped memory for tpu_custom_call.1']
    #allocation22 [shape = 'u8[512]{0}', space=vmem, size = 0x400, scoped, tag = 'input window, operand 21, single buffered']
    #allocation23 [shape = 'u8[8192]{0}', space=vmem, size = 0x2000, scoped, tag = 'output window, operand 0, single buffered']
    #allocation24 [shape = 'u8[1024]{0}', space=vmem, size = 0x400, scoped, tag = 'output window, operand 1, single buffered']
    #allocation25 [shape = 's32[1]{0}', space=sflag, size = 0x4, scoped, tag = 'scoped memory for tpu_custom_call.1']
    #allocation26 [shape = 'u8[65536]{0}', space=vmem, size = 0x10000, scoped, tag = 'output window, operand 2, single buffered']
    #allocation27 [shape = 'u8[65536]{0}', space=vmem, size = 0x10000, scoped, tag = 'output window, operand 3, single buffered']
    #allocation28 [shape = 's32[1]{0}', space=sflag, size = 0x4, scoped, tag = 'scoped memory for tpu_custom_call.1']
    %69 = vsyncpa [#allocation3], 0
    %70 = vsyncpa [#allocation6], 0
    %71 = vsyncpa [#allocation9], 0
    %72 = vsyncpa [#allocation12], 0
    %73 = vsyncpa [#allocation15], 0
    %74 = vsyncpa [#allocation18], 0
    %75 = vsyncpa [#allocation21], 0
    %76 = vsyncpa [#allocation4], 0
    %77 = vsyncpa [#allocation25], 0
    %78 = vsyncpa [#allocation28], 0
    // Predicated region
    $region2: #{tpu_custom_call.1} parent=1 // pred_check
      _
    $region3: #{tpu_custom_call.1} parent=1 // pred_check_branch
      %80 = sbr.rel (0) target = $region5
    $region4: #{tpu_custom_call.1} parent=1 // pred_region
      %s82 = ssub.s32 256, 256
      %83 = vsyncadd [#allocation3], %s82
      %s84 = sshll.u32 [#allocation2], 4
      %s85 = int_to_ptr.vmem [resolvable:$true] %s84
      %90 = dma.hbm_to_vmem [thread:$0]  %s1, 256, %s85, [#allocation3], 128, 128, 8
    $region5: #{tpu_custom_call.1} parent=1 // pred_fallthru
      _
    // Predicated region
    $region6: #{tpu_custom_call.1} parent=1 // pred_check
      _
    $region7: #{tpu_custom_call.1} parent=1 // pred_check_branch
      %92 = sbr.rel (0) target = $region9
    $region8: #{tpu_custom_call.1} parent=1 // pred_region
      _
    $region9: #{tpu_custom_call.1} parent=1 // pred_fallthru
      _
    // Predicated region
    $region10: #{tpu_custom_call.1} parent=1 // pred_check
      _
    $region11: #{tpu_custom_call.1} parent=1 // pred_check_branch
      %94 = sbr.rel (0) target = $region13
    $region12: #{tpu_custom_call.1} parent=1 // pred_region
      _
    $region13: #{tpu_custom_call.1} parent=1 // pred_fallthru
      _
    // Predicated region
    $region14: #{tpu_custom_call.1} parent=1 // pred_check
      _
    $region15: #{tpu_custom_call.1} parent=1 // pred_check_branch
      %96 = sbr.rel (0) target = $region17
    $region16: #{tpu_custom_call.1} parent=1 // pred_region
      _
    $region17: #{tpu_custom_call.1} parent=1 // pred_fallthru
      _
    // Predicated region
    $region18: #{tpu_custom_call.1} parent=1 // pred_check
      _
    $region19: #{tpu_custom_call.1} parent=1 // pred_check_branch
      %98 = sbr.rel (0) target = $region21
    $region20: #{tpu_custom_call.1} parent=1 // pred_region
      _
    $region21: #{tpu_custom_call.1} parent=1 // pred_fallthru
      _
    // Predicated region
    $region22: #{tpu_custom_call.1} parent=1 // pred_check
      _
    $region23: #{tpu_custom_call.1} parent=1 // pred_check_branch
      %100 = sbr.rel (0) target = $region25
    $region24: #{tpu_custom_call.1} parent=1 // pred_region
      %s102 = ssub.s32 16, 16
      %103 = vsyncadd [#allocation6], %s102
      %s105 = sshll.u32 [#allocation5], 4
      %s106 = int_to_ptr.vmem [resolvable:$true] %s105
      %108 = dma.hbm_to_vmem [thread:$0]  %s11, 16, %s106, [#allocation6]
    $region25: #{tpu_custom_call.1} parent=1 // pred_fallthru
      _
    // Predicated region
    $region26: #{tpu_custom_call.1} parent=1 // pred_check
      _
    $region27: #{tpu_custom_call.1} parent=1 // pred_check_branch
      %110 = sbr.rel (0) target = $region29
    $region28: #{tpu_custom_call.1} parent=1 // pred_region
      %s112 = ssub.s32 16, 16
      %113 = vsyncadd [#allocation6], %s112
      %s115 = sshll.u32 [#allocation7], 4
      %s116 = int_to_ptr.vmem [resolvable:$true] %s115
      %118 = dma.hbm_to_vmem [thread:$0]  %s13, 16, %s116, [#allocation6]
    $region29: #{tpu_custom_call.1} parent=1 // pred_fallthru
      _
    // Predicated region
    $region30: #{tpu_custom_call.1} parent=1 // pred_check
      _
    $region31: #{tpu_custom_call.1} parent=1 // pred_check_branch
      %120 = sbr.rel (0) target = $region33
    $region32: #{tpu_custom_call.1} parent=1 // pred_region
      %s122 = ssub.s32 16, 16
      %123 = vsyncadd [#allocation9], %s122
      %s125 = sshll.u32 [#allocation8], 4
      %s126 = int_to_ptr.vmem [resolvable:$true] %s125
      %128 = dma.hbm_to_vmem [thread:$0]  %s15, 16, %s126, [#allocation9]
    $region33: #{tpu_custom_call.1} parent=1 // pred_fallthru
      _
    // Predicated region
    $region34: #{tpu_custom_call.1} parent=1 // pred_check
      _
    $region35: #{tpu_custom_call.1} parent=1 // pred_check_branch
      %130 = sbr.rel (0) target = $region37
    $region36: #{tpu_custom_call.1} parent=1 // pred_region
      _
    $region37: #{tpu_custom_call.1} parent=1 // pred_fallthru
      _
    // Predicated region
    $region38: #{tpu_custom_call.1} parent=1 // pred_check
      _
    $region39: #{tpu_custom_call.1} parent=1 // pred_check_branch
      %132 = sbr.rel (0) target = $region41
    $region40: #{tpu_custom_call.1} parent=1 // pred_region
      %s134 = ssub.s32 16, 16
      %135 = vsyncadd [#allocation9], %s134
      %s137 = sshll.u32 [#allocation10], 4
      %s138 = int_to_ptr.vmem [resolvable:$true] %s137
      %140 = dma.hbm_to_vmem [thread:$0]  %s19, 16, %s138, [#allocation9]
    $region41: #{tpu_custom_call.1} parent=1 // pred_fallthru
      _
    // Predicated region
    $region42: #{tpu_custom_call.1} parent=1 // pred_check
      _
    $region43: #{tpu_custom_call.1} parent=1 // pred_check_branch
      %142 = sbr.rel (0) target = $region45
    $region44: #{tpu_custom_call.1} parent=1 // pred_region
      _
    $region45: #{tpu_custom_call.1} parent=1 // pred_fallthru
      _
    // Predicated region
    $region46: #{tpu_custom_call.1} parent=1 // pred_check
      _
    $region47: #{tpu_custom_call.1} parent=1 // pred_check_branch
      %144 = sbr.rel (0) target = $region49
    $region48: #{tpu_custom_call.1} parent=1 // pred_region
      %s146 = ssub.s32 16, 16
      %147 = vsyncadd [#allocation12], %s146
      %s149 = sshll.u32 [#allocation11], 4
      %s150 = int_to_ptr.vmem [resolvable:$true] %s149
      %152 = dma.hbm_to_vmem [thread:$0]  %s23, 16, %s150, [#allocation12]
    $region49: #{tpu_custom_call.1} parent=1 // pred_fallthru
      _
    // Predicated region
    $region50: #{tpu_custom_call.1} parent=1 // pred_check
      _
    $region51: #{tpu_custom_call.1} parent=1 // pred_check_branch
      %154 = sbr.rel (0) target = $region53
    $region52: #{tpu_custom_call.1} parent=1 // pred_region
      %s156 = ssub.s32 16, 16
      %157 = vsyncadd [#allocation12], %s156
      %s159 = sshll.u32 [#allocation13], 4
      %s160 = int_to_ptr.vmem [resolvable:$true] %s159
      %162 = dma.hbm_to_vmem [thread:$0]  %s25, 16, %s160, [#allocation12]
    $region53: #{tpu_custom_call.1} parent=1 // pred_fallthru
      _
    // Predicated region
    $region54: #{tpu_custom_call.1} parent=1 // pred_check
      _
    $region55: #{tpu_custom_call.1} parent=1 // pred_check_branch
      %164 = sbr.rel (0) target = $region57
    $region56: #{tpu_custom_call.1} parent=1 // pred_region
      %s166 = ssub.s32 16, 16
      %167 = vsyncadd [#allocation15], %s166
      %s169 = sshll.u32 [#allocation14], 4
      %s170 = int_to_ptr.vmem [resolvable:$true] %s169
      %172 = dma.hbm_to_vmem [thread:$0]  %s27, 16, %s170, [#allocation15]
    $region57: #{tpu_custom_call.1} parent=1 // pred_fallthru
      _
    // Predicated region
    $region58: #{tpu_custom_call.1} parent=1 // pred_check
      _
    $region59: #{tpu_custom_call.1} parent=1 // pred_check_branch
      %174 = sbr.rel (0) target = $region61
    $region60: #{tpu_custom_call.1} parent=1 // pred_region
      _
    $region61: #{tpu_custom_call.1} parent=1 // pred_fallthru
      _
    // Predicated region
    $region62: #{tpu_custom_call.1} parent=1 // pred_check
      _
    $region63: #{tpu_custom_call.1} parent=1 // pred_check_branch
      %176 = sbr.rel (0) target = $region65
    $region64: #{tpu_custom_call.1} parent=1 // pred_region
      %s178 = ssub.s32 16, 16
      %179 = vsyncadd [#allocation15], %s178
      %s181 = sshll.u32 [#allocation16], 4
      %s182 = int_to_ptr.vmem [resolvable:$true] %s181
      %184 = dma.hbm_to_vmem [thread:$0]  %s31, 16, %s182, [#allocation15]
    $region65: #{tpu_custom_call.1} parent=1 // pred_fallthru
      _
    // Predicated region
    $region66: #{tpu_custom_call.1} parent=1 // pred_check
      _
    $region67: #{tpu_custom_call.1} parent=1 // pred_check_branch
      %186 = sbr.rel (0) target = $region69
    $region68: #{tpu_custom_call.1} parent=1 // pred_region
      _
    $region69: #{tpu_custom_call.1} parent=1 // pred_fallthru
      _
    // Predicated region
    $region70: #{tpu_custom_call.1} parent=1 // pred_check
      _
    $region71: #{tpu_custom_call.1} parent=1 // pred_check_branch
      %188 = sbr.rel (0) target = $region73
    $region72: #{tpu_custom_call.1} parent=1 // pred_region
      %s190 = ssub.s32 16, 16
      %191 = vsyncadd [#allocation18], %s190
      %s193 = sshll.u32 [#allocation17], 4
      %s194 = int_to_ptr.vmem [resolvable:$true] %s193
      %196 = dma.hbm_to_vmem [thread:$0]  %s35, 16, %s194, [#allocation18]
    $region73: #{tpu_custom_call.1} parent=1 // pred_fallthru
      _
    // Predicated region
    $region74: #{tpu_custom_call.1} parent=1 // pred_check
      _
    $region75: #{tpu_custom_call.1} parent=1 // pred_check_branch
      %198 = sbr.rel (0) target = $region77
    $region76: #{tpu_custom_call.1} parent=1 // pred_region
      %s200 = ssub.s32 16, 16
      %201 = vsyncadd [#allocation18], %s200
      %s203 = sshll.u32 [#allocation19], 4
      %s204 = int_to_ptr.vmem [resolvable:$true] %s203
      %206 = dma.hbm_to_vmem [thread:$0]  %s37, 16, %s204, [#allocation18]
    $region77: #{tpu_custom_call.1} parent=1 // pred_fallthru
      _
    // Predicated region
    $region78: #{tpu_custom_call.1} parent=1 // pred_check
      _
    $region79: #{tpu_custom_call.1} parent=1 // pred_check_branch
      %208 = sbr.rel (0) target = $region81
    $region80: #{tpu_custom_call.1} parent=1 // pred_region
      %s210 = ssub.s32 16, 16
      %211 = vsyncadd [#allocation21], %s210
      %s213 = sshll.u32 [#allocation20], 4
      %s214 = int_to_ptr.vmem [resolvable:$true] %s213
      %216 = dma.hbm_to_vmem [thread:$0]  %s39, 16, %s214, [#allocation21]
    $region81: #{tpu_custom_call.1} parent=1 // pred_fallthru
      _
    // Predicated region
    $region82: #{tpu_custom_call.1} parent=1 // pred_check
      _
    $region83: #{tpu_custom_call.1} parent=1 // pred_check_branch
      %218 = sbr.rel (0) target = $region85
    $region84: #{tpu_custom_call.1} parent=1 // pred_region
      _
    $region85: #{tpu_custom_call.1} parent=1 // pred_fallthru
      _
    // Predicated region
    $region86: #{tpu_custom_call.1} parent=1 // pred_check
      _
    $region87: #{tpu_custom_call.1} parent=1 // pred_check_branch
      %220 = sbr.rel (0) target = $region89
    $region88: #{tpu_custom_call.1} parent=1 // pred_region
      %s222 = ssub.s32 16, 16
      %223 = vsyncadd [#allocation21], %s222
      %s225 = sshll.u32 [#allocation22], 4
      %s226 = int_to_ptr.vmem [resolvable:$true] %s225
      %228 = dma.hbm_to_vmem [thread:$0]  %s43, 16, %s226, [#allocation21]
    $region89: #{tpu_custom_call.1} parent=1 // pred_fallthru
      _
    // Predicated region
    $region90: #{tpu_custom_call.1} parent=1 // pred_check
      _
    $region91: #{tpu_custom_call.1} parent=1 // pred_check_branch
      %230 = sbr.rel (0) target = $region93
    $region92: #{tpu_custom_call.1} parent=1 // pred_region
      _
    $region93: #{tpu_custom_call.1} parent=1 // pred_fallthru
      _
    // Predicated region
    $region94: #{tpu_custom_call.1} parent=1 // pred_check
      _
    $region95: #{tpu_custom_call.1} parent=1 // pred_check_branch
      %232 = sbr.rel (0) target = $region97
    $region96: #{tpu_custom_call.1} parent=1 // pred_region
      _
    $region97: #{tpu_custom_call.1} parent=1 // pred_fallthru
      _
    // Predicated region
    $region98: #{tpu_custom_call.1} parent=1 // pred_check
      _
    $region99: #{tpu_custom_call.1} parent=1 // pred_check_branch
      %234 = sbr.rel (0) target = $region101
    $region100: #{tpu_custom_call.1} parent=1 // pred_region
      _
    $region101: #{tpu_custom_call.1} parent=1 // pred_fallthru
      _
    // Predicated region
    $region102: #{tpu_custom_call.1} parent=1 // pred_check
      _
    $region103: #{tpu_custom_call.1} parent=1 // pred_check_branch
      %236 = sbr.rel (0) target = $region105
    $region104: #{tpu_custom_call.1} parent=1 // pred_region
      _
    $region105: #{tpu_custom_call.1} parent=1 // pred_fallthru
      _
    // Predicated region
    $region106: #{tpu_custom_call.1} parent=1 // pred_check
      _
    $region107: #{tpu_custom_call.1} parent=1 // pred_check_branch
      %238 = sbr.rel (0) target = $region109
    $region108: #{tpu_custom_call.1} parent=1 // pred_region
      _
    $region109: #{tpu_custom_call.1} parent=1 // pred_fallthru
      _
    // Predicated region
    $region110: #{tpu_custom_call.1} parent=1 // pred_check
      _
    $region111: #{tpu_custom_call.1} parent=1 // pred_check_branch
      %240 = sbr.rel (0) target = $region113
    $region112: #{tpu_custom_call.1} parent=1 // pred_region
      _
    $region113: #{tpu_custom_call.1} parent=1 // pred_fallthru
      _
    // Predicated region
    $region114: #{tpu_custom_call.1} parent=1 // pred_check
      _
    $region115: #{tpu_custom_call.1} parent=1 // pred_check_branch
      %242 = sbr.rel (0) target = $region117
    $region116: #{tpu_custom_call.1} parent=1 // pred_region
      %243 = dma.done [#allocation3], 256
    $region117: #{tpu_custom_call.1} parent=1 // pred_fallthru
      _
    // Predicated region
    $region118: #{tpu_custom_call.1} parent=1 // pred_check
      _
    $region119: #{tpu_custom_call.1} parent=1 // pred_check_branch
      %245 = sbr.rel (0) target = $region121
    $region120: #{tpu_custom_call.1} parent=1 // pred_region
      %246 = dma.done [#allocation6], 16
    $region121: #{tpu_custom_call.1} parent=1 // pred_fallthru
      _
    // Predicated region
    $region122: #{tpu_custom_call.1} parent=1 // pred_check
      _
    $region123: #{tpu_custom_call.1} parent=1 // pred_check_branch
      %248 = sbr.rel (0) target = $region125
    $region124: #{tpu_custom_call.1} parent=1 // pred_region
      %249 = dma.done [#allocation6], 16
    $region125: #{tpu_custom_call.1} parent=1 // pred_fallthru
      _
    // Predicated region
    $region126: #{tpu_custom_call.1} parent=1 // pred_check
      _
    $region127: #{tpu_custom_call.1} parent=1 // pred_check_branch
      %251 = sbr.rel (0) target = $region129
    $region128: #{tpu_custom_call.1} parent=1 // pred_region
      %252 = dma.done [#allocation9], 16
    $region129: #{tpu_custom_call.1} parent=1 // pred_fallthru
      _
    // Predicated region
    $region130: #{tpu_custom_call.1} parent=1 // pred_check
      _
    $region131: #{tpu_custom_call.1} parent=1 // pred_check_branch
      %254 = sbr.rel (0) target = $region133
    $region132: #{tpu_custom_call.1} parent=1 // pred_region
      %255 = dma.done [#allocation9], 16
    $region133: #{tpu_custom_call.1} parent=1 // pred_fallthru
      _
    // Predicated region
    $region134: #{tpu_custom_call.1} parent=1 // pred_check
      _
    $region135: #{tpu_custom_call.1} parent=1 // pred_check_branch
      %257 = sbr.rel (0) target = $region137
    $region136: #{tpu_custom_call.1} parent=1 // pred_region
      %258 = dma.done [#allocation12], 16
    $region137: #{tpu_custom_call.1} parent=1 // pred_fallthru
      _
    // Predicated region
    $region138: #{tpu_custom_call.1} parent=1 // pred_check
      _
    $region139: #{tpu_custom_call.1} parent=1 // pred_check_branch
      %260 = sbr.rel (0) target = $region141
    $region140: #{tpu_custom_call.1} parent=1 // pred_region
      %261 = dma.done [#allocation12], 16
    $region141: #{tpu_custom_call.1} parent=1 // pred_fallthru
      _
    // Predicated region
    $region142: #{tpu_custom_call.1} parent=1 // pred_check
      _
    $region143: #{tpu_custom_call.1} parent=1 // pred_check_branch
      %263 = sbr.rel (0) target = $region145
    $region144: #{tpu_custom_call.1} parent=1 // pred_region
      %264 = dma.done [#allocation15], 16
    $region145: #{tpu_custom_call.1} parent=1 // pred_fallthru
      _
    // Predicated region
    $region146: #{tpu_custom_call.1} parent=1 // pred_check
      _
    $region147: #{tpu_custom_call.1} parent=1 // pred_check_branch
      %266 = sbr.rel (0) target = $region149
    $region148: #{tpu_custom_call.1} parent=1 // pred_region
      %267 = dma.done [#allocation15], 16
    $region149: #{tpu_custom_call.1} parent=1 // pred_fallthru
      _
    // Predicated region
    $region150: #{tpu_custom_call.1} parent=1 // pred_check
      _
    $region151: #{tpu_custom_call.1} parent=1 // pred_check_branch
      %269 = sbr.rel (0) target = $region153
    $region152: #{tpu_custom_call.1} parent=1 // pred_region
      %270 = dma.done [#allocation18], 16
    $region153: #{tpu_custom_call.1} parent=1 // pred_fallthru
      _
    // Predicated region
    $region154: #{tpu_custom_call.1} parent=1 // pred_check
      _
    $region155: #{tpu_custom_call.1} parent=1 // pred_check_branch
      %272 = sbr.rel (0) target = $region157
    $region156: #{tpu_custom_call.1} parent=1 // pred_region
      %273 = dma.done [#allocation18], 16
    $region157: #{tpu_custom_call.1} parent=1 // pred_fallthru
      _
    // Predicated region
    $region158: #{tpu_custom_call.1} parent=1 // pred_check
      _
    $region159: #{tpu_custom_call.1} parent=1 // pred_check_branch
      %275 = sbr.rel (0) target = $region161
    $region160: #{tpu_custom_call.1} parent=1 // pred_region
      %276 = dma.done [#allocation21], 16
    $region161: #{tpu_custom_call.1} parent=1 // pred_fallthru
      _
    // Predicated region
    $region162: #{tpu_custom_call.1} parent=1 // pred_check
      _
    $region163: #{tpu_custom_call.1} parent=1 // pred_check_branch
      %278 = sbr.rel (0) target = $region165
    $region164: #{tpu_custom_call.1} parent=1 // pred_region
      %279 = dma.done [#allocation21], 16
    $region165: #{tpu_custom_call.1} parent=1 // pred_fallthru
      _
    %v280 = vld [vmem:[#allocation2] sm:$0xff]
    %v281 = vld [vmem:[#allocation2 + $0x8] sm:$0xff]
    %v282 = vld [vmem:[%s3] sm:$0xff]
    %v283 = vld [vmem:[%s3 + $0x8] sm:$0xff]
    %vm284 = vcmp.gt.f32.partialorder %v282, 0.5
    %vm285 = vcmp.gt.f32.partialorder %v283, 0.5
    %v286 = vld [vmem:[%s5] sm:$0xff]
    %v287 = vld [vmem:[%s5 + $0x8] sm:$0xff]
    %v288 = vld [vmem:[%s5 + $0x10] sm:$0xff]
    %v289 = vld [vmem:[%s5 + $0x18] sm:$0xff]
    %v290 = vld [vmem:[%s7] sm:$0x1]
    %v292 = vlaneseq
    %v293 = vshrl.u32 %v292, 7
    %v294 = vsub.s32 0, %v293
    %v295 = vrot.slane %v290, %v294
    %vm297 = vcmask 261120
    %v299 = vsel %vm297, %v280, 0
    %v302 = vsel %vm297, %v281, 0
    %304 = vmatprep.subr.mxu0 0.0
    %305 = vmatpush1.msra.mxu0 %v286
    %306 = vmatprep.subr.mxu0 0.0
    %307 = vmatpush1.msra.mxu0 %v287
    %308 = vmatprep.subr.mxu0 0.0
    %309 = vmatpush1.msra.mxu0 %v288
    %310 = vmatprep.subr.mxu0 0.0
    %311 = vmatpush1.msra.mxu0 %v289
    %312 = vmatprep.subr.mxu0 0.0
    %313 = vmatpush1.msra.mxu0 0.0
    %314 = vmatprep.subr.mxu0 0.0
    %315 = vmatpush1.msra.mxu0 0.0
    %316 = vmatprep.subr.mxu0 0.0
    %317 = vmatpush1.msra.mxu0 0.0
    %318 = vmatprep.subr.mxu0 0.0
    %319 = vmatpush1.msra.mxu0 0.0
    %320 = vmatprep.subr.mxu0 0.0
    %321 = vmatpush1.msra.mxu0 0.0
    %322 = vmatprep.subr.mxu0 0.0
    %323 = vmatpush1.msra.mxu0 0.0
    %324 = vmatprep.subr.mxu0 0.0
    %325 = vmatpush1.msra.mxu0 0.0
    %326 = vmatprep.subr.mxu0 0.0
    %327 = vmatpush1.msra.mxu0 0.0
    %328 = vmatprep.subr.mxu0 0.0
    %329 = vmatpush1.msra.mxu0 0.0
    %330 = vmatprep.subr.mxu0 0.0
    %331 = vmatpush1.msra.mxu0 0.0
    %332 = vmatprep.subr.mxu0 0.0
    %333 = vmatpush1.msra.mxu0 0.0
    %334 = vmatprep.subr.mxu0 0.0
    %335 = vmatpush1.msra.mxu0 0.0
    %336 = vmatprep.subr.mxu0 0.0
    %337 = vmatpush1.msra.mxu0 0.0
    %338 = vmatprep.subr.mxu0 0.0
    %339 = vmatpush1.msra.mxu0 0.0
    %340 = vmatprep.subr.mxu0 0.0
    %341 = vmatpush1.msra.mxu0 0.0
    %342 = vmatprep.subr.mxu0 0.0
    %343 = vmatpush1.msra.mxu0 0.0
    %344 = vmatprep.subr.mxu0 0.0
    %345 = vmatpush1.msra.mxu0 0.0
    %346 = vmatprep.subr.mxu0 0.0
    %347 = vmatpush1.msra.mxu0 0.0
    %348 = vmatprep.subr.mxu0 0.0
    %349 = vmatpush1.msra.mxu0 0.0
    %350 = vmatprep.subr.mxu0 0.0
    %351 = vmatpush1.msra.mxu0 0.0
    %352 = vmatprep.subr.mxu0 0.0
    %353 = vmatpush1.msra.mxu0 0.0
    %354 = vmatprep.subr.mxu0 0.0
    %355 = vmatpush1.msra.mxu0 0.0
    %356 = vmatprep.subr.mxu0 0.0
    %357 = vmatpush1.msra.mxu0 0.0
    %358 = vmatprep.subr.mxu0 0.0
    %359 = vmatpush1.msra.mxu0 0.0
    %360 = vmatprep.subr.mxu0 0.0
    %361 = vmatpush1.msra.mxu0 0.0
    %362 = vmatprep.subr.mxu0 0.0
    %363 = vmatpush1.msra.mxu0 0.0
    %364 = vmatprep.subr.mxu0 0.0
    %365 = vmatpush1.msra.mxu0 0.0
    %366 = vmatprep.subr.mxu0 0.0
    %367 = vmatpush1.msra.mxu0 0.0
    %368 = vmatprep.mubr.f32.mxu0 0.0
    %369 = vmatmul.mubr.f32.gmra.mrb[0].mxu0 %v299
    %v370 = vpop.f32.mrb[0].mxu0
    %v371 = vadd.f32 %v295, %v370
    %v372 = vpop.f32.mrb[0].mxu0
    %373 = vmatprep.mubr.f32.mxu0 0.0
    %374 = vmatmul.mubr.f32.gmra.mrb[0].mxu0 %v302
    %v375 = vpop.f32.mrb[0].mxu0
    %v376 = vadd.f32 %v295, %v375
    %v377 = vpop.f32.mrb[0].mxu0
    %378 = vdwg.mxu0
    %v381 = vcombine.high %v371, %v371
    %v383 = vunpack.c.l.s4 1966171168
    %v384 = vunpack.c.0.s8 %v383
    %v385 = vlaneseq
    %v386 = vshrl.u32 %v385, 7
    %v387 = vsub.s32 %v384, %v386
    %v388 = vrot.slane %v371, %v387
    %v390 = vunpack.c.l.s4 1966171168
    %v391 = vunpack.c.0.s8 %v390
    %v392 = vlaneseq
    %v393 = vshrl.u32 %v392, 7
    %v394 = vsub.s32 %v391, %v393
    %v395 = vrot.slane %v381, %v394
    %v396 = vcombine.high %v388, %v388
    %v397 = vcombine.high %v395, %v395
    %v399 = vunpack.c.l.s4 1966171168
    %v400 = vunpack.c.0.s8 %v399
    %v401 = vlaneseq
    %v402 = vshrl.u32 %v401, 7
    %v403 = vsub.s32 %v400, %v402
    %v404 = vrot.slane %v388, %v403
    %v406 = vunpack.c.l.s4 1966171168
    %v407 = vunpack.c.0.s8 %v406
    %v408 = vlaneseq
    %v409 = vshrl.u32 %v408, 7
    %v410 = vsub.s32 %v407, %v409
    %v411 = vrot.slane %v395, %v410
    %v413 = vunpack.c.l.s4 1966171168
    %v414 = vunpack.c.0.s8 %v413
    %v415 = vlaneseq
    %v416 = vshrl.u32 %v415, 7
    %v417 = vsub.s32 %v414, %v416
    %v418 = vrot.slane %v396, %v417
    %v420 = vunpack.c.l.s4 1966171168
    %v421 = vunpack.c.0.s8 %v420
    %v422 = vlaneseq
    %v423 = vshrl.u32 %v422, 7
    %v424 = vsub.s32 %v421, %v423
    %v425 = vrot.slane %v397, %v424
    %v426 = vcombine.high %v404, %v404
    %v427 = vcombine.high %v411, %v411
    %v428 = vcombine.high %v418, %v418
    %v429 = vcombine.high %v425, %v425
    %v430 = vcombine.high %v376, %v376
    %v432 = vunpack.c.l.s4 1966171168
    %v433 = vunpack.c.0.s8 %v432
    %v434 = vlaneseq
    %v435 = vshrl.u32 %v434, 7
    %v436 = vsub.s32 %v433, %v435
    %v437 = vrot.slane %v376, %v436
    %v439 = vunpack.c.l.s4 1966171168
    %v440 = vunpack.c.0.s8 %v439
    %v441 = vlaneseq
    %v442 = vshrl.u32 %v441, 7
    %v443 = vsub.s32 %v440, %v442
    %v444 = vrot.slane %v430, %v443
    %v445 = vcombine.high %v437, %v437
    %v446 = vcombine.high %v444, %v444
    %v448 = vunpack.c.l.s4 1966171168
    %v449 = vunpack.c.0.s8 %v448
    %v450 = vlaneseq
    %v451 = vshrl.u32 %v450, 7
    %v452 = vsub.s32 %v449, %v451
    %v453 = vrot.slane %v437, %v452
    %v455 = vunpack.c.l.s4 1966171168
    %v456 = vunpack.c.0.s8 %v455
    %v457 = vlaneseq
    %v458 = vshrl.u32 %v457, 7
    %v459 = vsub.s32 %v456, %v458
    %v460 = vrot.slane %v444, %v459
    %v462 = vunpack.c.l.s4 1966171168
    %v463 = vunpack.c.0.s8 %v462
    %v464 = vlaneseq
    %v465 = vshrl.u32 %v464, 7
    %v466 = vsub.s32 %v463, %v465
    %v467 = vrot.slane %v445, %v466
    %v469 = vunpack.c.l.s4 1966171168
    %v470 = vunpack.c.0.s8 %v469
    %v471 = vlaneseq
    %v472 = vshrl.u32 %v471, 7
    %v473 = vsub.s32 %v470, %v472
    %v474 = vrot.slane %v446, %v473
    %v475 = vcombine.high %v453, %v453
    %v476 = vcombine.high %v460, %v460
    %v477 = vcombine.high %v467, %v467
    %v478 = vcombine.high %v474, %v474
    %v479 = vlaneseq
    %v480 = vshrl.u32 %v479, 7
    %v481 = vsub.s32 0, %v480
    %v482 = vrot.slane %v404, %v481
    %v483 = vlaneseq
    %v484 = vshrl.u32 %v483, 7
    %v485 = vsub.s32 0, %v484
    %v486 = vrot.slane %v418, %v485
    %v487 = vlaneseq
    %v488 = vshrl.u32 %v487, 7
    %v489 = vsub.s32 0, %v488
    %v490 = vrot.slane %v426, %v489
    %v491 = vlaneseq
    %v492 = vshrl.u32 %v491, 7
    %v493 = vsub.s32 0, %v492
    %v494 = vrot.slane %v428, %v493
    %v495 = vlaneseq
    %v496 = vshrl.u32 %v495, 7
    %v497 = vsub.s32 0, %v496
    %v498 = vrot.slane %v411, %v497
    %v499 = vlaneseq
    %v500 = vshrl.u32 %v499, 7
    %v501 = vsub.s32 0, %v500
    %v502 = vrot.slane %v425, %v501
    %v503 = vlaneseq
    %v504 = vshrl.u32 %v503, 7
    %v505 = vsub.s32 0, %v504
    %v506 = vrot.slane %v427, %v505
    %v507 = vlaneseq
    %v508 = vshrl.u32 %v507, 7
    %v509 = vsub.s32 0, %v508
    %v510 = vrot.slane %v429, %v509
    %v511 = vlaneseq
    %v512 = vshrl.u32 %v511, 7
    %v513 = vsub.s32 0, %v512
    %v514 = vrot.slane %v453, %v513
    %v515 = vlaneseq
    %v516 = vshrl.u32 %v515, 7
    %v517 = vsub.s32 0, %v516
    %v518 = vrot.slane %v467, %v517
    %v519 = vlaneseq
    %v520 = vshrl.u32 %v519, 7
    %v521 = vsub.s32 0, %v520
    %v522 = vrot.slane %v475, %v521
    %v523 = vlaneseq
    %v524 = vshrl.u32 %v523, 7
    %v525 = vsub.s32 0, %v524
    %v526 = vrot.slane %v477, %v525
    %v527 = vlaneseq
    %v528 = vshrl.u32 %v527, 7
    %v529 = vsub.s32 0, %v528
    %v530 = vrot.slane %v460, %v529
    %v531 = vlaneseq
    %v532 = vshrl.u32 %v531, 7
    %v533 = vsub.s32 0, %v532
    %v534 = vrot.slane %v474, %v533
    %v535 = vlaneseq
    %v536 = vshrl.u32 %v535, 7
    %v537 = vsub.s32 0, %v536
    %v538 = vrot.slane %v476, %v537
    %v539 = vlaneseq
    %v540 = vshrl.u32 %v539, 7
    %v541 = vsub.s32 0, %v540
    %v542 = vrot.slane %v478, %v541
    %559 = vrot.lane.b32.xlu0 %v371, 96
    %v560 = vpop.permute.xlu0 %559
    %561 = vrot.lane.b32.xlu0 %v376, 96
    %v562 = vpop.permute.xlu0 %561
    %v565 = vmul.f32 %v482, %v560
    %v566 = vmul.f32 %v486, %v560
    %v567 = vmul.f32 %v490, %v560
    %v568 = vmul.f32 %v494, %v560
    %v569 = vmul.f32 %v498, %v560
    %v570 = vmul.f32 %v502, %v560
    %v571 = vmul.f32 %v506, %v560
    %v572 = vmul.f32 %v510, %v560
    %v573 = vmul.f32 %v514, %v562
    %v574 = vmul.f32 %v518, %v562
    %v575 = vmul.f32 %v522, %v562
    %v576 = vmul.f32 %v526, %v562
    %v577 = vmul.f32 %v530, %v562
    %v578 = vmul.f32 %v534, %v562
    %v579 = vmul.f32 %v538, %v562
    %v580 = vmul.f32 %v542, %v562
    %v581 = vsel %vm284, 1, 0
    %v582 = vsel %vm285, 1, 0
    %583 = vset.pattern.permute.xlu0 0
    %584 = vperm.xlu0 %583, %v581
    %v585 = vpop.permute.xlu0 %584
    %586 = vset.pattern.permute.xlu0 0
    %587 = vperm.xlu0 %586, %v582
    %v588 = vpop.permute.xlu0 %587
    %vm589 = vcmp.eq.s32.totalorder %v585, 1
    %vm590 = vcmp.eq.s32.totalorder %v588, 1
    %v591 = vsel %vm589, -1e+09, %v565
    %v592 = vsel %vm589, -1e+09, %v566
    %v593 = vsel %vm589, -1e+09, %v567
    %v594 = vsel %vm589, -1e+09, %v568
    %v595 = vsel %vm589, -1e+09, %v569
    %v596 = vsel %vm589, -1e+09, %v570
    %v597 = vsel %vm589, -1e+09, %v571
    %v598 = vsel %vm589, -1e+09, %v572
    %v599 = vsel %vm590, -1e+09, %v573
    %v600 = vsel %vm590, -1e+09, %v574
    %v601 = vsel %vm590, -1e+09, %v575
    %v602 = vsel %vm590, -1e+09, %v576
    %v603 = vsel %vm590, -1e+09, %v577
    %v604 = vsel %vm590, -1e+09, %v578
    %v605 = vsel %vm590, -1e+09, %v579
    %v606 = vsel %vm590, -1e+09, %v580
    %v607 = vsel %vm297, %v591, -inf
    %v608 = vrot.slane %v607, 4
    %v609 = vmax.f32 %v607, %v608
    %v610 = vrot.slane %v609, 2
    %v611 = vmax.f32 %v609, %v610
    %v612 = vrot.slane %v611, 1
    %v613 = vmax.f32 %v611, %v612
    %v614 = vsel %vm297, %v592, -inf
    %v615 = vrot.slane %v614, 4
    %v616 = vmax.f32 %v614, %v615
    %v617 = vrot.slane %v616, 2
    %v618 = vmax.f32 %v616, %v617
    %v619 = vrot.slane %v618, 1
    %v620 = vmax.f32 %v618, %v619
    %v621 = vsel %vm297, %v593, -inf
    %v622 = vrot.slane %v621, 4
    %v623 = vmax.f32 %v621, %v622
    %v624 = vrot.slane %v623, 2
    %v625 = vmax.f32 %v623, %v624
    %v626 = vrot.slane %v625, 1
    %v627 = vmax.f32 %v625, %v626
    %v628 = vsel %vm297, %v594, -inf
    %v629 = vrot.slane %v628, 4
    %v630 = vmax.f32 %v628, %v629
    %v631 = vrot.slane %v630, 2
    %v632 = vmax.f32 %v630, %v631
    %v633 = vrot.slane %v632, 1
    %v634 = vmax.f32 %v632, %v633
    %v635 = vsel %vm297, %v595, -inf
    %v636 = vrot.slane %v635, 4
    %v637 = vmax.f32 %v635, %v636
    %v638 = vrot.slane %v637, 2
    %v639 = vmax.f32 %v637, %v638
    %v640 = vrot.slane %v639, 1
    %v641 = vmax.f32 %v639, %v640
    %v642 = vsel %vm297, %v596, -inf
    %v643 = vrot.slane %v642, 4
    %v644 = vmax.f32 %v642, %v643
    %v645 = vrot.slane %v644, 2
    %v646 = vmax.f32 %v644, %v645
    %v647 = vrot.slane %v646, 1
    %v648 = vmax.f32 %v646, %v647
    %v649 = vsel %vm297, %v597, -inf
    %v650 = vrot.slane %v649, 4
    %v651 = vmax.f32 %v649, %v650
    %v652 = vrot.slane %v651, 2
    %v653 = vmax.f32 %v651, %v652
    %v654 = vrot.slane %v653, 1
    %v655 = vmax.f32 %v653, %v654
    %v656 = vsel %vm297, %v598, -inf
    %v657 = vrot.slane %v656, 4
    %v658 = vmax.f32 %v656, %v657
    %v659 = vrot.slane %v658, 2
    %v660 = vmax.f32 %v658, %v659
    %v661 = vrot.slane %v660, 1
    %v662 = vmax.f32 %v660, %v661
    %v663 = vsel %vm297, %v599, -inf
    %v664 = vrot.slane %v663, 4
    %v665 = vmax.f32 %v663, %v664
    %v666 = vrot.slane %v665, 2
    %v667 = vmax.f32 %v665, %v666
    %v668 = vrot.slane %v667, 1
    %v669 = vmax.f32 %v667, %v668
    %v670 = vsel %vm297, %v600, -inf
    %v671 = vrot.slane %v670, 4
    %v672 = vmax.f32 %v670, %v671
    %v673 = vrot.slane %v672, 2
    %v674 = vmax.f32 %v672, %v673
    %v675 = vrot.slane %v674, 1
    %v676 = vmax.f32 %v674, %v675
    %v677 = vsel %vm297, %v601, -inf
    %v678 = vrot.slane %v677, 4
    %v679 = vmax.f32 %v677, %v678
    %v680 = vrot.slane %v679, 2
    %v681 = vmax.f32 %v679, %v680
    %v682 = vrot.slane %v681, 1
    %v683 = vmax.f32 %v681, %v682
    %v684 = vsel %vm297, %v602, -inf
    %v685 = vrot.slane %v684, 4
    %v686 = vmax.f32 %v684, %v685
    %v687 = vrot.slane %v686, 2
    %v688 = vmax.f32 %v686, %v687
    %v689 = vrot.slane %v688, 1
    %v690 = vmax.f32 %v688, %v689
    %v691 = vsel %vm297, %v603, -inf
    %v692 = vrot.slane %v691, 4
    %v693 = vmax.f32 %v691, %v692
    %v694 = vrot.slane %v693, 2
    %v695 = vmax.f32 %v693, %v694
    %v696 = vrot.slane %v695, 1
    %v697 = vmax.f32 %v695, %v696
    %v698 = vsel %vm297, %v604, -inf
    %v699 = vrot.slane %v698, 4
    %v700 = vmax.f32 %v698, %v699
    %v701 = vrot.slane %v700, 2
    %v702 = vmax.f32 %v700, %v701
    %v703 = vrot.slane %v702, 1
    %v704 = vmax.f32 %v702, %v703
    %v705 = vsel %vm297, %v605, -inf
    %v706 = vrot.slane %v705, 4
    %v707 = vmax.f32 %v705, %v706
    %v708 = vrot.slane %v707, 2
    %v709 = vmax.f32 %v707, %v708
    %v710 = vrot.slane %v709, 1
    %v711 = vmax.f32 %v709, %v710
    %v712 = vsel %vm297, %v606, -inf
    %v713 = vrot.slane %v712, 4
    %v714 = vmax.f32 %v712, %v713
    %v715 = vrot.slane %v714, 2
    %v716 = vmax.f32 %v714, %v715
    %v717 = vrot.slane %v716, 1
    %v718 = vmax.f32 %v716, %v717
    %v719 = vsub.f32 %v591, %v613
    %v720 = vsub.f32 %v592, %v620
    %v721 = vsub.f32 %v593, %v627
    %v722 = vsub.f32 %v594, %v634
    %v723 = vsub.f32 %v595, %v641
    %v724 = vsub.f32 %v596, %v648
    %v725 = vsub.f32 %v597, %v655
    %v726 = vsub.f32 %v598, %v662
    %v727 = vsub.f32 %v599, %v669
    %v728 = vsub.f32 %v600, %v676
    %v729 = vsub.f32 %v601, %v683
    %v730 = vsub.f32 %v602, %v690
    %v731 = vsub.f32 %v603, %v697
    %v732 = vsub.f32 %v604, %v704
    %v733 = vsub.f32 %v605, %v711
    %v734 = vsub.f32 %v606, %v718
    %v735 = vmul.f32 %v719, 1.442695
    %v736 = vpow.pop %v735
    %v737 = vmul.f32 %v720, 1.442695
    %v738 = vpow.pop %v737
    %v739 = vmul.f32 %v721, 1.442695
    %v740 = vpow.pop %v739
    %v741 = vmul.f32 %v722, 1.442695
    %v742 = vpow.pop %v741
    %v743 = vmul.f32 %v723, 1.442695
    %v744 = vpow.pop %v743
    %v745 = vmul.f32 %v724, 1.442695
    %v746 = vpow.pop %v745
    %v747 = vmul.f32 %v725, 1.442695
    %v748 = vpow.pop %v747
    %v749 = vmul.f32 %v726, 1.442695
    %v750 = vpow.pop %v749
    %v751 = vmul.f32 %v727, 1.442695
    %v752 = vpow.pop %v751
    %v753 = vmul.f32 %v728, 1.442695
    %v754 = vpow.pop %v753
    %v755 = vmul.f32 %v729, 1.442695
    %v756 = vpow.pop %v755
    %v757 = vmul.f32 %v730, 1.442695
    %v758 = vpow.pop %v757
    %v759 = vmul.f32 %v731, 1.442695
    %v760 = vpow.pop %v759
    %v761 = vmul.f32 %v732, 1.442695
    %v762 = vpow.pop %v761
    %v763 = vmul.f32 %v733, 1.442695
    %v764 = vpow.pop %v763
    %v765 = vmul.f32 %v734, 1.442695
    %v766 = vpow.pop %v765
    %v767 = vsel %vm297, %v736, 0.0
    %v768 = vrot.slane %v767, 4
    %v769 = vadd.f32 %v767, %v768
    %v770 = vrot.slane %v769, 2
    %v771 = vadd.f32 %v769, %v770
    %v772 = vrot.slane %v771, 1
    %v773 = vadd.f32 %v771, %v772
    %v774 = vsel %vm297, %v738, 0.0
    %v775 = vrot.slane %v774, 4
    %v776 = vadd.f32 %v774, %v775
    %v777 = vrot.slane %v776, 2
    %v778 = vadd.f32 %v776, %v777
    %v779 = vrot.slane %v778, 1
    %v780 = vadd.f32 %v778, %v779
    %v781 = vsel %vm297, %v740, 0.0
    %v782 = vrot.slane %v781, 4
    %v783 = vadd.f32 %v781, %v782
    %v784 = vrot.slane %v783, 2
    %v785 = vadd.f32 %v783, %v784
    %v786 = vrot.slane %v785, 1
    %v787 = vadd.f32 %v785, %v786
    %v788 = vsel %vm297, %v742, 0.0
    %v789 = vrot.slane %v788, 4
    %v790 = vadd.f32 %v788, %v789
    %v791 = vrot.slane %v790, 2
    %v792 = vadd.f32 %v790, %v791
    %v793 = vrot.slane %v792, 1
    %v794 = vadd.f32 %v792, %v793
    %v795 = vsel %vm297, %v744, 0.0
    %v796 = vrot.slane %v795, 4
    %v797 = vadd.f32 %v795, %v796
    %v798 = vrot.slane %v797, 2
    %v799 = vadd.f32 %v797, %v798
    %v800 = vrot.slane %v799, 1
    %v801 = vadd.f32 %v799, %v800
    %v802 = vsel %vm297, %v746, 0.0
    %v803 = vrot.slane %v802, 4
    %v804 = vadd.f32 %v802, %v803
    %v805 = vrot.slane %v804, 2
    %v806 = vadd.f32 %v804, %v805
    %v807 = vrot.slane %v806, 1
    %v808 = vadd.f32 %v806, %v807
    %v809 = vsel %vm297, %v748, 0.0
    %v810 = vrot.slane %v809, 4
    %v811 = vadd.f32 %v809, %v810
    %v812 = vrot.slane %v811, 2
    %v813 = vadd.f32 %v811, %v812
    %v814 = vrot.slane %v813, 1
    %v815 = vadd.f32 %v813, %v814
    %v816 = vsel %vm297, %v750, 0.0
    %v817 = vrot.slane %v816, 4
    %v818 = vadd.f32 %v816, %v817
    %v819 = vrot.slane %v818, 2
    %v820 = vadd.f32 %v818, %v819
    %v821 = vrot.slane %v820, 1
    %v822 = vadd.f32 %v820, %v821
    %v823 = vsel %vm297, %v752, 0.0
    %v824 = vrot.slane %v823, 4
    %v825 = vadd.f32 %v823, %v824
    %v826 = vrot.slane %v825, 2
    %v827 = vadd.f32 %v825, %v826
    %v828 = vrot.slane %v827, 1
    %v829 = vadd.f32 %v827, %v828
    %v830 = vsel %vm297, %v754, 0.0
    %v831 = vrot.slane %v830, 4
    %v832 = vadd.f32 %v830, %v831
    %v833 = vrot.slane %v832, 2
    %v834 = vadd.f32 %v832, %v833
    %v835 = vrot.slane %v834, 1
    %v836 = vadd.f32 %v834, %v835
    %v837 = vsel %vm297, %v756, 0.0
    %v838 = vrot.slane %v837, 4
    %v839 = vadd.f32 %v837, %v838
    %v840 = vrot.slane %v839, 2
    %v841 = vadd.f32 %v839, %v840
    %v842 = vrot.slane %v841, 1
    %v843 = vadd.f32 %v841, %v842
    %v844 = vsel %vm297, %v758, 0.0
    %v845 = vrot.slane %v844, 4
    %v846 = vadd.f32 %v844, %v845
    %v847 = vrot.slane %v846, 2
    %v848 = vadd.f32 %v846, %v847
    %v849 = vrot.slane %v848, 1
    %v850 = vadd.f32 %v848, %v849
    %v851 = vsel %vm297, %v760, 0.0
    %v852 = vrot.slane %v851, 4
    %v853 = vadd.f32 %v851, %v852
    %v854 = vrot.slane %v853, 2
    %v855 = vadd.f32 %v853, %v854
    %v856 = vrot.slane %v855, 1
    %v857 = vadd.f32 %v855, %v856
    %v858 = vsel %vm297, %v762, 0.0
    %v859 = vrot.slane %v858, 4
    %v860 = vadd.f32 %v858, %v859
    %v861 = vrot.slane %v860, 2
    %v862 = vadd.f32 %v860, %v861
    %v863 = vrot.slane %v862, 1
    %v864 = vadd.f32 %v862, %v863
    %v865 = vsel %vm297, %v764, 0.0
    %v866 = vrot.slane %v865, 4
    %v867 = vadd.f32 %v865, %v866
    %v868 = vrot.slane %v867, 2
    %v869 = vadd.f32 %v867, %v868
    %v870 = vrot.slane %v869, 1
    %v871 = vadd.f32 %v869, %v870
    %v872 = vsel %vm297, %v766, 0.0
    %v873 = vrot.slane %v872, 4
    %v874 = vadd.f32 %v872, %v873
    %v875 = vrot.slane %v874, 2
    %v876 = vadd.f32 %v874, %v875
    %v877 = vrot.slane %v876, 1
    %v878 = vadd.f32 %v876, %v877
    %v879 = vrcp.pop %v773
    %v880 = vmul.f32 %v736, %v879
    %v881 = vrcp.pop %v780
    %v882 = vmul.f32 %v738, %v881
    %v883 = vrcp.pop %v787
    %v884 = vmul.f32 %v740, %v883
    %v885 = vrcp.pop %v794
    %v886 = vmul.f32 %v742, %v885
    %v887 = vrcp.pop %v801
    %v888 = vmul.f32 %v744, %v887
    %v889 = vrcp.pop %v808
    %v890 = vmul.f32 %v746, %v889
    %v891 = vrcp.pop %v815
    %v892 = vmul.f32 %v748, %v891
    %v893 = vrcp.pop %v822
    %v894 = vmul.f32 %v750, %v893
    %v895 = vrcp.pop %v829
    %v896 = vmul.f32 %v752, %v895
    %v897 = vrcp.pop %v836
    %v898 = vmul.f32 %v754, %v897
    %v899 = vrcp.pop %v843
    %v900 = vmul.f32 %v756, %v899
    %v901 = vrcp.pop %v850
    %v902 = vmul.f32 %v758, %v901
    %v903 = vrcp.pop %v857
    %v904 = vmul.f32 %v760, %v903
    %v905 = vrcp.pop %v864
    %v906 = vmul.f32 %v762, %v905
    %v907 = vrcp.pop %v871
    %v908 = vmul.f32 %v764, %v907
    %v909 = vrcp.pop %v878
    %v910 = vmul.f32 %v766, %v909
    %911 = vst.msk [vmem:[#allocation26] sm:$0xff] %vm297, %v880
    %912 = vst.msk [vmem:[#allocation26 + $0x8] sm:$0xff] %vm297, %v882
    %913 = vst.msk [vmem:[#allocation26 + $0x10] sm:$0xff] %vm297, %v884
    %914 = vst.msk [vmem:[#allocation26 + $0x18] sm:$0xff] %vm297, %v886
    %915 = vst.msk [vmem:[#allocation26 + $0x20] sm:$0xff] %vm297, %v888
    %916 = vst.msk [vmem:[#allocation26 + $0x28] sm:$0xff] %vm297, %v890
    %917 = vst.msk [vmem:[#allocation26 + $0x30] sm:$0xff] %vm297, %v892
    %918 = vst.msk [vmem:[#allocation26 + $0x38] sm:$0xff] %vm297, %v894
    %919 = vst.msk [vmem:[#allocation26 + $0x40] sm:$0xff] %vm297, %v896
    %920 = vst.msk [vmem:[#allocation26 + $0x48] sm:$0xff] %vm297, %v898
    %921 = vst.msk [vmem:[#allocation26 + $0x50] sm:$0xff] %vm297, %v900
    %922 = vst.msk [vmem:[#allocation26 + $0x58] sm:$0xff] %vm297, %v902
    %923 = vst.msk [vmem:[#allocation26 + $0x60] sm:$0xff] %vm297, %v904
    %924 = vst.msk [vmem:[#allocation26 + $0x68] sm:$0xff] %vm297, %v906
    %925 = vst.msk [vmem:[#allocation26 + $0x70] sm:$0xff] %vm297, %v908
    %926 = vst.msk [vmem:[#allocation26 + $0x78] sm:$0xff] %vm297, %v910
    %927 = vrot.lane.b32.xlu0 %v371, 64
    %v928 = vpop.permute.xlu0 %927
    %929 = vrot.lane.b32.xlu0 %v376, 64
    %v930 = vpop.permute.xlu0 %929
    %v933 = vmul.f32 %v880, %v928
    %v934 = vmul.f32 %v882, %v928
    %v935 = vmul.f32 %v884, %v928
    %v936 = vmul.f32 %v886, %v928
    %v937 = vmul.f32 %v888, %v928
    %v938 = vmul.f32 %v890, %v928
    %v939 = vmul.f32 %v892, %v928
    %v940 = vmul.f32 %v894, %v928
    %v941 = vmul.f32 %v896, %v930
    %v942 = vmul.f32 %v898, %v930
    %v943 = vmul.f32 %v900, %v930
    %v944 = vmul.f32 %v902, %v930
    %v945 = vmul.f32 %v904, %v930
    %v946 = vmul.f32 %v906, %v930
    %v947 = vmul.f32 %v908, %v930
    %v948 = vmul.f32 %v910, %v930
    %v949 = vsel %vm297, %v933, 0.0
    %v950 = vrot.slane %v949, 4
    %v951 = vadd.f32 %v949, %v950
    %v952 = vrot.slane %v951, 2
    %v953 = vadd.f32 %v951, %v952
    %v954 = vrot.slane %v953, 1
    %v955 = vadd.f32 %v953, %v954
    %v956 = vsel %vm297, %v934, 0.0
    %v957 = vrot.slane %v956, 4
    %v958 = vadd.f32 %v956, %v957
    %v959 = vrot.slane %v958, 2
    %v960 = vadd.f32 %v958, %v959
    %v961 = vrot.slane %v960, 1
    %v962 = vadd.f32 %v960, %v961
    %v963 = vsel %vm297, %v935, 0.0
    %v964 = vrot.slane %v963, 4
    %v965 = vadd.f32 %v963, %v964
    %v966 = vrot.slane %v965, 2
    %v967 = vadd.f32 %v965, %v966
    %v968 = vrot.slane %v967, 1
    %v969 = vadd.f32 %v967, %v968
    %v970 = vsel %vm297, %v936, 0.0
    %v971 = vrot.slane %v970, 4
    %v972 = vadd.f32 %v970, %v971
    %v973 = vrot.slane %v972, 2
    %v974 = vadd.f32 %v972, %v973
    %v975 = vrot.slane %v974, 1
    %v976 = vadd.f32 %v974, %v975
    %v977 = vsel %vm297, %v937, 0.0
    %v978 = vrot.slane %v977, 4
    %v979 = vadd.f32 %v977, %v978
    %v980 = vrot.slane %v979, 2
    %v981 = vadd.f32 %v979, %v980
    %v982 = vrot.slane %v981, 1
    %v983 = vadd.f32 %v981, %v982
    %v984 = vsel %vm297, %v938, 0.0
    %v985 = vrot.slane %v984, 4
    %v986 = vadd.f32 %v984, %v985
    %v987 = vrot.slane %v986, 2
    %v988 = vadd.f32 %v986, %v987
    %v989 = vrot.slane %v988, 1
    %v990 = vadd.f32 %v988, %v989
    %v991 = vsel %vm297, %v939, 0.0
    %v992 = vrot.slane %v991, 4
    %v993 = vadd.f32 %v991, %v992
    %v994 = vrot.slane %v993, 2
    %v995 = vadd.f32 %v993, %v994
    %v996 = vrot.slane %v995, 1
    %v997 = vadd.f32 %v995, %v996
    %v998 = vsel %vm297, %v940, 0.0
    %v999 = vrot.slane %v998, 4
    %v1000 = vadd.f32 %v998, %v999
    %v1001 = vrot.slane %v1000, 2
    %v1002 = vadd.f32 %v1000, %v1001
    %v1003 = vrot.slane %v1002, 1
    %v1004 = vadd.f32 %v1002, %v1003
    %v1005 = vsel %vm297, %v941, 0.0
    %v1006 = vrot.slane %v1005, 4
    %v1007 = vadd.f32 %v1005, %v1006
    %v1008 = vrot.slane %v1007, 2
    %v1009 = vadd.f32 %v1007, %v1008
    %v1010 = vrot.slane %v1009, 1
    %v1011 = vadd.f32 %v1009, %v1010
    %v1012 = vsel %vm297, %v942, 0.0
    %v1013 = vrot.slane %v1012, 4
    %v1014 = vadd.f32 %v1012, %v1013
    %v1015 = vrot.slane %v1014, 2
    %v1016 = vadd.f32 %v1014, %v1015
    %v1017 = vrot.slane %v1016, 1
    %v1018 = vadd.f32 %v1016, %v1017
    %v1019 = vsel %vm297, %v943, 0.0
    %v1020 = vrot.slane %v1019, 4
    %v1021 = vadd.f32 %v1019, %v1020
    %v1022 = vrot.slane %v1021, 2
    %v1023 = vadd.f32 %v1021, %v1022
    %v1024 = vrot.slane %v1023, 1
    %v1025 = vadd.f32 %v1023, %v1024
    %v1026 = vsel %vm297, %v944, 0.0
    %v1027 = vrot.slane %v1026, 4
    %v1028 = vadd.f32 %v1026, %v1027
    %v1029 = vrot.slane %v1028, 2
    %v1030 = vadd.f32 %v1028, %v1029
    %v1031 = vrot.slane %v1030, 1
    %v1032 = vadd.f32 %v1030, %v1031
    %v1033 = vsel %vm297, %v945, 0.0
    %v1034 = vrot.slane %v1033, 4
    %v1035 = vadd.f32 %v1033, %v1034
    %v1036 = vrot.slane %v1035, 2
    %v1037 = vadd.f32 %v1035, %v1036
    %v1038 = vrot.slane %v1037, 1
    %v1039 = vadd.f32 %v1037, %v1038
    %v1040 = vsel %vm297, %v946, 0.0
    %v1041 = vrot.slane %v1040, 4
    %v1042 = vadd.f32 %v1040, %v1041
    %v1043 = vrot.slane %v1042, 2
    %v1044 = vadd.f32 %v1042, %v1043
    %v1045 = vrot.slane %v1044, 1
    %v1046 = vadd.f32 %v1044, %v1045
    %v1047 = vsel %vm297, %v947, 0.0
    %v1048 = vrot.slane %v1047, 4
    %v1049 = vadd.f32 %v1047, %v1048
    %v1050 = vrot.slane %v1049, 2
    %v1051 = vadd.f32 %v1049, %v1050
    %v1052 = vrot.slane %v1051, 1
    %v1053 = vadd.f32 %v1051, %v1052
    %v1054 = vsel %vm297, %v948, 0.0
    %v1055 = vrot.slane %v1054, 4
    %v1056 = vadd.f32 %v1054, %v1055
    %v1057 = vrot.slane %v1056, 2
    %v1058 = vadd.f32 %v1056, %v1057
    %v1059 = vrot.slane %v1058, 1
    %v1060 = vadd.f32 %v1058, %v1059
    %v1061 = vld [vmem:[%s9] sm:$0xff]
    %v1062 = vld [vmem:[%s9 + $0x8] sm:$0xff]
    %v1063 = vld [vmem:[%s9 + $0x10] sm:$0xff]
    %v1064 = vld [vmem:[%s9 + $0x18] sm:$0xff]
    %v1065 = vld [vmem:[#allocation5] sm:$0x1]
    %v1067 = vlaneseq
    %v1068 = vshrl.u32 %v1067, 7
    %v1069 = vsub.s32 0, %v1068
    %v1070 = vrot.slane %v1065, %v1069
    %vm1088 = vcmask 1041409
    %v1089 = vsel %vm1088, %v962, %v955
    %vm1090 = vcmask 1042434
    %v1091 = vsel %vm1090, %v969, %v1089
    %vm1092 = vcmask 1043459
    %v1093 = vsel %vm1092, %v976, %v1091
    %vm1094 = vcmask 1044484
    %v1095 = vsel %vm1094, %v983, %v1093
    %vm1096 = vcmask 1045509
    %v1097 = vsel %vm1096, %v990, %v1095
    %vm1098 = vcmask 1046534
    %v1099 = vsel %vm1098, %v997, %v1097
    %vm1100 = vcmask 1047559
    %v1101 = vsel %vm1100, %v1004, %v1099
    %v1102 = vsel %vm1088, %v1018, %v1011
    %v1103 = vsel %vm1090, %v1025, %v1102
    %v1104 = vsel %vm1092, %v1032, %v1103
    %v1105 = vsel %vm1094, %v1039, %v1104
    %v1106 = vsel %vm1096, %v1046, %v1105
    %v1107 = vsel %vm1098, %v1053, %v1106
    %v1108 = vsel %vm1100, %v1060, %v1107
    %v1109 = vsel %vm297, %v1101, 0
    %v1111 = vsel %vm297, %v1108, 0
    %1113 = vmatprep.subr.mxu0 0.0
    %1114 = vmatpush1.msra.mxu0 %v1061
    %1115 = vmatprep.subr.mxu0 0.0
    %1116 = vmatpush1.msra.mxu0 %v1062
    %1117 = vmatprep.subr.mxu0 0.0
    %1118 = vmatpush1.msra.mxu0 %v1063
    %1119 = vmatprep.subr.mxu0 0.0
    %1120 = vmatpush1.msra.mxu0 %v1064
    %1121 = vmatprep.subr.mxu0 0.0
    %1122 = vmatpush1.msra.mxu0 0.0
    %1123 = vmatprep.subr.mxu0 0.0
    %1124 = vmatpush1.msra.mxu0 0.0
    %1125 = vmatprep.subr.mxu0 0.0
    %1126 = vmatpush1.msra.mxu0 0.0
    %1127 = vmatprep.subr.mxu0 0.0
    %1128 = vmatpush1.msra.mxu0 0.0
    %1129 = vmatprep.subr.mxu0 0.0
    %1130 = vmatpush1.msra.mxu0 0.0
    %1131 = vmatprep.subr.mxu0 0.0
    %1132 = vmatpush1.msra.mxu0 0.0
    %1133 = vmatprep.subr.mxu0 0.0
    %1134 = vmatpush1.msra.mxu0 0.0
    %1135 = vmatprep.subr.mxu0 0.0
    %1136 = vmatpush1.msra.mxu0 0.0
    %1137 = vmatprep.subr.mxu0 0.0
    %1138 = vmatpush1.msra.mxu0 0.0
    %1139 = vmatprep.subr.mxu0 0.0
    %1140 = vmatpush1.msra.mxu0 0.0
    %1141 = vmatprep.subr.mxu0 0.0
    %1142 = vmatpush1.msra.mxu0 0.0
    %1143 = vmatprep.subr.mxu0 0.0
    %1144 = vmatpush1.msra.mxu0 0.0
    %1145 = vmatprep.subr.mxu0 0.0
    %1146 = vmatpush1.msra.mxu0 0.0
    %1147 = vmatprep.subr.mxu0 0.0
    %1148 = vmatpush1.msra.mxu0 0.0
    %1149 = vmatprep.subr.mxu0 0.0
    %1150 = vmatpush1.msra.mxu0 0.0
    %1151 = vmatprep.subr.mxu0 0.0
    %1152 = vmatpush1.msra.mxu0 0.0
    %1153 = vmatprep.subr.mxu0 0.0
    %1154 = vmatpush1.msra.mxu0 0.0
    %1155 = vmatprep.subr.mxu0 0.0
    %1156 = vmatpush1.msra.mxu0 0.0
    %1157 = vmatprep.subr.mxu0 0.0
    %1158 = vmatpush1.msra.mxu0 0.0
    %1159 = vmatprep.subr.mxu0 0.0
    %1160 = vmatpush1.msra.mxu0 0.0
    %1161 = vmatprep.subr.mxu0 0.0
    %1162 = vmatpush1.msra.mxu0 0.0
    %1163 = vmatprep.subr.mxu0 0.0
    %1164 = vmatpush1.msra.mxu0 0.0
    %1165 = vmatprep.subr.mxu0 0.0
    %1166 = vmatpush1.msra.mxu0 0.0
    %1167 = vmatprep.subr.mxu0 0.0
    %1168 = vmatpush1.msra.mxu0 0.0
    %1169 = vmatprep.subr.mxu0 0.0
    %1170 = vmatpush1.msra.mxu0 0.0
    %1171 = vmatprep.subr.mxu0 0.0
    %1172 = vmatpush1.msra.mxu0 0.0
    %1173 = vmatprep.subr.mxu0 0.0
    %1174 = vmatpush1.msra.mxu0 0.0
    %1175 = vmatprep.subr.mxu0 0.0
    %1176 = vmatpush1.msra.mxu0 0.0
    %1177 = vmatprep.mubr.f32.mxu0 0.0
    %1178 = vmatmul.mubr.f32.gmra.mrb[0].mxu0 %v1109
    %v1179 = vpop.f32.mrb[0].mxu0
    %v1180 = vadd.f32 %v1070, %v1179
    %v1181 = vpop.f32.mrb[0].mxu0
    %1182 = vmatprep.mubr.f32.mxu0 0.0
    %1183 = vmatmul.mubr.f32.gmra.mrb[0].mxu0 %v1111
    %v1184 = vpop.f32.mrb[0].mxu0
    %v1185 = vadd.f32 %v1070, %v1184
    %v1186 = vpop.f32.mrb[0].mxu0
    %1187 = vdwg.mxu0
    %v1188 = vadd.f32 %v280, %v1180
    %v1189 = vadd.f32 %v281, %v1185
    %v1190 = vsel %vm297, %v1188, 0.0
    %1191 = vadd.xlane.f32.xlu0 %v1190
    %v1192 = vpop.xlane.xlu0 %1191
    %v1193 = vsel %vm297, %v1189, 0.0
    %1194 = vadd.xlane.f32.xlu0 %v1193
    %v1195 = vpop.xlane.xlu0 %1194
    %v1196 = vrcp.pop 32.0
    %v1197 = vmul.f32 %v1192, %v1196
    %v1198 = vmul.f32 %v1195, %v1196
    %v1199 = vsub.f32 %v1188, %v1197
    %v1200 = vsub.f32 %v1189, %v1198
    %v1201 = vmul.f32 %v1199, %v1199
    %v1202 = vmul.f32 %v1200, %v1200
    %v1203 = vsel %vm297, %v1201, 0.0
    %1204 = vadd.xlane.f32.xlu0 %v1203
    %v1205 = vpop.xlane.xlu0 %1204
    %v1206 = vsel %vm297, %v1202, 0.0
    %1207 = vadd.xlane.f32.xlu0 %v1206
    %v1208 = vpop.xlane.xlu0 %1207
    %v1209 = vmul.f32 %v1205, %v1196
    %v1210 = vmul.f32 %v1208, %v1196
    %v1211 = vadd.f32 %v1209, 1e-12
    %v1212 = vadd.f32 %v1210, 1e-12
    %v1213 = vrsqrt.pop %v1211
    %v1214 = vrsqrt.pop %v1212
    %v1215 = vmul.f32 %v1199, %v1213
    %v1216 = vmul.f32 %v1200, %v1214
    %v1217 = vld [vmem:[#allocation7] sm:$0x1]
    %v1219 = vlaneseq
    %v1220 = vshrl.u32 %v1219, 7
    %v1221 = vsub.s32 0, %v1220
    %v1222 = vrot.slane %v1217, %v1221
    %v1224 = vmul.f32 %v1215, %v1222
    %v1225 = vmul.f32 %v1216, %v1222
    %v1226 = vld [vmem:[#allocation8] sm:$0x1]
    %v1228 = vlaneseq
    %v1229 = vshrl.u32 %v1228, 7
    %v1230 = vsub.s32 0, %v1229
    %v1231 = vrot.slane %v1226, %v1230
    %v1233 = vadd.f32 %v1224, %v1231
    %v1234 = vadd.f32 %v1225, %v1231
    %v1235 = vld [vmem:[%s17] sm:$0xff]
    %v1236 = vld [vmem:[%s17 + $0x8] sm:$0xff]
    %v1237 = vld [vmem:[%s17 + $0x10] sm:$0xff]
    %v1238 = vld [vmem:[%s17 + $0x18] sm:$0xff]
    %v1239 = vld [vmem:[#allocation10] sm:$0x1]
    %v1241 = vlaneseq
    %v1242 = vshrl.u32 %v1241, 7
    %v1243 = vsub.s32 0, %v1242
    %v1244 = vrot.slane %v1239, %v1243
    %v1247 = vsel %vm297, %v1233, 0
    %v1250 = vsel %vm297, %v1234, 0
    %1252 = vmatprep.subr.mxu0 0.0
    %1253 = vmatpush1.msra.mxu0 %v1235
    %1254 = vmatprep.subr.mxu0 0.0
    %1255 = vmatpush1.msra.mxu0 %v1236
    %1256 = vmatprep.subr.mxu0 0.0
    %1257 = vmatpush1.msra.mxu0 %v1237
    %1258 = vmatprep.subr.mxu0 0.0
    %1259 = vmatpush1.msra.mxu0 %v1238
    %1260 = vmatprep.subr.mxu0 0.0
    %1261 = vmatpush1.msra.mxu0 0.0
    %1262 = vmatprep.subr.mxu0 0.0
    %1263 = vmatpush1.msra.mxu0 0.0
    %1264 = vmatprep.subr.mxu0 0.0
    %1265 = vmatpush1.msra.mxu0 0.0
    %1266 = vmatprep.subr.mxu0 0.0
    %1267 = vmatpush1.msra.mxu0 0.0
    %1268 = vmatprep.subr.mxu0 0.0
    %1269 = vmatpush1.msra.mxu0 0.0
    %1270 = vmatprep.subr.mxu0 0.0
    %1271 = vmatpush1.msra.mxu0 0.0
    %1272 = vmatprep.subr.mxu0 0.0
    %1273 = vmatpush1.msra.mxu0 0.0
    %1274 = vmatprep.subr.mxu0 0.0
    %1275 = vmatpush1.msra.mxu0 0.0
    %1276 = vmatprep.subr.mxu0 0.0
    %1277 = vmatpush1.msra.mxu0 0.0
    %1278 = vmatprep.subr.mxu0 0.0
    %1279 = vmatpush1.msra.mxu0 0.0
    %1280 = vmatprep.subr.mxu0 0.0
    %1281 = vmatpush1.msra.mxu0 0.0
    %1282 = vmatprep.subr.mxu0 0.0
    %1283 = vmatpush1.msra.mxu0 0.0
    %1284 = vmatprep.subr.mxu0 0.0
    %1285 = vmatpush1.msra.mxu0 0.0
    %1286 = vmatprep.subr.mxu0 0.0
    %1287 = vmatpush1.msra.mxu0 0.0
    %1288 = vmatprep.subr.mxu0 0.0
    %1289 = vmatpush1.msra.mxu0 0.0
    %1290 = vmatprep.subr.mxu0 0.0
    %1291 = vmatpush1.msra.mxu0 0.0
    %1292 = vmatprep.subr.mxu0 0.0
    %1293 = vmatpush1.msra.mxu0 0.0
    %1294 = vmatprep.subr.mxu0 0.0
    %1295 = vmatpush1.msra.mxu0 0.0
    %1296 = vmatprep.subr.mxu0 0.0
    %1297 = vmatpush1.msra.mxu0 0.0
    %1298 = vmatprep.subr.mxu0 0.0
    %1299 = vmatpush1.msra.mxu0 0.0
    %1300 = vmatprep.subr.mxu0 0.0
    %1301 = vmatpush1.msra.mxu0 0.0
    %1302 = vmatprep.subr.mxu0 0.0
    %1303 = vmatpush1.msra.mxu0 0.0
    %1304 = vmatprep.subr.mxu0 0.0
    %1305 = vmatpush1.msra.mxu0 0.0
    %1306 = vmatprep.subr.mxu0 0.0
    %1307 = vmatpush1.msra.mxu0 0.0
    %1308 = vmatprep.subr.mxu0 0.0
    %1309 = vmatpush1.msra.mxu0 0.0
    %1310 = vmatprep.subr.mxu0 0.0
    %1311 = vmatpush1.msra.mxu0 0.0
    %1312 = vmatprep.subr.mxu0 0.0
    %1313 = vmatpush1.msra.mxu0 0.0
    %1314 = vmatprep.subr.mxu0 0.0
    %1315 = vmatpush1.msra.mxu0 0.0
    %1316 = vmatprep.mubr.f32.mxu0 0.0
    %1317 = vmatmul.mubr.f32.gmra.mrb[0].mxu0 %v1247
    %v1318 = vpop.f32.mrb[0].mxu0
    %v1319 = vadd.f32 %v1244, %v1318
    %v1320 = vpop.f32.mrb[0].mxu0
    %1321 = vmatprep.mubr.f32.mxu0 0.0
    %1322 = vmatmul.mubr.f32.gmra.mrb[0].mxu0 %v1250
    %v1323 = vpop.f32.mrb[0].mxu0
    %v1324 = vadd.f32 %v1244, %v1323
    %v1325 = vpop.f32.mrb[0].mxu0
    %1326 = vdwg.mxu0
    %v1327 = vmul.f32 %v1319, 0.5
    %v1328 = vmul.f32 %v1324, 0.5
    %v1329 = vmul.f32 %v1319, 0.70710677
    %v1330 = vmul.f32 %v1324, 0.70710677
    %v1331 = verf.f32.pop %v1329
    %v1332 = verf.f32.pop %v1330
    %v1333 = vadd.f32 %v1331, 1.0
    %v1334 = vadd.f32 %v1332, 1.0
    %v1335 = vmul.f32 %v1327, %v1333
    %v1336 = vmul.f32 %v1328, %v1334
    %v1337 = vld [vmem:[%s21] sm:$0xff]
    %v1338 = vld [vmem:[%s21 + $0x8] sm:$0xff]
    %v1339 = vld [vmem:[%s21 + $0x10] sm:$0xff]
    %v1340 = vld [vmem:[%s21 + $0x18] sm:$0xff]
    %v1341 = vld [vmem:[%s21 + $0x20] sm:$0xff]
    %v1342 = vld [vmem:[%s21 + $0x28] sm:$0xff]
    %v1343 = vld [vmem:[%s21 + $0x30] sm:$0xff]
    %v1344 = vld [vmem:[%s21 + $0x38] sm:$0xff]
    %v1345 = vld [vmem:[#allocation11] sm:$0x1]
    %v1347 = vlaneseq
    %v1348 = vshrl.u32 %v1347, 7
    %v1349 = vsub.s32 0, %v1348
    %v1350 = vrot.slane %v1345, %v1349
    %vm1352 = vcmask 523264
    %v1354 = vsel %vm1352, %v1335, 0
    %v1357 = vsel %vm1352, %v1336, 0
    %1359 = vmatprep.subr.mxu0 0.0
    %1360 = vmatpush1.msra.mxu0 %v1337
    %1361 = vmatprep.subr.mxu0 0.0
    %1362 = vmatpush1.msra.mxu0 %v1338
    %1363 = vmatprep.subr.mxu0 0.0
    %1364 = vmatpush1.msra.mxu0 %v1339
    %1365 = vmatprep.subr.mxu0 0.0
    %1366 = vmatpush1.msra.mxu0 %v1340
    %1367 = vmatprep.subr.mxu0 0.0
    %1368 = vmatpush1.msra.mxu0 %v1341
    %1369 = vmatprep.subr.mxu0 0.0
    %1370 = vmatpush1.msra.mxu0 %v1342
    %1371 = vmatprep.subr.mxu0 0.0
    %1372 = vmatpush1.msra.mxu0 %v1343
    %1373 = vmatprep.subr.mxu0 0.0
    %1374 = vmatpush1.msra.mxu0 %v1344
    %1375 = vmatprep.subr.mxu0 0.0
    %1376 = vmatpush1.msra.mxu0 0.0
    %1377 = vmatprep.subr.mxu0 0.0
    %1378 = vmatpush1.msra.mxu0 0.0
    %1379 = vmatprep.subr.mxu0 0.0
    %1380 = vmatpush1.msra.mxu0 0.0
    %1381 = vmatprep.subr.mxu0 0.0
    %1382 = vmatpush1.msra.mxu0 0.0
    %1383 = vmatprep.subr.mxu0 0.0
    %1384 = vmatpush1.msra.mxu0 0.0
    %1385 = vmatprep.subr.mxu0 0.0
    %1386 = vmatpush1.msra.mxu0 0.0
    %1387 = vmatprep.subr.mxu0 0.0
    %1388 = vmatpush1.msra.mxu0 0.0
    %1389 = vmatprep.subr.mxu0 0.0
    %1390 = vmatpush1.msra.mxu0 0.0
    %1391 = vmatprep.subr.mxu0 0.0
    %1392 = vmatpush1.msra.mxu0 0.0
    %1393 = vmatprep.subr.mxu0 0.0
    %1394 = vmatpush1.msra.mxu0 0.0
    %1395 = vmatprep.subr.mxu0 0.0
    %1396 = vmatpush1.msra.mxu0 0.0
    %1397 = vmatprep.subr.mxu0 0.0
    %1398 = vmatpush1.msra.mxu0 0.0
    %1399 = vmatprep.subr.mxu0 0.0
    %1400 = vmatpush1.msra.mxu0 0.0
    %1401 = vmatprep.subr.mxu0 0.0
    %1402 = vmatpush1.msra.mxu0 0.0
    %1403 = vmatprep.subr.mxu0 0.0
    %1404 = vmatpush1.msra.mxu0 0.0
    %1405 = vmatprep.subr.mxu0 0.0
    %1406 = vmatpush1.msra.mxu0 0.0
    %1407 = vmatprep.subr.mxu0 0.0
    %1408 = vmatpush1.msra.mxu0 0.0
    %1409 = vmatprep.subr.mxu0 0.0
    %1410 = vmatpush1.msra.mxu0 0.0
    %1411 = vmatprep.subr.mxu0 0.0
    %1412 = vmatpush1.msra.mxu0 0.0
    %1413 = vmatprep.subr.mxu0 0.0
    %1414 = vmatpush1.msra.mxu0 0.0
    %1415 = vmatprep.subr.mxu0 0.0
    %1416 = vmatpush1.msra.mxu0 0.0
    %1417 = vmatprep.subr.mxu0 0.0
    %1418 = vmatpush1.msra.mxu0 0.0
    %1419 = vmatprep.subr.mxu0 0.0
    %1420 = vmatpush1.msra.mxu0 0.0
    %1421 = vmatprep.subr.mxu0 0.0
    %1422 = vmatpush1.msra.mxu0 0.0
    %1423 = vmatprep.mubr.f32.mxu0 0.0
    %1424 = vmatmul.mubr.f32.gmra.mrb[0].mxu0 %v1354
    %v1425 = vpop.f32.mrb[0].mxu0
    %v1426 = vadd.f32 %v1350, %v1425
    %v1427 = vpop.f32.mrb[0].mxu0
    %1428 = vmatprep.mubr.f32.mxu0 0.0
    %1429 = vmatmul.mubr.f32.gmra.mrb[0].mxu0 %v1357
    %v1430 = vpop.f32.mrb[0].mxu0
    %v1431 = vadd.f32 %v1350, %v1430
    %v1432 = vpop.f32.mrb[0].mxu0
    %1433 = vdwg.mxu0
    %v1434 = vadd.f32 %v1426, %v1233
    %v1435 = vadd.f32 %v1431, %v1234
    %v1436 = vsel %vm297, %v1434, 0.0
    %1437 = vadd.xlane.f32.xlu0 %v1436
    %v1438 = vpop.xlane.xlu0 %1437
    %v1439 = vsel %vm297, %v1435, 0.0
    %1440 = vadd.xlane.f32.xlu0 %v1439
    %v1441 = vpop.xlane.xlu0 %1440
    %v1442 = vmul.f32 %v1438, %v1196
    %v1443 = vmul.f32 %v1441, %v1196
    %v1444 = vsub.f32 %v1434, %v1442
    %v1445 = vsub.f32 %v1435, %v1443
    %v1446 = vmul.f32 %v1444, %v1444
    %v1447 = vmul.f32 %v1445, %v1445
    %v1448 = vsel %vm297, %v1446, 0.0
    %1449 = vadd.xlane.f32.xlu0 %v1448
    %v1450 = vpop.xlane.xlu0 %1449
    %v1451 = vsel %vm297, %v1447, 0.0
    %1452 = vadd.xlane.f32.xlu0 %v1451
    %v1453 = vpop.xlane.xlu0 %1452
    %v1454 = vmul.f32 %v1450, %v1196
    %v1455 = vmul.f32 %v1453, %v1196
    %v1456 = vadd.f32 %v1454, 1e-12
    %v1457 = vadd.f32 %v1455, 1e-12
    %v1458 = vrsqrt.pop %v1456
    %v1459 = vrsqrt.pop %v1457
    %v1460 = vmul.f32 %v1444, %v1458
    %v1461 = vmul.f32 %v1445, %v1459
    %v1462 = vld [vmem:[#allocation13] sm:$0x1]
    %v1464 = vlaneseq
    %v1465 = vshrl.u32 %v1464, 7
    %v1466 = vsub.s32 0, %v1465
    %v1467 = vrot.slane %v1462, %v1466
    %v1469 = vmul.f32 %v1460, %v1467
    %v1470 = vmul.f32 %v1461, %v1467
    %v1471 = vld [vmem:[#allocation14] sm:$0x1]
    %v1473 = vlaneseq
    %v1474 = vshrl.u32 %v1473, 7
    %v1475 = vsub.s32 0, %v1474
    %v1476 = vrot.slane %v1471, %v1475
    %v1478 = vadd.f32 %v1469, %v1476
    %v1479 = vadd.f32 %v1470, %v1476
    %v1480 = vld [vmem:[%s29] sm:$0xff]
    %v1481 = vld [vmem:[%s29 + $0x8] sm:$0xff]
    %v1482 = vld [vmem:[%s29 + $0x10] sm:$0xff]
    %v1483 = vld [vmem:[%s29 + $0x18] sm:$0xff]
    %v1484 = vld [vmem:[#allocation16] sm:$0x1]
    %v1486 = vlaneseq
    %v1487 = vshrl.u32 %v1486, 7
    %v1488 = vsub.s32 0, %v1487
    %v1489 = vrot.slane %v1484, %v1488
    %v1492 = vsel %vm297, %v1478, 0
    %v1495 = vsel %vm297, %v1479, 0
    %1497 = vmatprep.subr.mxu0 0.0
    %1498 = vmatpush1.msra.mxu0 %v1480
    %1499 = vmatprep.subr.mxu0 0.0
    %1500 = vmatpush1.msra.mxu0 %v1481
    %1501 = vmatprep.subr.mxu0 0.0
    %1502 = vmatpush1.msra.mxu0 %v1482
    %1503 = vmatprep.subr.mxu0 0.0
    %1504 = vmatpush1.msra.mxu0 %v1483
    %1505 = vmatprep.subr.mxu0 0.0
    %1506 = vmatpush1.msra.mxu0 0.0
    %1507 = vmatprep.subr.mxu0 0.0
    %1508 = vmatpush1.msra.mxu0 0.0
    %1509 = vmatprep.subr.mxu0 0.0
    %1510 = vmatpush1.msra.mxu0 0.0
    %1511 = vmatprep.subr.mxu0 0.0
    %1512 = vmatpush1.msra.mxu0 0.0
    %1513 = vmatprep.subr.mxu0 0.0
    %1514 = vmatpush1.msra.mxu0 0.0
    %1515 = vmatprep.subr.mxu0 0.0
    %1516 = vmatpush1.msra.mxu0 0.0
    %1517 = vmatprep.subr.mxu0 0.0
    %1518 = vmatpush1.msra.mxu0 0.0
    %1519 = vmatprep.subr.mxu0 0.0
    %1520 = vmatpush1.msra.mxu0 0.0
    %1521 = vmatprep.subr.mxu0 0.0
    %1522 = vmatpush1.msra.mxu0 0.0
    %1523 = vmatprep.subr.mxu0 0.0
    %1524 = vmatpush1.msra.mxu0 0.0
    %1525 = vmatprep.subr.mxu0 0.0
    %1526 = vmatpush1.msra.mxu0 0.0
    %1527 = vmatprep.subr.mxu0 0.0
    %1528 = vmatpush1.msra.mxu0 0.0
    %1529 = vmatprep.subr.mxu0 0.0
    %1530 = vmatpush1.msra.mxu0 0.0
    %1531 = vmatprep.subr.mxu0 0.0
    %1532 = vmatpush1.msra.mxu0 0.0
    %1533 = vmatprep.subr.mxu0 0.0
    %1534 = vmatpush1.msra.mxu0 0.0
    %1535 = vmatprep.subr.mxu0 0.0
    %1536 = vmatpush1.msra.mxu0 0.0
    %1537 = vmatprep.subr.mxu0 0.0
    %1538 = vmatpush1.msra.mxu0 0.0
    %1539 = vmatprep.subr.mxu0 0.0
    %1540 = vmatpush1.msra.mxu0 0.0
    %1541 = vmatprep.subr.mxu0 0.0
    %1542 = vmatpush1.msra.mxu0 0.0
    %1543 = vmatprep.subr.mxu0 0.0
    %1544 = vmatpush1.msra.mxu0 0.0
    %1545 = vmatprep.subr.mxu0 0.0
    %1546 = vmatpush1.msra.mxu0 0.0
    %1547 = vmatprep.subr.mxu0 0.0
    %1548 = vmatpush1.msra.mxu0 0.0
    %1549 = vmatprep.subr.mxu0 0.0
    %1550 = vmatpush1.msra.mxu0 0.0
    %1551 = vmatprep.subr.mxu0 0.0
    %1552 = vmatpush1.msra.mxu0 0.0
    %1553 = vmatprep.subr.mxu0 0.0
    %1554 = vmatpush1.msra.mxu0 0.0
    %1555 = vmatprep.subr.mxu0 0.0
    %1556 = vmatpush1.msra.mxu0 0.0
    %1557 = vmatprep.subr.mxu0 0.0
    %1558 = vmatpush1.msra.mxu0 0.0
    %1559 = vmatprep.subr.mxu0 0.0
    %1560 = vmatpush1.msra.mxu0 0.0
    %1561 = vmatprep.mubr.f32.mxu0 0.0
    %1562 = vmatmul.mubr.f32.gmra.mrb[0].mxu0 %v1492
    %v1563 = vpop.f32.mrb[0].mxu0
    %v1564 = vadd.f32 %v1489, %v1563
    %v1565 = vpop.f32.mrb[0].mxu0
    %1566 = vmatprep.mubr.f32.mxu0 0.0
    %1567 = vmatmul.mubr.f32.gmra.mrb[0].mxu0 %v1495
    %v1568 = vpop.f32.mrb[0].mxu0
    %v1569 = vadd.f32 %v1489, %v1568
    %v1570 = vpop.f32.mrb[0].mxu0
    %1571 = vdwg.mxu0
    %v1574 = vcombine.high %v1564, %v1564
    %v1576 = vunpack.c.l.s4 1966171168
    %v1577 = vunpack.c.0.s8 %v1576
    %v1578 = vlaneseq
    %v1579 = vshrl.u32 %v1578, 7
    %v1580 = vsub.s32 %v1577, %v1579
    %v1581 = vrot.slane %v1564, %v1580
    %v1583 = vunpack.c.l.s4 1966171168
    %v1584 = vunpack.c.0.s8 %v1583
    %v1585 = vlaneseq
    %v1586 = vshrl.u32 %v1585, 7
    %v1587 = vsub.s32 %v1584, %v1586
    %v1588 = vrot.slane %v1574, %v1587
    %v1589 = vcombine.high %v1581, %v1581
    %v1590 = vcombine.high %v1588, %v1588
    %v1592 = vunpack.c.l.s4 1966171168
    %v1593 = vunpack.c.0.s8 %v1592
    %v1594 = vlaneseq
    %v1595 = vshrl.u32 %v1594, 7
    %v1596 = vsub.s32 %v1593, %v1595
    %v1597 = vrot.slane %v1581, %v1596
    %v1599 = vunpack.c.l.s4 1966171168
    %v1600 = vunpack.c.0.s8 %v1599
    %v1601 = vlaneseq
    %v1602 = vshrl.u32 %v1601, 7
    %v1603 = vsub.s32 %v1600, %v1602
    %v1604 = vrot.slane %v1588, %v1603
    %v1606 = vunpack.c.l.s4 1966171168
    %v1607 = vunpack.c.0.s8 %v1606
    %v1608 = vlaneseq
    %v1609 = vshrl.u32 %v1608, 7
    %v1610 = vsub.s32 %v1607, %v1609
    %v1611 = vrot.slane %v1589, %v1610
    %v1613 = vunpack.c.l.s4 1966171168
    %v1614 = vunpack.c.0.s8 %v1613
    %v1615 = vlaneseq
    %v1616 = vshrl.u32 %v1615, 7
    %v1617 = vsub.s32 %v1614, %v1616
    %v1618 = vrot.slane %v1590, %v1617
    %v1619 = vcombine.high %v1597, %v1597
    %v1620 = vcombine.high %v1604, %v1604
    %v1621 = vcombine.high %v1611, %v1611
    %v1622 = vcombine.high %v1618, %v1618
    %v1623 = vcombine.high %v1569, %v1569
    %v1625 = vunpack.c.l.s4 1966171168
    %v1626 = vunpack.c.0.s8 %v1625
    %v1627 = vlaneseq
    %v1628 = vshrl.u32 %v1627, 7
    %v1629 = vsub.s32 %v1626, %v1628
    %v1630 = vrot.slane %v1569, %v1629
    %v1632 = vunpack.c.l.s4 1966171168
    %v1633 = vunpack.c.0.s8 %v1632
    %v1634 = vlaneseq
    %v1635 = vshrl.u32 %v1634, 7
    %v1636 = vsub.s32 %v1633, %v1635
    %v1637 = vrot.slane %v1623, %v1636
    %v1638 = vcombine.high %v1630, %v1630
    %v1639 = vcombine.high %v1637, %v1637
    %v1641 = vunpack.c.l.s4 1966171168
    %v1642 = vunpack.c.0.s8 %v1641
    %v1643 = vlaneseq
    %v1644 = vshrl.u32 %v1643, 7
    %v1645 = vsub.s32 %v1642, %v1644
    %v1646 = vrot.slane %v1630, %v1645
    %v1648 = vunpack.c.l.s4 1966171168
    %v1649 = vunpack.c.0.s8 %v1648
    %v1650 = vlaneseq
    %v1651 = vshrl.u32 %v1650, 7
    %v1652 = vsub.s32 %v1649, %v1651
    %v1653 = vrot.slane %v1637, %v1652
    %v1655 = vunpack.c.l.s4 1966171168
    %v1656 = vunpack.c.0.s8 %v1655
    %v1657 = vlaneseq
    %v1658 = vshrl.u32 %v1657, 7
    %v1659 = vsub.s32 %v1656, %v1658
    %v1660 = vrot.slane %v1638, %v1659
    %v1662 = vunpack.c.l.s4 1966171168
    %v1663 = vunpack.c.0.s8 %v1662
    %v1664 = vlaneseq
    %v1665 = vshrl.u32 %v1664, 7
    %v1666 = vsub.s32 %v1663, %v1665
    %v1667 = vrot.slane %v1639, %v1666
    %v1668 = vcombine.high %v1646, %v1646
    %v1669 = vcombine.high %v1653, %v1653
    %v1670 = vcombine.high %v1660, %v1660
    %v1671 = vcombine.high %v1667, %v1667
    %v1672 = vlaneseq
    %v1673 = vshrl.u32 %v1672, 7
    %v1674 = vsub.s32 0, %v1673
    %v1675 = vrot.slane %v1597, %v1674
    %v1676 = vlaneseq
    %v1677 = vshrl.u32 %v1676, 7
    %v1678 = vsub.s32 0, %v1677
    %v1679 = vrot.slane %v1611, %v1678
    %v1680 = vlaneseq
    %v1681 = vshrl.u32 %v1680, 7
    %v1682 = vsub.s32 0, %v1681
    %v1683 = vrot.slane %v1619, %v1682
    %v1684 = vlaneseq
    %v1685 = vshrl.u32 %v1684, 7
    %v1686 = vsub.s32 0, %v1685
    %v1687 = vrot.slane %v1621, %v1686
    %v1688 = vlaneseq
    %v1689 = vshrl.u32 %v1688, 7
    %v1690 = vsub.s32 0, %v1689
    %v1691 = vrot.slane %v1604, %v1690
    %v1692 = vlaneseq
    %v1693 = vshrl.u32 %v1692, 7
    %v1694 = vsub.s32 0, %v1693
    %v1695 = vrot.slane %v1618, %v1694
    %v1696 = vlaneseq
    %v1697 = vshrl.u32 %v1696, 7
    %v1698 = vsub.s32 0, %v1697
    %v1699 = vrot.slane %v1620, %v1698
    %v1700 = vlaneseq
    %v1701 = vshrl.u32 %v1700, 7
    %v1702 = vsub.s32 0, %v1701
    %v1703 = vrot.slane %v1622, %v1702
    %v1704 = vlaneseq
    %v1705 = vshrl.u32 %v1704, 7
    %v1706 = vsub.s32 0, %v1705
    %v1707 = vrot.slane %v1646, %v1706
    %v1708 = vlaneseq
    %v1709 = vshrl.u32 %v1708, 7
    %v1710 = vsub.s32 0, %v1709
    %v1711 = vrot.slane %v1660, %v1710
    %v1712 = vlaneseq
    %v1713 = vshrl.u32 %v1712, 7
    %v1714 = vsub.s32 0, %v1713
    %v1715 = vrot.slane %v1668, %v1714
    %v1716 = vlaneseq
    %v1717 = vshrl.u32 %v1716, 7
    %v1718 = vsub.s32 0, %v1717
    %v1719 = vrot.slane %v1670, %v1718
    %v1720 = vlaneseq
    %v1721 = vshrl.u32 %v1720, 7
    %v1722 = vsub.s32 0, %v1721
    %v1723 = vrot.slane %v1653, %v1722
    %v1724 = vlaneseq
    %v1725 = vshrl.u32 %v1724, 7
    %v1726 = vsub.s32 0, %v1725
    %v1727 = vrot.slane %v1667, %v1726
    %v1728 = vlaneseq
    %v1729 = vshrl.u32 %v1728, 7
    %v1730 = vsub.s32 0, %v1729
    %v1731 = vrot.slane %v1669, %v1730
    %v1732 = vlaneseq
    %v1733 = vshrl.u32 %v1732, 7
    %v1734 = vsub.s32 0, %v1733
    %v1735 = vrot.slane %v1671, %v1734
    %1752 = vrot.lane.b32.xlu0 %v1564, 96
    %v1753 = vpop.permute.xlu0 %1752
    %1754 = vrot.lane.b32.xlu0 %v1569, 96
    %v1755 = vpop.permute.xlu0 %1754
    %v1758 = vmul.f32 %v1675, %v1753
    %v1759 = vmul.f32 %v1679, %v1753
    %v1760 = vmul.f32 %v1683, %v1753
    %v1761 = vmul.f32 %v1687, %v1753
    %v1762 = vmul.f32 %v1691, %v1753
    %v1763 = vmul.f32 %v1695, %v1753
    %v1764 = vmul.f32 %v1699, %v1753
    %v1765 = vmul.f32 %v1703, %v1753
    %v1766 = vmul.f32 %v1707, %v1755
    %v1767 = vmul.f32 %v1711, %v1755
    %v1768 = vmul.f32 %v1715, %v1755
    %v1769 = vmul.f32 %v1719, %v1755
    %v1770 = vmul.f32 %v1723, %v1755
    %v1771 = vmul.f32 %v1727, %v1755
    %v1772 = vmul.f32 %v1731, %v1755
    %v1773 = vmul.f32 %v1735, %v1755
    %v1774 = vsel %vm589, -1e+09, %v1758
    %v1775 = vsel %vm589, -1e+09, %v1759
    %v1776 = vsel %vm589, -1e+09, %v1760
    %v1777 = vsel %vm589, -1e+09, %v1761
    %v1778 = vsel %vm589, -1e+09, %v1762
    %v1779 = vsel %vm589, -1e+09, %v1763
    %v1780 = vsel %vm589, -1e+09, %v1764
    %v1781 = vsel %vm589, -1e+09, %v1765
    %v1782 = vsel %vm590, -1e+09, %v1766
    %v1783 = vsel %vm590, -1e+09, %v1767
    %v1784 = vsel %vm590, -1e+09, %v1768
    %v1785 = vsel %vm590, -1e+09, %v1769
    %v1786 = vsel %vm590, -1e+09, %v1770
    %v1787 = vsel %vm590, -1e+09, %v1771
    %v1788 = vsel %vm590, -1e+09, %v1772
    %v1789 = vsel %vm590, -1e+09, %v1773
    %v1790 = vsel %vm297, %v1774, -inf
    %v1791 = vrot.slane %v1790, 4
    %v1792 = vmax.f32 %v1790, %v1791
    %v1793 = vrot.slane %v1792, 2
    %v1794 = vmax.f32 %v1792, %v1793
    %v1795 = vrot.slane %v1794, 1
    %v1796 = vmax.f32 %v1794, %v1795
    %v1797 = vsel %vm297, %v1775, -inf
    %v1798 = vrot.slane %v1797, 4
    %v1799 = vmax.f32 %v1797, %v1798
    %v1800 = vrot.slane %v1799, 2
    %v1801 = vmax.f32 %v1799, %v1800
    %v1802 = vrot.slane %v1801, 1
    %v1803 = vmax.f32 %v1801, %v1802
    %v1804 = vsel %vm297, %v1776, -inf
    %v1805 = vrot.slane %v1804, 4
    %v1806 = vmax.f32 %v1804, %v1805
    %v1807 = vrot.slane %v1806, 2
    %v1808 = vmax.f32 %v1806, %v1807
    %v1809 = vrot.slane %v1808, 1
    %v1810 = vmax.f32 %v1808, %v1809
    %v1811 = vsel %vm297, %v1777, -inf
    %v1812 = vrot.slane %v1811, 4
    %v1813 = vmax.f32 %v1811, %v1812
    %v1814 = vrot.slane %v1813, 2
    %v1815 = vmax.f32 %v1813, %v1814
    %v1816 = vrot.slane %v1815, 1
    %v1817 = vmax.f32 %v1815, %v1816
    %v1818 = vsel %vm297, %v1778, -inf
    %v1819 = vrot.slane %v1818, 4
    %v1820 = vmax.f32 %v1818, %v1819
    %v1821 = vrot.slane %v1820, 2
    %v1822 = vmax.f32 %v1820, %v1821
    %v1823 = vrot.slane %v1822, 1
    %v1824 = vmax.f32 %v1822, %v1823
    %v1825 = vsel %vm297, %v1779, -inf
    %v1826 = vrot.slane %v1825, 4
    %v1827 = vmax.f32 %v1825, %v1826
    %v1828 = vrot.slane %v1827, 2
    %v1829 = vmax.f32 %v1827, %v1828
    %v1830 = vrot.slane %v1829, 1
    %v1831 = vmax.f32 %v1829, %v1830
    %v1832 = vsel %vm297, %v1780, -inf
    %v1833 = vrot.slane %v1832, 4
    %v1834 = vmax.f32 %v1832, %v1833
    %v1835 = vrot.slane %v1834, 2
    %v1836 = vmax.f32 %v1834, %v1835
    %v1837 = vrot.slane %v1836, 1
    %v1838 = vmax.f32 %v1836, %v1837
    %v1839 = vsel %vm297, %v1781, -inf
    %v1840 = vrot.slane %v1839, 4
    %v1841 = vmax.f32 %v1839, %v1840
    %v1842 = vrot.slane %v1841, 2
    %v1843 = vmax.f32 %v1841, %v1842
    %v1844 = vrot.slane %v1843, 1
    %v1845 = vmax.f32 %v1843, %v1844
    %v1846 = vsel %vm297, %v1782, -inf
    %v1847 = vrot.slane %v1846, 4
    %v1848 = vmax.f32 %v1846, %v1847
    %v1849 = vrot.slane %v1848, 2
    %v1850 = vmax.f32 %v1848, %v1849
    %v1851 = vrot.slane %v1850, 1
    %v1852 = vmax.f32 %v1850, %v1851
    %v1853 = vsel %vm297, %v1783, -inf
    %v1854 = vrot.slane %v1853, 4
    %v1855 = vmax.f32 %v1853, %v1854
    %v1856 = vrot.slane %v1855, 2
    %v1857 = vmax.f32 %v1855, %v1856
    %v1858 = vrot.slane %v1857, 1
    %v1859 = vmax.f32 %v1857, %v1858
    %v1860 = vsel %vm297, %v1784, -inf
    %v1861 = vrot.slane %v1860, 4
    %v1862 = vmax.f32 %v1860, %v1861
    %v1863 = vrot.slane %v1862, 2
    %v1864 = vmax.f32 %v1862, %v1863
    %v1865 = vrot.slane %v1864, 1
    %v1866 = vmax.f32 %v1864, %v1865
    %v1867 = vsel %vm297, %v1785, -inf
    %v1868 = vrot.slane %v1867, 4
    %v1869 = vmax.f32 %v1867, %v1868
    %v1870 = vrot.slane %v1869, 2
    %v1871 = vmax.f32 %v1869, %v1870
    %v1872 = vrot.slane %v1871, 1
    %v1873 = vmax.f32 %v1871, %v1872
    %v1874 = vsel %vm297, %v1786, -inf
    %v1875 = vrot.slane %v1874, 4
    %v1876 = vmax.f32 %v1874, %v1875
    %v1877 = vrot.slane %v1876, 2
    %v1878 = vmax.f32 %v1876, %v1877
    %v1879 = vrot.slane %v1878, 1
    %v1880 = vmax.f32 %v1878, %v1879
    %v1881 = vsel %vm297, %v1787, -inf
    %v1882 = vrot.slane %v1881, 4
    %v1883 = vmax.f32 %v1881, %v1882
    %v1884 = vrot.slane %v1883, 2
    %v1885 = vmax.f32 %v1883, %v1884
    %v1886 = vrot.slane %v1885, 1
    %v1887 = vmax.f32 %v1885, %v1886
    %v1888 = vsel %vm297, %v1788, -inf
    %v1889 = vrot.slane %v1888, 4
    %v1890 = vmax.f32 %v1888, %v1889
    %v1891 = vrot.slane %v1890, 2
    %v1892 = vmax.f32 %v1890, %v1891
    %v1893 = vrot.slane %v1892, 1
    %v1894 = vmax.f32 %v1892, %v1893
    %v1895 = vsel %vm297, %v1789, -inf
    %v1896 = vrot.slane %v1895, 4
    %v1897 = vmax.f32 %v1895, %v1896
    %v1898 = vrot.slane %v1897, 2
    %v1899 = vmax.f32 %v1897, %v1898
    %v1900 = vrot.slane %v1899, 1
    %v1901 = vmax.f32 %v1899, %v1900
    %v1902 = vsub.f32 %v1774, %v1796
    %v1903 = vsub.f32 %v1775, %v1803
    %v1904 = vsub.f32 %v1776, %v1810
    %v1905 = vsub.f32 %v1777, %v1817
    %v1906 = vsub.f32 %v1778, %v1824
    %v1907 = vsub.f32 %v1779, %v1831
    %v1908 = vsub.f32 %v1780, %v1838
    %v1909 = vsub.f32 %v1781, %v1845
    %v1910 = vsub.f32 %v1782, %v1852
    %v1911 = vsub.f32 %v1783, %v1859
    %v1912 = vsub.f32 %v1784, %v1866
    %v1913 = vsub.f32 %v1785, %v1873
    %v1914 = vsub.f32 %v1786, %v1880
    %v1915 = vsub.f32 %v1787, %v1887
    %v1916 = vsub.f32 %v1788, %v1894
    %v1917 = vsub.f32 %v1789, %v1901
    %v1918 = vmul.f32 %v1902, 1.442695
    %v1919 = vpow.pop %v1918
    %v1920 = vmul.f32 %v1903, 1.442695
    %v1921 = vpow.pop %v1920
    %v1922 = vmul.f32 %v1904, 1.442695
    %v1923 = vpow.pop %v1922
    %v1924 = vmul.f32 %v1905, 1.442695
    %v1925 = vpow.pop %v1924
    %v1926 = vmul.f32 %v1906, 1.442695
    %v1927 = vpow.pop %v1926
    %v1928 = vmul.f32 %v1907, 1.442695
    %v1929 = vpow.pop %v1928
    %v1930 = vmul.f32 %v1908, 1.442695
    %v1931 = vpow.pop %v1930
    %v1932 = vmul.f32 %v1909, 1.442695
    %v1933 = vpow.pop %v1932
    %v1934 = vmul.f32 %v1910, 1.442695
    %v1935 = vpow.pop %v1934
    %v1936 = vmul.f32 %v1911, 1.442695
    %v1937 = vpow.pop %v1936
    %v1938 = vmul.f32 %v1912, 1.442695
    %v1939 = vpow.pop %v1938
    %v1940 = vmul.f32 %v1913, 1.442695
    %v1941 = vpow.pop %v1940
    %v1942 = vmul.f32 %v1914, 1.442695
    %v1943 = vpow.pop %v1942
    %v1944 = vmul.f32 %v1915, 1.442695
    %v1945 = vpow.pop %v1944
    %v1946 = vmul.f32 %v1916, 1.442695
    %v1947 = vpow.pop %v1946
    %v1948 = vmul.f32 %v1917, 1.442695
    %v1949 = vpow.pop %v1948
    %v1950 = vsel %vm297, %v1919, 0.0
    %v1951 = vrot.slane %v1950, 4
    %v1952 = vadd.f32 %v1950, %v1951
    %v1953 = vrot.slane %v1952, 2
    %v1954 = vadd.f32 %v1952, %v1953
    %v1955 = vrot.slane %v1954, 1
    %v1956 = vadd.f32 %v1954, %v1955
    %v1957 = vsel %vm297, %v1921, 0.0
    %v1958 = vrot.slane %v1957, 4
    %v1959 = vadd.f32 %v1957, %v1958
    %v1960 = vrot.slane %v1959, 2
    %v1961 = vadd.f32 %v1959, %v1960
    %v1962 = vrot.slane %v1961, 1
    %v1963 = vadd.f32 %v1961, %v1962
    %v1964 = vsel %vm297, %v1923, 0.0
    %v1965 = vrot.slane %v1964, 4
    %v1966 = vadd.f32 %v1964, %v1965
    %v1967 = vrot.slane %v1966, 2
    %v1968 = vadd.f32 %v1966, %v1967
    %v1969 = vrot.slane %v1968, 1
    %v1970 = vadd.f32 %v1968, %v1969
    %v1971 = vsel %vm297, %v1925, 0.0
    %v1972 = vrot.slane %v1971, 4
    %v1973 = vadd.f32 %v1971, %v1972
    %v1974 = vrot.slane %v1973, 2
    %v1975 = vadd.f32 %v1973, %v1974
    %v1976 = vrot.slane %v1975, 1
    %v1977 = vadd.f32 %v1975, %v1976
    %v1978 = vsel %vm297, %v1927, 0.0
    %v1979 = vrot.slane %v1978, 4
    %v1980 = vadd.f32 %v1978, %v1979
    %v1981 = vrot.slane %v1980, 2
    %v1982 = vadd.f32 %v1980, %v1981
    %v1983 = vrot.slane %v1982, 1
    %v1984 = vadd.f32 %v1982, %v1983
    %v1985 = vsel %vm297, %v1929, 0.0
    %v1986 = vrot.slane %v1985, 4
    %v1987 = vadd.f32 %v1985, %v1986
    %v1988 = vrot.slane %v1987, 2
    %v1989 = vadd.f32 %v1987, %v1988
    %v1990 = vrot.slane %v1989, 1
    %v1991 = vadd.f32 %v1989, %v1990
    %v1992 = vsel %vm297, %v1931, 0.0
    %v1993 = vrot.slane %v1992, 4
    %v1994 = vadd.f32 %v1992, %v1993
    %v1995 = vrot.slane %v1994, 2
    %v1996 = vadd.f32 %v1994, %v1995
    %v1997 = vrot.slane %v1996, 1
    %v1998 = vadd.f32 %v1996, %v1997
    %v1999 = vsel %vm297, %v1933, 0.0
    %v2000 = vrot.slane %v1999, 4
    %v2001 = vadd.f32 %v1999, %v2000
    %v2002 = vrot.slane %v2001, 2
    %v2003 = vadd.f32 %v2001, %v2002
    %v2004 = vrot.slane %v2003, 1
    %v2005 = vadd.f32 %v2003, %v2004
    %v2006 = vsel %vm297, %v1935, 0.0
    %v2007 = vrot.slane %v2006, 4
    %v2008 = vadd.f32 %v2006, %v2007
    %v2009 = vrot.slane %v2008, 2
    %v2010 = vadd.f32 %v2008, %v2009
    %v2011 = vrot.slane %v2010, 1
    %v2012 = vadd.f32 %v2010, %v2011
    %v2013 = vsel %vm297, %v1937, 0.0
    %v2014 = vrot.slane %v2013, 4
    %v2015 = vadd.f32 %v2013, %v2014
    %v2016 = vrot.slane %v2015, 2
    %v2017 = vadd.f32 %v2015, %v2016
    %v2018 = vrot.slane %v2017, 1
    %v2019 = vadd.f32 %v2017, %v2018
    %v2020 = vsel %vm297, %v1939, 0.0
    %v2021 = vrot.slane %v2020, 4
    %v2022 = vadd.f32 %v2020, %v2021
    %v2023 = vrot.slane %v2022, 2
    %v2024 = vadd.f32 %v2022, %v2023
    %v2025 = vrot.slane %v2024, 1
    %v2026 = vadd.f32 %v2024, %v2025
    %v2027 = vsel %vm297, %v1941, 0.0
    %v2028 = vrot.slane %v2027, 4
    %v2029 = vadd.f32 %v2027, %v2028
    %v2030 = vrot.slane %v2029, 2
    %v2031 = vadd.f32 %v2029, %v2030
    %v2032 = vrot.slane %v2031, 1
    %v2033 = vadd.f32 %v2031, %v2032
    %v2034 = vsel %vm297, %v1943, 0.0
    %v2035 = vrot.slane %v2034, 4
    %v2036 = vadd.f32 %v2034, %v2035
    %v2037 = vrot.slane %v2036, 2
    %v2038 = vadd.f32 %v2036, %v2037
    %v2039 = vrot.slane %v2038, 1
    %v2040 = vadd.f32 %v2038, %v2039
    %v2041 = vsel %vm297, %v1945, 0.0
    %v2042 = vrot.slane %v2041, 4
    %v2043 = vadd.f32 %v2041, %v2042
    %v2044 = vrot.slane %v2043, 2
    %v2045 = vadd.f32 %v2043, %v2044
    %v2046 = vrot.slane %v2045, 1
    %v2047 = vadd.f32 %v2045, %v2046
    %v2048 = vsel %vm297, %v1947, 0.0
    %v2049 = vrot.slane %v2048, 4
    %v2050 = vadd.f32 %v2048, %v2049
    %v2051 = vrot.slane %v2050, 2
    %v2052 = vadd.f32 %v2050, %v2051
    %v2053 = vrot.slane %v2052, 1
    %v2054 = vadd.f32 %v2052, %v2053
    %v2055 = vsel %vm297, %v1949, 0.0
    %v2056 = vrot.slane %v2055, 4
    %v2057 = vadd.f32 %v2055, %v2056
    %v2058 = vrot.slane %v2057, 2
    %v2059 = vadd.f32 %v2057, %v2058
    %v2060 = vrot.slane %v2059, 1
    %v2061 = vadd.f32 %v2059, %v2060
    %v2062 = vrcp.pop %v1956
    %v2063 = vmul.f32 %v1919, %v2062
    %v2064 = vrcp.pop %v1963
    %v2065 = vmul.f32 %v1921, %v2064
    %v2066 = vrcp.pop %v1970
    %v2067 = vmul.f32 %v1923, %v2066
    %v2068 = vrcp.pop %v1977
    %v2069 = vmul.f32 %v1925, %v2068
    %v2070 = vrcp.pop %v1984
    %v2071 = vmul.f32 %v1927, %v2070
    %v2072 = vrcp.pop %v1991
    %v2073 = vmul.f32 %v1929, %v2072
    %v2074 = vrcp.pop %v1998
    %v2075 = vmul.f32 %v1931, %v2074
    %v2076 = vrcp.pop %v2005
    %v2077 = vmul.f32 %v1933, %v2076
    %v2078 = vrcp.pop %v2012
    %v2079 = vmul.f32 %v1935, %v2078
    %v2080 = vrcp.pop %v2019
    %v2081 = vmul.f32 %v1937, %v2080
    %v2082 = vrcp.pop %v2026
    %v2083 = vmul.f32 %v1939, %v2082
    %v2084 = vrcp.pop %v2033
    %v2085 = vmul.f32 %v1941, %v2084
    %v2086 = vrcp.pop %v2040
    %v2087 = vmul.f32 %v1943, %v2086
    %v2088 = vrcp.pop %v2047
    %v2089 = vmul.f32 %v1945, %v2088
    %v2090 = vrcp.pop %v2054
    %v2091 = vmul.f32 %v1947, %v2090
    %v2092 = vrcp.pop %v2061
    %v2093 = vmul.f32 %v1949, %v2092
    %2094 = vst.msk [vmem:[#allocation27] sm:$0xff] %vm297, %v2063
    %2095 = vst.msk [vmem:[#allocation27 + $0x8] sm:$0xff] %vm297, %v2065
    %2096 = vst.msk [vmem:[#allocation27 + $0x10] sm:$0xff] %vm297, %v2067
    %2097 = vst.msk [vmem:[#allocation27 + $0x18] sm:$0xff] %vm297, %v2069
    %2098 = vst.msk [vmem:[#allocation27 + $0x20] sm:$0xff] %vm297, %v2071
    %2099 = vst.msk [vmem:[#allocation27 + $0x28] sm:$0xff] %vm297, %v2073
    %2100 = vst.msk [vmem:[#allocation27 + $0x30] sm:$0xff] %vm297, %v2075
    %2101 = vst.msk [vmem:[#allocation27 + $0x38] sm:$0xff] %vm297, %v2077
    %2102 = vst.msk [vmem:[#allocation27 + $0x40] sm:$0xff] %vm297, %v2079
    %2103 = vst.msk [vmem:[#allocation27 + $0x48] sm:$0xff] %vm297, %v2081
    %2104 = vst.msk [vmem:[#allocation27 + $0x50] sm:$0xff] %vm297, %v2083
    %2105 = vst.msk [vmem:[#allocation27 + $0x58] sm:$0xff] %vm297, %v2085
    %2106 = vst.msk [vmem:[#allocation27 + $0x60] sm:$0xff] %vm297, %v2087
    %2107 = vst.msk [vmem:[#allocation27 + $0x68] sm:$0xff] %vm297, %v2089
    %2108 = vst.msk [vmem:[#allocation27 + $0x70] sm:$0xff] %vm297, %v2091
    %2109 = vst.msk [vmem:[#allocation27 + $0x78] sm:$0xff] %vm297, %v2093
    %2110 = vrot.lane.b32.xlu0 %v1564, 64
    %v2111 = vpop.permute.xlu0 %2110
    %2112 = vrot.lane.b32.xlu0 %v1569, 64
    %v2113 = vpop.permute.xlu0 %2112
    %v2116 = vmul.f32 %v2063, %v2111
    %v2117 = vmul.f32 %v2065, %v2111
    %v2118 = vmul.f32 %v2067, %v2111
    %v2119 = vmul.f32 %v2069, %v2111
    %v2120 = vmul.f32 %v2071, %v2111
    %v2121 = vmul.f32 %v2073, %v2111
    %v2122 = vmul.f32 %v2075, %v2111
    %v2123 = vmul.f32 %v2077, %v2111
    %v2124 = vmul.f32 %v2079, %v2113
    %v2125 = vmul.f32 %v2081, %v2113
    %v2126 = vmul.f32 %v2083, %v2113
    %v2127 = vmul.f32 %v2085, %v2113
    %v2128 = vmul.f32 %v2087, %v2113
    %v2129 = vmul.f32 %v2089, %v2113
    %v2130 = vmul.f32 %v2091, %v2113
    %v2131 = vmul.f32 %v2093, %v2113
    %v2132 = vsel %vm297, %v2116, 0.0
    %v2133 = vrot.slane %v2132, 4
    %v2134 = vadd.f32 %v2132, %v2133
    %v2135 = vrot.slane %v2134, 2
    %v2136 = vadd.f32 %v2134, %v2135
    %v2137 = vrot.slane %v2136, 1
    %v2138 = vadd.f32 %v2136, %v2137
    %v2139 = vsel %vm297, %v2117, 0.0
    %v2140 = vrot.slane %v2139, 4
    %v2141 = vadd.f32 %v2139, %v2140
    %v2142 = vrot.slane %v2141, 2
    %v2143 = vadd.f32 %v2141, %v2142
    %v2144 = vrot.slane %v2143, 1
    %v2145 = vadd.f32 %v2143, %v2144
    %v2146 = vsel %vm297, %v2118, 0.0
    %v2147 = vrot.slane %v2146, 4
    %v2148 = vadd.f32 %v2146, %v2147
    %v2149 = vrot.slane %v2148, 2
    %v2150 = vadd.f32 %v2148, %v2149
    %v2151 = vrot.slane %v2150, 1
    %v2152 = vadd.f32 %v2150, %v2151
    %v2153 = vsel %vm297, %v2119, 0.0
    %v2154 = vrot.slane %v2153, 4
    %v2155 = vadd.f32 %v2153, %v2154
    %v2156 = vrot.slane %v2155, 2
    %v2157 = vadd.f32 %v2155, %v2156
    %v2158 = vrot.slane %v2157, 1
    %v2159 = vadd.f32 %v2157, %v2158
    %v2160 = vsel %vm297, %v2120, 0.0
    %v2161 = vrot.slane %v2160, 4
    %v2162 = vadd.f32 %v2160, %v2161
    %v2163 = vrot.slane %v2162, 2
    %v2164 = vadd.f32 %v2162, %v2163
    %v2165 = vrot.slane %v2164, 1
    %v2166 = vadd.f32 %v2164, %v2165
    %v2167 = vsel %vm297, %v2121, 0.0
    %v2168 = vrot.slane %v2167, 4
    %v2169 = vadd.f32 %v2167, %v2168
    %v2170 = vrot.slane %v2169, 2
    %v2171 = vadd.f32 %v2169, %v2170
    %v2172 = vrot.slane %v2171, 1
    %v2173 = vadd.f32 %v2171, %v2172
    %v2174 = vsel %vm297, %v2122, 0.0
    %v2175 = vrot.slane %v2174, 4
    %v2176 = vadd.f32 %v2174, %v2175
    %v2177 = vrot.slane %v2176, 2
    %v2178 = vadd.f32 %v2176, %v2177
    %v2179 = vrot.slane %v2178, 1
    %v2180 = vadd.f32 %v2178, %v2179
    %v2181 = vsel %vm297, %v2123, 0.0
    %v2182 = vrot.slane %v2181, 4
    %v2183 = vadd.f32 %v2181, %v2182
    %v2184 = vrot.slane %v2183, 2
    %v2185 = vadd.f32 %v2183, %v2184
    %v2186 = vrot.slane %v2185, 1
    %v2187 = vadd.f32 %v2185, %v2186
    %v2188 = vsel %vm297, %v2124, 0.0
    %v2189 = vrot.slane %v2188, 4
    %v2190 = vadd.f32 %v2188, %v2189
    %v2191 = vrot.slane %v2190, 2
    %v2192 = vadd.f32 %v2190, %v2191
    %v2193 = vrot.slane %v2192, 1
    %v2194 = vadd.f32 %v2192, %v2193
    %v2195 = vsel %vm297, %v2125, 0.0
    %v2196 = vrot.slane %v2195, 4
    %v2197 = vadd.f32 %v2195, %v2196
    %v2198 = vrot.slane %v2197, 2
    %v2199 = vadd.f32 %v2197, %v2198
    %v2200 = vrot.slane %v2199, 1
    %v2201 = vadd.f32 %v2199, %v2200
    %v2202 = vsel %vm297, %v2126, 0.0
    %v2203 = vrot.slane %v2202, 4
    %v2204 = vadd.f32 %v2202, %v2203
    %v2205 = vrot.slane %v2204, 2
    %v2206 = vadd.f32 %v2204, %v2205
    %v2207 = vrot.slane %v2206, 1
    %v2208 = vadd.f32 %v2206, %v2207
    %v2209 = vsel %vm297, %v2127, 0.0
    %v2210 = vrot.slane %v2209, 4
    %v2211 = vadd.f32 %v2209, %v2210
    %v2212 = vrot.slane %v2211, 2
    %v2213 = vadd.f32 %v2211, %v2212
    %v2214 = vrot.slane %v2213, 1
    %v2215 = vadd.f32 %v2213, %v2214
    %v2216 = vsel %vm297, %v2128, 0.0
    %v2217 = vrot.slane %v2216, 4
    %v2218 = vadd.f32 %v2216, %v2217
    %v2219 = vrot.slane %v2218, 2
    %v2220 = vadd.f32 %v2218, %v2219
    %v2221 = vrot.slane %v2220, 1
    %v2222 = vadd.f32 %v2220, %v2221
    %v2223 = vsel %vm297, %v2129, 0.0
    %v2224 = vrot.slane %v2223, 4
    %v2225 = vadd.f32 %v2223, %v2224
    %v2226 = vrot.slane %v2225, 2
    %v2227 = vadd.f32 %v2225, %v2226
    %v2228 = vrot.slane %v2227, 1
    %v2229 = vadd.f32 %v2227, %v2228
    %v2230 = vsel %vm297, %v2130, 0.0
    %v2231 = vrot.slane %v2230, 4
    %v2232 = vadd.f32 %v2230, %v2231
    %v2233 = vrot.slane %v2232, 2
    %v2234 = vadd.f32 %v2232, %v2233
    %v2235 = vrot.slane %v2234, 1
    %v2236 = vadd.f32 %v2234, %v2235
    %v2237 = vsel %vm297, %v2131, 0.0
    %v2238 = vrot.slane %v2237, 4
    %v2239 = vadd.f32 %v2237, %v2238
    %v2240 = vrot.slane %v2239, 2
    %v2241 = vadd.f32 %v2239, %v2240
    %v2242 = vrot.slane %v2241, 1
    %v2243 = vadd.f32 %v2241, %v2242
    %v2244 = vld [vmem:[%s33] sm:$0xff]
    %v2245 = vld [vmem:[%s33 + $0x8] sm:$0xff]
    %v2246 = vld [vmem:[%s33 + $0x10] sm:$0xff]
    %v2247 = vld [vmem:[%s33 + $0x18] sm:$0xff]
    %v2248 = vld [vmem:[#allocation17] sm:$0x1]
    %v2250 = vlaneseq
    %v2251 = vshrl.u32 %v2250, 7
    %v2252 = vsub.s32 0, %v2251
    %v2253 = vrot.slane %v2248, %v2252
    %v2271 = vsel %vm1088, %v2145, %v2138
    %v2272 = vsel %vm1090, %v2152, %v2271
    %v2273 = vsel %vm1092, %v2159, %v2272
    %v2274 = vsel %vm1094, %v2166, %v2273
    %v2275 = vsel %vm1096, %v2173, %v2274
    %v2276 = vsel %vm1098, %v2180, %v2275
    %v2277 = vsel %vm1100, %v2187, %v2276
    %v2278 = vsel %vm1088, %v2201, %v2194
    %v2279 = vsel %vm1090, %v2208, %v2278
    %v2280 = vsel %vm1092, %v2215, %v2279
    %v2281 = vsel %vm1094, %v2222, %v2280
    %v2282 = vsel %vm1096, %v2229, %v2281
    %v2283 = vsel %vm1098, %v2236, %v2282
    %v2284 = vsel %vm1100, %v2243, %v2283
    %v2285 = vsel %vm297, %v2277, 0
    %v2287 = vsel %vm297, %v2284, 0
    %2289 = vmatprep.subr.mxu0 0.0
    %2290 = vmatpush1.msra.mxu0 %v2244
    %2291 = vmatprep.subr.mxu0 0.0
    %2292 = vmatpush1.msra.mxu0 %v2245
    %2293 = vmatprep.subr.mxu0 0.0
    %2294 = vmatpush1.msra.mxu0 %v2246
    %2295 = vmatprep.subr.mxu0 0.0
    %2296 = vmatpush1.msra.mxu0 %v2247
    %2297 = vmatprep.subr.mxu0 0.0
    %2298 = vmatpush1.msra.mxu0 0.0
    %2299 = vmatprep.subr.mxu0 0.0
    %2300 = vmatpush1.msra.mxu0 0.0
    %2301 = vmatprep.subr.mxu0 0.0
    %2302 = vmatpush1.msra.mxu0 0.0
    %2303 = vmatprep.subr.mxu0 0.0
    %2304 = vmatpush1.msra.mxu0 0.0
    %2305 = vmatprep.subr.mxu0 0.0
    %2306 = vmatpush1.msra.mxu0 0.0
    %2307 = vmatprep.subr.mxu0 0.0
    %2308 = vmatpush1.msra.mxu0 0.0
    %2309 = vmatprep.subr.mxu0 0.0
    %2310 = vmatpush1.msra.mxu0 0.0
    %2311 = vmatprep.subr.mxu0 0.0
    %2312 = vmatpush1.msra.mxu0 0.0
    %2313 = vmatprep.subr.mxu0 0.0
    %2314 = vmatpush1.msra.mxu0 0.0
    %2315 = vmatprep.subr.mxu0 0.0
    %2316 = vmatpush1.msra.mxu0 0.0
    %2317 = vmatprep.subr.mxu0 0.0
    %2318 = vmatpush1.msra.mxu0 0.0
    %2319 = vmatprep.subr.mxu0 0.0
    %2320 = vmatpush1.msra.mxu0 0.0
    %2321 = vmatprep.subr.mxu0 0.0
    %2322 = vmatpush1.msra.mxu0 0.0
    %2323 = vmatprep.subr.mxu0 0.0
    %2324 = vmatpush1.msra.mxu0 0.0
    %2325 = vmatprep.subr.mxu0 0.0
    %2326 = vmatpush1.msra.mxu0 0.0
    %2327 = vmatprep.subr.mxu0 0.0
    %2328 = vmatpush1.msra.mxu0 0.0
    %2329 = vmatprep.subr.mxu0 0.0
    %2330 = vmatpush1.msra.mxu0 0.0
    %2331 = vmatprep.subr.mxu0 0.0
    %2332 = vmatpush1.msra.mxu0 0.0
    %2333 = vmatprep.subr.mxu0 0.0
    %2334 = vmatpush1.msra.mxu0 0.0
    %2335 = vmatprep.subr.mxu0 0.0
    %2336 = vmatpush1.msra.mxu0 0.0
    %2337 = vmatprep.subr.mxu0 0.0
    %2338 = vmatpush1.msra.mxu0 0.0
    %2339 = vmatprep.subr.mxu0 0.0
    %2340 = vmatpush1.msra.mxu0 0.0
    %2341 = vmatprep.subr.mxu0 0.0
    %2342 = vmatpush1.msra.mxu0 0.0
    %2343 = vmatprep.subr.mxu0 0.0
    %2344 = vmatpush1.msra.mxu0 0.0
    %2345 = vmatprep.subr.mxu0 0.0
    %2346 = vmatpush1.msra.mxu0 0.0
    %2347 = vmatprep.subr.mxu0 0.0
    %2348 = vmatpush1.msra.mxu0 0.0
    %2349 = vmatprep.subr.mxu0 0.0
    %2350 = vmatpush1.msra.mxu0 0.0
    %2351 = vmatprep.subr.mxu0 0.0
    %2352 = vmatpush1.msra.mxu0 0.0
    %2353 = vmatprep.mubr.f32.mxu0 0.0
    %2354 = vmatmul.mubr.f32.gmra.mrb[0].mxu0 %v2285
    %v2355 = vpop.f32.mrb[0].mxu0
    %v2356 = vadd.f32 %v2253, %v2355
    %v2357 = vpop.f32.mrb[0].mxu0
    %2358 = vmatprep.mubr.f32.mxu0 0.0
    %2359 = vmatmul.mubr.f32.gmra.mrb[0].mxu0 %v2287
    %v2360 = vpop.f32.mrb[0].mxu0
    %v2361 = vadd.f32 %v2253, %v2360
    %v2362 = vpop.f32.mrb[0].mxu0
    %2363 = vdwg.mxu0
    %v2364 = vadd.f32 %v1478, %v2356
    %v2365 = vadd.f32 %v1479, %v2361
    %v2366 = vsel %vm297, %v2364, 0.0
    %2367 = vadd.xlane.f32.xlu0 %v2366
    %v2368 = vpop.xlane.xlu0 %2367
    %v2369 = vsel %vm297, %v2365, 0.0
    %2370 = vadd.xlane.f32.xlu0 %v2369
    %v2371 = vpop.xlane.xlu0 %2370
    %v2372 = vmul.f32 %v2368, %v1196
    %v2373 = vmul.f32 %v2371, %v1196
    %v2374 = vsub.f32 %v2364, %v2372
    %v2375 = vsub.f32 %v2365, %v2373
    %v2376 = vmul.f32 %v2374, %v2374
    %v2377 = vmul.f32 %v2375, %v2375
    %v2378 = vsel %vm297, %v2376, 0.0
    %2379 = vadd.xlane.f32.xlu0 %v2378
    %v2380 = vpop.xlane.xlu0 %2379
    %v2381 = vsel %vm297, %v2377, 0.0
    %2382 = vadd.xlane.f32.xlu0 %v2381
    %v2383 = vpop.xlane.xlu0 %2382
    %v2384 = vmul.f32 %v2380, %v1196
    %v2385 = vmul.f32 %v2383, %v1196
    %v2386 = vadd.f32 %v2384, 1e-12
    %v2387 = vadd.f32 %v2385, 1e-12
    %v2388 = vrsqrt.pop %v2386
    %v2389 = vrsqrt.pop %v2387
    %v2390 = vmul.f32 %v2374, %v2388
    %v2391 = vmul.f32 %v2375, %v2389
    %v2392 = vld [vmem:[#allocation19] sm:$0x1]
    %v2394 = vlaneseq
    %v2395 = vshrl.u32 %v2394, 7
    %v2396 = vsub.s32 0, %v2395
    %v2397 = vrot.slane %v2392, %v2396
    %v2399 = vmul.f32 %v2390, %v2397
    %v2400 = vmul.f32 %v2391, %v2397
    %v2401 = vld [vmem:[#allocation20] sm:$0x1]
    %v2403 = vlaneseq
    %v2404 = vshrl.u32 %v2403, 7
    %v2405 = vsub.s32 0, %v2404
    %v2406 = vrot.slane %v2401, %v2405
    %v2408 = vadd.f32 %v2399, %v2406
    %v2409 = vadd.f32 %v2400, %v2406
    %v2410 = vld [vmem:[%s41] sm:$0xff]
    %v2411 = vld [vmem:[%s41 + $0x8] sm:$0xff]
    %v2412 = vld [vmem:[%s41 + $0x10] sm:$0xff]
    %v2413 = vld [vmem:[%s41 + $0x18] sm:$0xff]
    %v2414 = vld [vmem:[#allocation22] sm:$0x1]
    %v2416 = vlaneseq
    %v2417 = vshrl.u32 %v2416, 7
    %v2418 = vsub.s32 0, %v2417
    %v2419 = vrot.slane %v2414, %v2418
    %v2422 = vsel %vm297, %v2408, 0
    %v2425 = vsel %vm297, %v2409, 0
    %2427 = vmatprep.subr.mxu0 0.0
    %2428 = vmatpush1.msra.mxu0 %v2410
    %2429 = vmatprep.subr.mxu0 0.0
    %2430 = vmatpush1.msra.mxu0 %v2411
    %2431 = vmatprep.subr.mxu0 0.0
    %2432 = vmatpush1.msra.mxu0 %v2412
    %2433 = vmatprep.subr.mxu0 0.0
    %2434 = vmatpush1.msra.mxu0 %v2413
    %2435 = vmatprep.subr.mxu0 0.0
    %2436 = vmatpush1.msra.mxu0 0.0
    %2437 = vmatprep.subr.mxu0 0.0
    %2438 = vmatpush1.msra.mxu0 0.0
    %2439 = vmatprep.subr.mxu0 0.0
    %2440 = vmatpush1.msra.mxu0 0.0
    %2441 = vmatprep.subr.mxu0 0.0
    %2442 = vmatpush1.msra.mxu0 0.0
    %2443 = vmatprep.subr.mxu0 0.0
    %2444 = vmatpush1.msra.mxu0 0.0
    %2445 = vmatprep.subr.mxu0 0.0
    %2446 = vmatpush1.msra.mxu0 0.0
    %2447 = vmatprep.subr.mxu0 0.0
    %2448 = vmatpush1.msra.mxu0 0.0
    %2449 = vmatprep.subr.mxu0 0.0
    %2450 = vmatpush1.msra.mxu0 0.0
    %2451 = vmatprep.subr.mxu0 0.0
    %2452 = vmatpush1.msra.mxu0 0.0
    %2453 = vmatprep.subr.mxu0 0.0
    %2454 = vmatpush1.msra.mxu0 0.0
    %2455 = vmatprep.subr.mxu0 0.0
    %2456 = vmatpush1.msra.mxu0 0.0
    %2457 = vmatprep.subr.mxu0 0.0
    %2458 = vmatpush1.msra.mxu0 0.0
    %2459 = vmatprep.subr.mxu0 0.0
    %2460 = vmatpush1.msra.mxu0 0.0
    %2461 = vmatprep.subr.mxu0 0.0
    %2462 = vmatpush1.msra.mxu0 0.0
    %2463 = vmatprep.subr.mxu0 0.0
    %2464 = vmatpush1.msra.mxu0 0.0
    %2465 = vmatprep.subr.mxu0 0.0
    %2466 = vmatpush1.msra.mxu0 0.0
    %2467 = vmatprep.subr.mxu0 0.0
    %2468 = vmatpush1.msra.mxu0 0.0
    %2469 = vmatprep.subr.mxu0 0.0
    %2470 = vmatpush1.msra.mxu0 0.0
    %2471 = vmatprep.subr.mxu0 0.0
    %2472 = vmatpush1.msra.mxu0 0.0
    %2473 = vmatprep.subr.mxu0 0.0
    %2474 = vmatpush1.msra.mxu0 0.0
    %2475 = vmatprep.subr.mxu0 0.0
    %2476 = vmatpush1.msra.mxu0 0.0
    %2477 = vmatprep.subr.mxu0 0.0
    %2478 = vmatpush1.msra.mxu0 0.0
    %2479 = vmatprep.subr.mxu0 0.0
    %2480 = vmatpush1.msra.mxu0 0.0
    %2481 = vmatprep.subr.mxu0 0.0
    %2482 = vmatpush1.msra.mxu0 0.0
    %2483 = vmatprep.subr.mxu0 0.0
    %2484 = vmatpush1.msra.mxu0 0.0
    %2485 = vmatprep.subr.mxu0 0.0
    %2486 = vmatpush1.msra.mxu0 0.0
    %2487 = vmatprep.subr.mxu0 0.0
    %2488 = vmatpush1.msra.mxu0 0.0
    %2489 = vmatprep.subr.mxu0 0.0
    %2490 = vmatpush1.msra.mxu0 0.0
    %2491 = vmatprep.mubr.f32.mxu0 0.0
    %2492 = vmatmul.mubr.f32.gmra.mrb[0].mxu0 %v2422
    %v2493 = vpop.f32.mrb[0].mxu0
    %v2494 = vadd.f32 %v2419, %v2493
    %v2495 = vpop.f32.mrb[0].mxu0
    %2496 = vmatprep.mubr.f32.mxu0 0.0
    %2497 = vmatmul.mubr.f32.gmra.mrb[0].mxu0 %v2425
    %v2498 = vpop.f32.mrb[0].mxu0
    %v2499 = vadd.f32 %v2419, %v2498
    %v2500 = vpop.f32.mrb[0].mxu0
    %2501 = vdwg.mxu0
    %v2502 = vmul.f32 %v2494, 0.5
    %v2503 = vmul.f32 %v2499, 0.5
    %v2504 = vmul.f32 %v2494, 0.70710677
    %v2505 = vmul.f32 %v2499, 0.70710677
    %v2506 = verf.f32.pop %v2504
    %v2507 = verf.f32.pop %v2505
    %v2508 = vadd.f32 %v2506, 1.0
    %v2509 = vadd.f32 %v2507, 1.0
    %v2510 = vmul.f32 %v2502, %v2508
    %v2511 = vmul.f32 %v2503, %v2509
    %v2512 = vld [vmem:[%s45] sm:$0xff]
    %v2513 = vld [vmem:[%s45 + $0x8] sm:$0xff]
    %v2514 = vld [vmem:[%s45 + $0x10] sm:$0xff]
    %v2515 = vld [vmem:[%s45 + $0x18] sm:$0xff]
    %v2516 = vld [vmem:[%s45 + $0x20] sm:$0xff]
    %v2517 = vld [vmem:[%s45 + $0x28] sm:$0xff]
    %v2518 = vld [vmem:[%s45 + $0x30] sm:$0xff]
    %v2519 = vld [vmem:[%s45 + $0x38] sm:$0xff]
    %v2520 = vld [vmem:[%s47] sm:$0x1]
    %v2522 = vlaneseq
    %v2523 = vshrl.u32 %v2522, 7
    %v2524 = vsub.s32 0, %v2523
    %v2525 = vrot.slane %v2520, %v2524
    %v2528 = vsel %vm1352, %v2510, 0
    %v2531 = vsel %vm1352, %v2511, 0
    %2533 = vmatprep.subr.mxu0 0.0
    %2534 = vmatpush1.msra.mxu0 %v2512
    %2535 = vmatprep.subr.mxu0 0.0
    %2536 = vmatpush1.msra.mxu0 %v2513
    %2537 = vmatprep.subr.mxu0 0.0
    %2538 = vmatpush1.msra.mxu0 %v2514
    %2539 = vmatprep.subr.mxu0 0.0
    %2540 = vmatpush1.msra.mxu0 %v2515
    %2541 = vmatprep.subr.mxu0 0.0
    %2542 = vmatpush1.msra.mxu0 %v2516
    %2543 = vmatprep.subr.mxu0 0.0
    %2544 = vmatpush1.msra.mxu0 %v2517
    %2545 = vmatprep.subr.mxu0 0.0
    %2546 = vmatpush1.msra.mxu0 %v2518
    %2547 = vmatprep.subr.mxu0 0.0
    %2548 = vmatpush1.msra.mxu0 %v2519
    %2549 = vmatprep.subr.mxu0 0.0
    %2550 = vmatpush1.msra.mxu0 0.0
    %2551 = vmatprep.subr.mxu0 0.0
    %2552 = vmatpush1.msra.mxu0 0.0
    %2553 = vmatprep.subr.mxu0 0.0
    %2554 = vmatpush1.msra.mxu0 0.0
    %2555 = vmatprep.subr.mxu0 0.0
    %2556 = vmatpush1.msra.mxu0 0.0
    %2557 = vmatprep.subr.mxu0 0.0
    %2558 = vmatpush1.msra.mxu0 0.0
    %2559 = vmatprep.subr.mxu0 0.0
    %2560 = vmatpush1.msra.mxu0 0.0
    %2561 = vmatprep.subr.mxu0 0.0
    %2562 = vmatpush1.msra.mxu0 0.0
    %2563 = vmatprep.subr.mxu0 0.0
    %2564 = vmatpush1.msra.mxu0 0.0
    %2565 = vmatprep.subr.mxu0 0.0
    %2566 = vmatpush1.msra.mxu0 0.0
    %2567 = vmatprep.subr.mxu0 0.0
    %2568 = vmatpush1.msra.mxu0 0.0
    %2569 = vmatprep.subr.mxu0 0.0
    %2570 = vmatpush1.msra.mxu0 0.0
    %2571 = vmatprep.subr.mxu0 0.0
    %2572 = vmatpush1.msra.mxu0 0.0
    %2573 = vmatprep.subr.mxu0 0.0
    %2574 = vmatpush1.msra.mxu0 0.0
    %2575 = vmatprep.subr.mxu0 0.0
    %2576 = vmatpush1.msra.mxu0 0.0
    %2577 = vmatprep.subr.mxu0 0.0
    %2578 = vmatpush1.msra.mxu0 0.0
    %2579 = vmatprep.subr.mxu0 0.0
    %2580 = vmatpush1.msra.mxu0 0.0
    %2581 = vmatprep.subr.mxu0 0.0
    %2582 = vmatpush1.msra.mxu0 0.0
    %2583 = vmatprep.subr.mxu0 0.0
    %2584 = vmatpush1.msra.mxu0 0.0
    %2585 = vmatprep.subr.mxu0 0.0
    %2586 = vmatpush1.msra.mxu0 0.0
    %2587 = vmatprep.subr.mxu0 0.0
    %2588 = vmatpush1.msra.mxu0 0.0
    %2589 = vmatprep.subr.mxu0 0.0
    %2590 = vmatpush1.msra.mxu0 0.0
    %2591 = vmatprep.subr.mxu0 0.0
    %2592 = vmatpush1.msra.mxu0 0.0
    %2593 = vmatprep.subr.mxu0 0.0
    %2594 = vmatpush1.msra.mxu0 0.0
    %2595 = vmatprep.subr.mxu0 0.0
    %2596 = vmatpush1.msra.mxu0 0.0
    %2597 = vmatprep.mubr.f32.mxu0 0.0
    %2598 = vmatmul.mubr.f32.gmra.mrb[0].mxu0 %v2528
    %v2599 = vpop.f32.mrb[0].mxu0
    %v2600 = vadd.f32 %v2525, %v2599
    %v2601 = vpop.f32.mrb[0].mxu0
    %2602 = vmatprep.mubr.f32.mxu0 0.0
    %2603 = vmatmul.mubr.f32.gmra.mrb[0].mxu0 %v2531
    %v2604 = vpop.f32.mrb[0].mxu0
    %v2605 = vadd.f32 %v2525, %v2604
    %v2606 = vpop.f32.mrb[0].mxu0
    %2607 = vdwg.mxu0
    %v2608 = vadd.f32 %v2600, %v2408
    %v2609 = vadd.f32 %v2605, %v2409
    %v2610 = vsel %vm297, %v2608, 0.0
    %2611 = vadd.xlane.f32.xlu0 %v2610
    %v2612 = vpop.xlane.xlu0 %2611
    %v2613 = vsel %vm297, %v2609, 0.0
    %2614 = vadd.xlane.f32.xlu0 %v2613
    %v2615 = vpop.xlane.xlu0 %2614
    %v2616 = vmul.f32 %v2612, %v1196
    %v2617 = vmul.f32 %v2615, %v1196
    %v2618 = vsub.f32 %v2608, %v2616
    %v2619 = vsub.f32 %v2609, %v2617
    %v2620 = vmul.f32 %v2618, %v2618
    %v2621 = vmul.f32 %v2619, %v2619
    %v2622 = vsel %vm297, %v2620, 0.0
    %2623 = vadd.xlane.f32.xlu0 %v2622
    %v2624 = vpop.xlane.xlu0 %2623
    %v2625 = vsel %vm297, %v2621, 0.0
    %2626 = vadd.xlane.f32.xlu0 %v2625
    %v2627 = vpop.xlane.xlu0 %2626
    %v2628 = vmul.f32 %v2624, %v1196
    %v2629 = vmul.f32 %v2627, %v1196
    %v2630 = vadd.f32 %v2628, 1e-12
    %v2631 = vadd.f32 %v2629, 1e-12
    %v2632 = vrsqrt.pop %v2630
    %v2633 = vrsqrt.pop %v2631
    %v2634 = vmul.f32 %v2618, %v2632
    %v2635 = vmul.f32 %v2619, %v2633
    %v2636 = vld [vmem:[%s49] sm:$0x1]
    %v2638 = vlaneseq
    %v2639 = vshrl.u32 %v2638, 7
    %v2640 = vsub.s32 0, %v2639
    %v2641 = vrot.slane %v2636, %v2640
    %v2643 = vmul.f32 %v2634, %v2641
    %v2644 = vmul.f32 %v2635, %v2641
    %v2645 = vld [vmem:[%s51] sm:$0x1]
    %v2647 = vlaneseq
    %v2648 = vshrl.u32 %v2647, 7
    %v2649 = vsub.s32 0, %v2648
    %v2650 = vrot.slane %v2645, %v2649
    %v2652 = vadd.f32 %v2643, %v2650
    %v2653 = vadd.f32 %v2644, %v2650
    %2654 = vst.msk [vmem:[#allocation23] sm:$0xff] %vm297, %v2652
    %2655 = vst.msk [vmem:[#allocation23 + $0x8] sm:$0xff] %vm297, %v2653
    %v2656 = vld [vmem:[%s53] sm:$0xff]
    %v2657 = vld [vmem:[%s53 + $0x8] sm:$0xff]
    %v2658 = vld [vmem:[%s53 + $0x10] sm:$0xff]
    %v2659 = vld [vmem:[%s53 + $0x18] sm:$0xff]
    %v2660 = vld [vmem:[%s55] sm:$0x1]
    %v2662 = vlaneseq
    %v2663 = vshrl.u32 %v2662, 7
    %v2664 = vsub.s32 0, %v2663
    %v2665 = vrot.slane %v2660, %v2664
    %v2669 = vrot.slane %v2653, 7
    %v2670 = vsel %vm1088, %v2669, %v2652
    %v2671 = vsel %vm297, %v2670, 0
    %2673 = vmatprep.subr.mxu0 0.0
    %2674 = vmatpush1.msra.mxu0 %v2656
    %2675 = vmatprep.subr.mxu0 0.0
    %2676 = vmatpush1.msra.mxu0 %v2657
    %2677 = vmatprep.subr.mxu0 0.0
    %2678 = vmatpush1.msra.mxu0 %v2658
    %2679 = vmatprep.subr.mxu0 0.0
    %2680 = vmatpush1.msra.mxu0 %v2659
    %2681 = vmatprep.subr.mxu0 0.0
    %2682 = vmatpush1.msra.mxu0 0.0
    %2683 = vmatprep.subr.mxu0 0.0
    %2684 = vmatpush1.msra.mxu0 0.0
    %2685 = vmatprep.subr.mxu0 0.0
    %2686 = vmatpush1.msra.mxu0 0.0
    %2687 = vmatprep.subr.mxu0 0.0
    %2688 = vmatpush1.msra.mxu0 0.0
    %2689 = vmatprep.subr.mxu0 0.0
    %2690 = vmatpush1.msra.mxu0 0.0
    %2691 = vmatprep.subr.mxu0 0.0
    %2692 = vmatpush1.msra.mxu0 0.0
    %2693 = vmatprep.subr.mxu0 0.0
    %2694 = vmatpush1.msra.mxu0 0.0
    %2695 = vmatprep.subr.mxu0 0.0
    %2696 = vmatpush1.msra.mxu0 0.0
    %2697 = vmatprep.subr.mxu0 0.0
    %2698 = vmatpush1.msra.mxu0 0.0
    %2699 = vmatprep.subr.mxu0 0.0
    %2700 = vmatpush1.msra.mxu0 0.0
    %2701 = vmatprep.subr.mxu0 0.0
    %2702 = vmatpush1.msra.mxu0 0.0
    %2703 = vmatprep.subr.mxu0 0.0
    %2704 = vmatpush1.msra.mxu0 0.0
    %2705 = vmatprep.subr.mxu0 0.0
    %2706 = vmatpush1.msra.mxu0 0.0
    %2707 = vmatprep.subr.mxu0 0.0
    %2708 = vmatpush1.msra.mxu0 0.0
    %2709 = vmatprep.subr.mxu0 0.0
    %2710 = vmatpush1.msra.mxu0 0.0
    %2711 = vmatprep.subr.mxu0 0.0
    %2712 = vmatpush1.msra.mxu0 0.0
    %2713 = vmatprep.subr.mxu0 0.0
    %2714 = vmatpush1.msra.mxu0 0.0
    %2715 = vmatprep.subr.mxu0 0.0
    %2716 = vmatpush1.msra.mxu0 0.0
    %2717 = vmatprep.subr.mxu0 0.0
    %2718 = vmatpush1.msra.mxu0 0.0
    %2719 = vmatprep.subr.mxu0 0.0
    %2720 = vmatpush1.msra.mxu0 0.0
    %2721 = vmatprep.subr.mxu0 0.0
    %2722 = vmatpush1.msra.mxu0 0.0
    %2723 = vmatprep.subr.mxu0 0.0
    %2724 = vmatpush1.msra.mxu0 0.0
    %2725 = vmatprep.subr.mxu0 0.0
    %2726 = vmatpush1.msra.mxu0 0.0
    %2727 = vmatprep.subr.mxu0 0.0
    %2728 = vmatpush1.msra.mxu0 0.0
    %2729 = vmatprep.subr.mxu0 0.0
    %2730 = vmatpush1.msra.mxu0 0.0
    %2731 = vmatprep.subr.mxu0 0.0
    %2732 = vmatpush1.msra.mxu0 0.0
    %2733 = vmatprep.subr.mxu0 0.0
    %2734 = vmatpush1.msra.mxu0 0.0
    %2735 = vmatprep.subr.mxu0 0.0
    %2736 = vmatpush1.msra.mxu0 0.0
    %2737 = vmatprep.mubr.f32.mxu0 0.0
    %2738 = vmatmul.mubr.f32.gmra.mrb[0].mxu0 %v2671
    %v2739 = vpop.f32.mrb[0].mxu0
    %v2740 = vadd.f32 %v2665, %v2739
    %v2741 = vpop.f32.mrb[0].mxu0
    %2742 = vdwg.mxu0
    %v2743 = vtanh.pop %v2740
    %vm2744 = vcmask 254976
    %2745 = vst.msk [vmem:[#allocation24] sm:$0x3] %vm2744, %v2743
    // Predicated region
    $region166: #{tpu_custom_call.1} parent=1 // pred_check
      _
    $region167: #{tpu_custom_call.1} parent=1 // pred_check_branch
      %2747 = sbr.rel (0) target = $region169
    $region168: #{tpu_custom_call.1} parent=1 // pred_region
      %s2749 = ssub.s32 256, 256
      %2750 = vsyncadd [#allocation4], %s2749
      %s2751 = sshll.u32 [#allocation23], 4
      %s2752 = int_to_ptr.vmem [resolvable:$true] %s2751
      %2757 = dma.vmem_to_hbm [thread:$0]  %s2752, 256, %s57, [#allocation4], 128, 128, 8
    $region169: #{tpu_custom_call.1} parent=1 // pred_fallthru
      _
    // Predicated region
    $region170: #{tpu_custom_call.1} parent=1 // pred_check
      _
    $region171: #{tpu_custom_call.1} parent=1 // pred_check_branch
      %2759 = sbr.rel (0) target = $region173
    $region172: #{tpu_custom_call.1} parent=1 // pred_region
      %s2761 = ssub.s32 32, 32
      %2762 = vsyncadd [#allocation25], %s2761
      %s2764 = sshll.u32 [#allocation24], 4
      %s2765 = int_to_ptr.vmem [resolvable:$true] %s2764
      %2767 = dma.vmem_to_hbm [thread:$0]  %s2765, 32, %s59, [#allocation25]
    $region173: #{tpu_custom_call.1} parent=1 // pred_fallthru
      _
    // Predicated region
    $region174: #{tpu_custom_call.1} parent=1 // pred_check
      _
    $region175: #{tpu_custom_call.1} parent=1 // pred_check_branch
      %2769 = sbr.rel (0) target = $region177
    $region176: #{tpu_custom_call.1} parent=1 // pred_region
      %s2771 = ssub.s32 2048, 2048
      %2772 = vsyncadd [#allocation25], %s2771
      %s2773 = sshll.u32 [#allocation26], 4
      %s2774 = int_to_ptr.vmem [resolvable:$true] %s2773
      %2779 = dma.vmem_to_hbm [thread:$0]  %s2774, 2048, %s61, [#allocation25], 128, 128, 8
    $region177: #{tpu_custom_call.1} parent=1 // pred_fallthru
      _
    // Predicated region
    $region178: #{tpu_custom_call.1} parent=1 // pred_check
      _
    $region179: #{tpu_custom_call.1} parent=1 // pred_check_branch
      %2781 = sbr.rel (0) target = $region181
    $region180: #{tpu_custom_call.1} parent=1 // pred_region
      %s2783 = ssub.s32 2048, 2048
      %2784 = vsyncadd [#allocation28], %s2783
      %s2785 = sshll.u32 [#allocation27], 4
      %s2786 = int_to_ptr.vmem [resolvable:$true] %s2785
      %2791 = dma.vmem_to_hbm [thread:$0]  %s2786, 2048, %s63, [#allocation28], 128, 128, 8
    $region181: #{tpu_custom_call.1} parent=1 // pred_fallthru
      _
    // Predicated region
    $region182: #{tpu_custom_call.1} parent=1 // pred_check
      _
    $region183: #{tpu_custom_call.1} parent=1 // pred_check_branch
      %2793 = sbr.rel (0) target = $region185
    $region184: #{tpu_custom_call.1} parent=1 // pred_region
      %2794 = dma.done [#allocation4], 256
    $region185: #{tpu_custom_call.1} parent=1 // pred_fallthru
      _
    // Predicated region
    $region186: #{tpu_custom_call.1} parent=1 // pred_check
      _
    $region187: #{tpu_custom_call.1} parent=1 // pred_check_branch
      %2796 = sbr.rel (0) target = $region189
    $region188: #{tpu_custom_call.1} parent=1 // pred_region
      %2797 = dma.done [#allocation25], 32
    $region189: #{tpu_custom_call.1} parent=1 // pred_fallthru
      _
    // Predicated region
    $region190: #{tpu_custom_call.1} parent=1 // pred_check
      _
    $region191: #{tpu_custom_call.1} parent=1 // pred_check_branch
      %2799 = sbr.rel (0) target = $region193
    $region192: #{tpu_custom_call.1} parent=1 // pred_region
      %2800 = dma.done [#allocation25], 2048
    $region193: #{tpu_custom_call.1} parent=1 // pred_fallthru
      _
    // Predicated region
    $region194: #{tpu_custom_call.1} parent=1 // pred_check
      _
    $region195: #{tpu_custom_call.1} parent=1 // pred_check_branch
      %2802 = sbr.rel (0) target = $region197
    $region196: #{tpu_custom_call.1} parent=1 // pred_region
      %2803 = dma.done [#allocation28], 2048
    $region197: #{tpu_custom_call.1} parent=1 // pred_fallthru
      _
    %2804 = vsyncpa [#allocation3], 1
    %2805 = vsyncpa [#allocation6], 1
    %2806 = vsyncpa [#allocation9], 1
    %2807 = vsyncpa [#allocation12], 1
    %2808 = vsyncpa [#allocation15], 1
    %2809 = vsyncpa [#allocation18], 1
    %2810 = vsyncpa [#allocation21], 1
    %2811 = vsyncpa [#allocation4], 1
    %2812 = vsyncpa [#allocation25], 1
    %2813 = vsyncpa [#allocation28], 1

</llo_original>
